<compile_context>
chip_gen: v5e
topology: v5e:2x2
jax: 0.10.0
libtpu: 0.0.40
codegen_flags: <defaults>
</compile_context>

<pallas_src>
import functools

import jax
import jax.numpy as jnp
from jax import lax
from jax.experimental import pallas as pl
from jax.experimental.pallas import tpu as pltpu


def _round_up(x, m):
    return ((x + m - 1) // m) * m


# -----------------------------------------------------------------------------
# Fused kernel: block_b batch elements per grid step.
#   q_ref (Bt,Sq,Ei), k_ref/v_ref (Bt,Sk,Ei), wq/wk/wv (Ei,Ep), wo (Ep,Eo),
#   o_ref (Bt,Sq,Eo), y_scr VMEM (Bt*Sq, Ep).   Ei/Ep/Eo are 128-multiples.
# -----------------------------------------------------------------------------
def _cross_attn_kernel(q_ref, k_ref, v_ref, wq_ref, wk_ref, wv_ref, wo_ref,
                       o_ref, y_scr, *, num_heads, head_pad):
    bt, sq, ei = q_ref.shape
    sk = k_ref.shape[1]
    hp = head_pad
    mxu_dtype = wq_ref.dtype

    # Merge batch into sublane rows so each projection feeds the MXU with
    # Bt*S rows at once (lane dim unchanged -> free reshape).
    q = q_ref[...].reshape(bt * sq, ei)
    k = k_ref[...].reshape(bt * sk, ei)
    v = v_ref[...].reshape(bt * sk, ei)

    # Projections (MXU, f32 accumulation). 1/sqrt(hd) is pre-folded into wq.
    qp = jnp.dot(q, wq_ref[...], preferred_element_type=jnp.float32)
    kp = jnp.dot(k, wk_ref[...], preferred_element_type=jnp.float32)
    vp = jnp.dot(v, wv_ref[...], preferred_element_type=jnp.float32)

    # Keep MXU operands in the low-precision dtype; softmax stays f32.
    qp = qp.astype(mxu_dtype)
    kp = kp.astype(mxu_dtype)
    vp = vp.astype(mxu_dtype)

    # Per (batch element, head) attention.  Heads sit at 128-lane-aligned
    # offsets (hp = round_up(hd, 128)), so every slice is a clean vreg lane
    # slice — no XLU relayouts, no masked partial stores.
    # TODO(synk): for large Bt*H turn this static loop into a grid axis /
    # fori_loop to bound code size; trivial at these shapes.
    for b in range(bt):
        rq = b * sq
        rk = b * sk
        for h in range(num_heads):
            c0 = h * hp
            qh = qp[rq:rq + sq, c0:c0 + hp]        # (Sq, hp)
            kh = kp[rk:rk + sk, c0:c0 + hp]        # (Sk, hp)
            vh = vp[rk:rk + sk, c0:c0 + hp]        # (Sk, hp)

            # scores: contract last dims directly (no materialized kh.T);
            # zero padding lanes contribute nothing to the contraction.
            s = lax.dot_general(qh, kh, (((1,), (1,)), ((), ())),
                                preferred_element_type=jnp.float32)  # (Sq, Sk)

            # numerically-stable softmax (f32) with deferred normalization
            m = jnp.max(s, axis=-1, keepdims=True)
            p = jnp.exp(s - m)
            l = jnp.sum(p, axis=-1, keepdims=True)

            oh = jnp.dot(p.astype(mxu_dtype), vh,
                         preferred_element_type=jnp.float32)         # (Sq, hp)
            oh = oh * pl.reciprocal(l, approx=True)                  # EUP slot

            # Write this head's output straight into its lane-aligned slot of
            # the VMEM slab (bounds live ranges, no concat relayout).
            y_scr[rq:rq + sq, c0:c0 + hp] = oh.astype(mxu_dtype)

    # c_proj from the assembled (Bt*Sq, H*hp) slab; the store is lane-dense
    # (Eo is a multiple of 128).
    out = jnp.dot(y_scr[...], wo_ref[...], preferred_element_type=jnp.float32)
    o_ref[...] = out.reshape(bt, sq, -1).astype(o_ref.dtype)


# -----------------------------------------------------------------------------
# Parameter preparation (one-time): lane-pad + head-align weights, fold scale,
# cast to the MXU dtype.
# -----------------------------------------------------------------------------
def init_raw_params(key, embed_dim):
    """nn.Linear-style uniform(+/- 1/sqrt(fan_in)) weights, stored transposed
    as (E_in, E_out): y = x @ W^T."""
    bound = 1.0 / (embed_dim ** 0.5)
    keys = jax.random.split(key, 4)
    names = ["w_q_t", "w_k_t", "w_v_t", "c_proj_t"]
    return {
        n: jax.random.uniform(kk, (embed_dim, embed_dim), jnp.float32,
                              minval=-bound, maxval=bound)
        for n, kk in zip(names, keys)
    }


def prepare_params(raw, num_heads, mxu_dtype=jnp.bfloat16):
    """Re-lay weights so head h lives at lane offset h*hp (hp = round_up(hd,128))
    and the contraction/output dims are 128-multiples.  Folds 1/sqrt(hd) into
    W_q.  Zero padding is mathematically inert (padded lanes contribute 0)."""
    e = raw["w_q_t"].shape[0]
    assert e % num_heads == 0
    hd = e // num_heads
    hp = _round_up(hd, 128)
    ei = _round_up(e, 128)       # padded input / contraction width
    eo = _round_up(e, 128)       # padded c_proj output width
    scale = 1.0 / (hd ** 0.5)

    def pad_proj(w_t, fold_scale=False):
        # (E, E) -> (Ei, H*hp): original column h*hd + d lands at h*hp + d.
        if fold_scale:
            w_t = w_t * scale
        w = w_t.reshape(e, num_heads, hd)
        w = jnp.pad(w, ((0, ei - e), (0, 0), (0, hp - hd)))
        return w.reshape(ei, num_heads * hp).astype(mxu_dtype)

    # c_proj rows follow the head-major attention-output layout.
    wo = raw["c_proj_t"].reshape(num_heads, hd, e)
    wo = jnp.pad(wo, ((0, 0), (0, hp - hd), (0, eo - e)))
    wo = wo.reshape(num_heads * hp, eo).astype(mxu_dtype)

    return {
        "wq": pad_proj(raw["w_q_t"], fold_scale=True),
        "wk": pad_proj(raw["w_k_t"]),
        "wv": pad_proj(raw["w_v_t"]),
        "wo": wo,
    }


# -----------------------------------------------------------------------------
# CrossAttention forward (eval mode, bias=False, dropout=0.0)
# -----------------------------------------------------------------------------
def cross_attention(q, k, v, params, num_heads, *, block_b=None):
    """q: (B, Sq, E), k/v: (B, Sk, E). params from prepare_params()."""
    b, sq, e = q.shape
    sk = k.shape[1]
    wq, wk, wv, wo = params["wq"], params["wk"], params["wv"], params["wo"]
    ei, ep = wq.shape
    eo = wo.shape[1]
    hp = ep // num_heads
    mxu_dtype = wq.dtype

    if block_b is None:
        # Largest batch block that still leaves >= 2 grid steps (keeps both
        # v7x TensorCores busy); degenerates to 1 step only when B == 1.
        block_b = max((d for d in range(1, b + 1)
                       if b % d == 0 and b // d >= 2), default=b)
    assert b % block_b == 0
    grid = (b // block_b,)

    def pad_cast(x):
        pad = ei - x.shape[-1]
        if pad:
            x = jnp.pad(x, ((0, 0), (0, 0), (0, pad)))
        return x.astype(mxu_dtype)

    qpd, kpd, vpd = pad_cast(q), pad_cast(k), pad_cast(v)

    # VMEM budget derived from the actual buffers (not a hard-coded 32 MiB):
    # q/k/v + output double-buffered, weights single-buffered, plus scratch.
    itm = jnp.dtype(mxu_dtype).itemsize
    vmem_bytes = (
        2 * block_b * (sq + 2 * sk) * ei * itm
        + (3 * ei * ep + ep * eo) * itm
        + 2 * block_b * sq * eo * q.dtype.itemsize
        + block_b * sq * ep * itm
    )
    vmem_limit = int(min(64 * 1024 * 1024, 2 * vmem_bytes + (4 << 20)))

    kernel = functools.partial(_cross_attn_kernel, num_heads=num_heads,
                               head_pad=hp)

    def build(weight_pipeline_mode):
        wkw = ({} if weight_pipeline_mode is None
               else {"pipeline_mode": weight_pipeline_mode})
        return pl.pallas_call(
            kernel,
            out_shape=jax.ShapeDtypeStruct((b, sq, eo), q.dtype),
            grid_spec=pltpu.PrefetchScalarGridSpec(
                num_scalar_prefetch=0,
                grid=grid,
                in_specs=[
                    pl.BlockSpec((block_b, sq, ei), lambda i: (i, 0, 0)),   # q
                    pl.BlockSpec((block_b, sk, ei), lambda i: (i, 0, 0)),   # k
                    pl.BlockSpec((block_b, sk, ei), lambda i: (i, 0, 0)),   # v
                    pl.BlockSpec((ei, ep), lambda i: (0, 0), **wkw),        # Wq^T
                    pl.BlockSpec((ei, ep), lambda i: (0, 0), **wkw),        # Wk^T
                    pl.BlockSpec((ei, ep), lambda i: (0, 0), **wkw),        # Wv^T
                    pl.BlockSpec((ep, eo), lambda i: (0, 0), **wkw),        # c_proj^T
                ],
                out_specs=pl.BlockSpec((block_b, sq, eo), lambda i: (i, 0, 0)),
                scratch_shapes=[pltpu.VMEM((block_b * sq, ep), mxu_dtype)],
            ),
            compiler_params=pltpu.CompilerParams(
                dimension_semantics=("parallel",),
                vmem_limit_bytes=vmem_limit,
            ),
        )

    try:
        # Weights have a constant index_map -> single-buffer them (halves their
        # VMEM footprint; matters on v7x's smaller VMEM at realistic E).
        out = build(pl.Buffered(1))(qpd, kpd, vpd, wq, wk, wv, wo)
    except Exception:
        # Fallback for environments where Buffered(1) is unsupported.
        out = build(None)(qpd, kpd, vpd, wq, wk, wv, wo)

    # resid_dropout is identity in eval mode (training=False).
    return out[..., :e] if eo != e else out


# -----------------------------------------------------------------------------
# Reference (pure JAX, f32) for sanity check — uses the raw (E, E) weights.
# -----------------------------------------------------------------------------
def cross_attention_ref(q, k, v, raw, num_heads):
    b, sq, e = q.shape
    sk = k.shape[1]
    hd = e // num_heads
    qp = (q @ raw["w_q_t"]).reshape(b, sq, num_heads, hd).transpose(0, 2, 1, 3)
    kp = (k @ raw["w_k_t"]).reshape(b, sk, num_heads, hd).transpose(0, 2, 1, 3)
    vp = (v @ raw["w_v_t"]).reshape(b, sk, num_heads, hd).transpose(0, 2, 1, 3)
    s = jnp.einsum("bhqd,bhkd->bhqk", qp, kp) / (hd ** 0.5)
    p = jax.nn.softmax(s, axis=-1)
    y = jnp.einsum("bhqk,bhkd->bhqd", p, vp).transpose(0, 2, 1, 3).reshape(b, sq, e)
    return y @ raw["c_proj_t"]


if __name__ == "__main__":
    B, S, E, H = 2, 8, 32, 4   # batch, seq, embed_dimension, num_heads

    key = jax.random.PRNGKey(0)
    kq, kk_, kv, kp = jax.random.split(key, 4)
    q = jax.random.normal(kq, (B, S, E), jnp.float32)
    k = jax.random.normal(kk_, (B, S, E), jnp.float32)
    v = jax.random.normal(kv, (B, S, E), jnp.float32)
    raw = init_raw_params(kp, E)
    ref = cross_attention_ref(q, k, v, raw, H)

    # Default path: bf16 MXU operands, f32 accumulation & softmax (v6e/v7x).
    params_bf16 = prepare_params(raw, H, mxu_dtype=jnp.bfloat16)
    out = jax.block_until_ready(cross_attention(q, k, v, params_bf16, H))
    assert out.shape == (B, S, E)
    assert jnp.allclose(out, ref, atol=5e-2, rtol=5e-2), (
        float(jnp.max(jnp.abs(out - ref))))

    # f32 MXU path for tight numerical parity (approx reciprocal -> 2e-3).
    params_f32 = prepare_params(raw, H, mxu_dtype=jnp.float32)
    out32 = jax.block_until_ready(cross_attention(q, k, v, params_f32, H))
    assert jnp.allclose(out32, ref, atol=2e-3, rtol=2e-3), (
        float(jnp.max(jnp.abs(out32 - ref))))

    print("KERNEL_OK")
</pallas_src>

<mosaic_0001>
module attributes {stable_mosaic.version = 11 : i64} {
  func.func @_cross_attn_kernel(%arg0: i32, %arg1: memref<1x8x128xbf16, #tpu.memory_space<vmem>>, %arg2: memref<1x8x128xbf16, #tpu.memory_space<vmem>>, %arg3: memref<1x8x128xbf16, #tpu.memory_space<vmem>>, %arg4: memref<128x512xbf16, #tpu.memory_space<vmem>>, %arg5: memref<128x512xbf16, #tpu.memory_space<vmem>>, %arg6: memref<128x512xbf16, #tpu.memory_space<vmem>>, %arg7: memref<512x128xbf16, #tpu.memory_space<vmem>>, %arg8: memref<1x8x128xf32, #tpu.memory_space<vmem>>, %arg9: memref<8x512xbf16, #tpu.memory_space<vmem>>) attributes {dimension_semantics = [#tpu.dimension_semantics<parallel>], iteration_bounds = array<i64: 2>, scalar_prefetch = 0 : i64, scratch_operands = 1 : i64, tpu.core_type = #tpu.core_type<tc>, window_params = [{transform_indices = @transform_0, window_bounds = array<i64: 1, 8, 128>}, {transform_indices = @transform_1, window_bounds = array<i64: 1, 8, 128>}, {transform_indices = @transform_2, window_bounds = array<i64: 1, 8, 128>}, {pipeline_mode = #tpu.pipeline_mode<synchronous>, transform_indices = @transform_3, window_bounds = array<i64: 128, 512>}, {pipeline_mode = #tpu.pipeline_mode<synchronous>, transform_indices = @transform_4, window_bounds = array<i64: 128, 512>}, {pipeline_mode = #tpu.pipeline_mode<synchronous>, transform_indices = @transform_5, window_bounds = array<i64: 128, 512>}, {pipeline_mode = #tpu.pipeline_mode<synchronous>, transform_indices = @transform_6, window_bounds = array<i64: 512, 128>}, {transform_indices = @transform_7, window_bounds = array<i64: 1, 8, 128>}]} {
    %c0 = arith.constant 0 : index
    %c0_0 = arith.constant 0 : index
    %c0_1 = arith.constant 0 : index
    %0 = vector.load %arg1[%c0, %c0_0, %c0_1] : memref<1x8x128xbf16, #tpu.memory_space<vmem>>, vector<1x8x128xbf16>
    %1 = vector.shape_cast %0 : vector<1x8x128xbf16> to vector<8x128xbf16>
    %c0_2 = arith.constant 0 : index
    %c0_3 = arith.constant 0 : index
    %c0_4 = arith.constant 0 : index
    %2 = vector.load %arg2[%c0_2, %c0_3, %c0_4] : memref<1x8x128xbf16, #tpu.memory_space<vmem>>, vector<1x8x128xbf16>
    %3 = vector.shape_cast %2 : vector<1x8x128xbf16> to vector<8x128xbf16>
    %c0_5 = arith.constant 0 : index
    %c0_6 = arith.constant 0 : index
    %c0_7 = arith.constant 0 : index
    %4 = vector.load %arg3[%c0_5, %c0_6, %c0_7] : memref<1x8x128xbf16, #tpu.memory_space<vmem>>, vector<1x8x128xbf16>
    %5 = vector.shape_cast %4 : vector<1x8x128xbf16> to vector<8x128xbf16>
    %c0_8 = arith.constant 0 : index
    %c0_9 = arith.constant 0 : index
    %6 = vector.load %arg4[%c0_8, %c0_9] : memref<128x512xbf16, #tpu.memory_space<vmem>>, vector<128x512xbf16>
    %cst = arith.constant dense<0.000000e+00> : vector<8x512xf32>
    %7 = tpu.matmul %1, %6, %cst {dimension_numbers = #tpu.dot_dimension_numbers<[1], [0], [0], [1], [0, 0, 1, 1], [], []>} : vector<8x128xbf16>, vector<128x512xbf16>, vector<8x512xf32> -> vector<8x512xf32>
    %c0_10 = arith.constant 0 : index
    %c0_11 = arith.constant 0 : index
    %8 = vector.load %arg5[%c0_10, %c0_11] : memref<128x512xbf16, #tpu.memory_space<vmem>>, vector<128x512xbf16>
    %cst_12 = arith.constant dense<0.000000e+00> : vector<8x512xf32>
    %9 = tpu.matmul %3, %8, %cst_12 {dimension_numbers = #tpu.dot_dimension_numbers<[1], [0], [0], [1], [0, 0, 1, 1], [], []>} : vector<8x128xbf16>, vector<128x512xbf16>, vector<8x512xf32> -> vector<8x512xf32>
    %c0_13 = arith.constant 0 : index
    %c0_14 = arith.constant 0 : index
    %10 = vector.load %arg6[%c0_13, %c0_14] : memref<128x512xbf16, #tpu.memory_space<vmem>>, vector<128x512xbf16>
    %cst_15 = arith.constant dense<0.000000e+00> : vector<8x512xf32>
    %11 = tpu.matmul %5, %10, %cst_15 {dimension_numbers = #tpu.dot_dimension_numbers<[1], [0], [0], [1], [0, 0, 1, 1], [], []>} : vector<8x128xbf16>, vector<128x512xbf16>, vector<8x512xf32> -> vector<8x512xf32>
    %12 = arith.truncf %7 : vector<8x512xf32> to vector<8x512xbf16>
    %13 = arith.truncf %9 : vector<8x512xf32> to vector<8x512xbf16>
    %14 = arith.truncf %11 : vector<8x512xf32> to vector<8x512xbf16>
    %15 = vector.extract_strided_slice %12 {offsets = [0, 0], sizes = [8, 128], strides = [1, 1]} : vector<8x512xbf16> to vector<8x128xbf16>
    %16 = vector.extract_strided_slice %13 {offsets = [0, 0], sizes = [8, 128], strides = [1, 1]} : vector<8x512xbf16> to vector<8x128xbf16>
    %17 = vector.extract_strided_slice %14 {offsets = [0, 0], sizes = [8, 128], strides = [1, 1]} : vector<8x512xbf16> to vector<8x128xbf16>
    %cst_16 = arith.constant dense<0.000000e+00> : vector<8x8xf32>
    %18 = tpu.matmul %15, %16, %cst_16 {dimension_numbers = #tpu.dot_dimension_numbers<[1], [1], [0], [0], [0, 0, 1, 0], [], []>} : vector<8x128xbf16>, vector<8x128xbf16>, vector<8x8xf32> -> vector<8x8xf32>
    %cst_17 = arith.constant dense<0xFF800000> : vector<8xf32>
    %19 = vector.multi_reduction <maximumf>, %18, %cst_17 [1] : vector<8x8xf32> to vector<8xf32>
    %20 = vector.shape_cast %19 : vector<8xf32> to vector<8x1xf32>
    %21 = vector.broadcast %20 : vector<8x1xf32> to vector<8x8xf32>
    %22 = arith.subf %18, %21 : vector<8x8xf32>
    %23 = math.exp %22 : vector<8x8xf32>
    %cst_18 = arith.constant dense<0.000000e+00> : vector<8xf32>
    %24 = vector.multi_reduction <add>, %23, %cst_18 [1] : vector<8x8xf32> to vector<8xf32>
    %25 = vector.shape_cast %24 : vector<8xf32> to vector<8x1xf32>
    %26 = arith.truncf %23 : vector<8x8xf32> to vector<8x8xbf16>
    %cst_19 = arith.constant dense<0.000000e+00> : vector<8x128xf32>
    %27 = tpu.matmul %26, %17, %cst_19 {dimension_numbers = #tpu.dot_dimension_numbers<[1], [0], [0], [1], [0, 0, 1, 1], [], []>} : vector<8x8xbf16>, vector<8x128xbf16>, vector<8x128xf32> -> vector<8x128xf32>
    %28 = tpu.reciprocal %25 {approx = true} : vector<8x1xf32> -> vector<8x1xf32>
    %29 = vector.broadcast %28 : vector<8x1xf32> to vector<8x128xf32>
    %30 = arith.mulf %27, %29 : vector<8x128xf32>
    %31 = arith.truncf %30 : vector<8x128xf32> to vector<8x128xbf16>
    %c0_20 = arith.constant 0 : index
    %c0_21 = arith.constant 0 : index
    %32 = vector.load %arg9[%c0_20, %c0_21] : memref<8x512xbf16, #tpu.memory_space<vmem>>, vector<8x128xbf16>
    tpu.vector_store %arg9[%c0_20, %c0_21], %31 {strides = array<i32>} : memref<8x512xbf16, #tpu.memory_space<vmem>>, vector<8x128xbf16>,
    %33 = vector.extract_strided_slice %12 {offsets = [0, 128], sizes = [8, 128], strides = [1, 1]} : vector<8x512xbf16> to vector<8x128xbf16>
    %34 = vector.extract_strided_slice %13 {offsets = [0, 128], sizes = [8, 128], strides = [1, 1]} : vector<8x512xbf16> to vector<8x128xbf16>
    %35 = vector.extract_strided_slice %14 {offsets = [0, 128], sizes = [8, 128], strides = [1, 1]} : vector<8x512xbf16> to vector<8x128xbf16>
    %cst_22 = arith.constant dense<0.000000e+00> : vector<8x8xf32>
    %36 = tpu.matmul %33, %34, %cst_22 {dimension_numbers = #tpu.dot_dimension_numbers<[1], [1], [0], [0], [0, 0, 1, 0], [], []>} : vector<8x128xbf16>, vector<8x128xbf16>, vector<8x8xf32> -> vector<8x8xf32>
    %cst_23 = arith.constant dense<0xFF800000> : vector<8xf32>
    %37 = vector.multi_reduction <maximumf>, %36, %cst_23 [1] : vector<8x8xf32> to vector<8xf32>
    %38 = vector.shape_cast %37 : vector<8xf32> to vector<8x1xf32>
    %39 = vector.broadcast %38 : vector<8x1xf32> to vector<8x8xf32>
    %40 = arith.subf %36, %39 : vector<8x8xf32>
    %41 = math.exp %40 : vector<8x8xf32>
    %cst_24 = arith.constant dense<0.000000e+00> : vector<8xf32>
    %42 = vector.multi_reduction <add>, %41, %cst_24 [1] : vector<8x8xf32> to vector<8xf32>
    %43 = vector.shape_cast %42 : vector<8xf32> to vector<8x1xf32>
    %44 = arith.truncf %41 : vector<8x8xf32> to vector<8x8xbf16>
    %cst_25 = arith.constant dense<0.000000e+00> : vector<8x128xf32>
    %45 = tpu.matmul %44, %35, %cst_25 {dimension_numbers = #tpu.dot_dimension_numbers<[1], [0], [0], [1], [0, 0, 1, 1], [], []>} : vector<8x8xbf16>, vector<8x128xbf16>, vector<8x128xf32> -> vector<8x128xf32>
    %46 = tpu.reciprocal %43 {approx = true} : vector<8x1xf32> -> vector<8x1xf32>
    %47 = vector.broadcast %46 : vector<8x1xf32> to vector<8x128xf32>
    %48 = arith.mulf %45, %47 : vector<8x128xf32>
    %49 = arith.truncf %48 : vector<8x128xf32> to vector<8x128xbf16>
    %c0_26 = arith.constant 0 : index
    %c128 = arith.constant 128 : index
    %50 = vector.load %arg9[%c0_26, %c128] : memref<8x512xbf16, #tpu.memory_space<vmem>>, vector<8x128xbf16>
    tpu.vector_store %arg9[%c0_26, %c128], %49 {strides = array<i32>} : memref<8x512xbf16, #tpu.memory_space<vmem>>, vector<8x128xbf16>,
    %51 = vector.extract_strided_slice %12 {offsets = [0, 256], sizes = [8, 128], strides = [1, 1]} : vector<8x512xbf16> to vector<8x128xbf16>
    %52 = vector.extract_strided_slice %13 {offsets = [0, 256], sizes = [8, 128], strides = [1, 1]} : vector<8x512xbf16> to vector<8x128xbf16>
    %53 = vector.extract_strided_slice %14 {offsets = [0, 256], sizes = [8, 128], strides = [1, 1]} : vector<8x512xbf16> to vector<8x128xbf16>
    %cst_27 = arith.constant dense<0.000000e+00> : vector<8x8xf32>
    %54 = tpu.matmul %51, %52, %cst_27 {dimension_numbers = #tpu.dot_dimension_numbers<[1], [1], [0], [0], [0, 0, 1, 0], [], []>} : vector<8x128xbf16>, vector<8x128xbf16>, vector<8x8xf32> -> vector<8x8xf32>
    %cst_28 = arith.constant dense<0xFF800000> : vector<8xf32>
    %55 = vector.multi_reduction <maximumf>, %54, %cst_28 [1] : vector<8x8xf32> to vector<8xf32>
    %56 = vector.shape_cast %55 : vector<8xf32> to vector<8x1xf32>
    %57 = vector.broadcast %56 : vector<8x1xf32> to vector<8x8xf32>
    %58 = arith.subf %54, %57 : vector<8x8xf32>
    %59 = math.exp %58 : vector<8x8xf32>
    %cst_29 = arith.constant dense<0.000000e+00> : vector<8xf32>
    %60 = vector.multi_reduction <add>, %59, %cst_29 [1] : vector<8x8xf32> to vector<8xf32>
    %61 = vector.shape_cast %60 : vector<8xf32> to vector<8x1xf32>
    %62 = arith.truncf %59 : vector<8x8xf32> to vector<8x8xbf16>
    %cst_30 = arith.constant dense<0.000000e+00> : vector<8x128xf32>
    %63 = tpu.matmul %62, %53, %cst_30 {dimension_numbers = #tpu.dot_dimension_numbers<[1], [0], [0], [1], [0, 0, 1, 1], [], []>} : vector<8x8xbf16>, vector<8x128xbf16>, vector<8x128xf32> -> vector<8x128xf32>
    %64 = tpu.reciprocal %61 {approx = true} : vector<8x1xf32> -> vector<8x1xf32>
    %65 = vector.broadcast %64 : vector<8x1xf32> to vector<8x128xf32>
    %66 = arith.mulf %63, %65 : vector<8x128xf32>
    %67 = arith.truncf %66 : vector<8x128xf32> to vector<8x128xbf16>
    %c0_31 = arith.constant 0 : index
    %c256 = arith.constant 256 : index
    %68 = vector.load %arg9[%c0_31, %c256] : memref<8x512xbf16, #tpu.memory_space<vmem>>, vector<8x128xbf16>
    tpu.vector_store %arg9[%c0_31, %c256], %67 {strides = array<i32>} : memref<8x512xbf16, #tpu.memory_space<vmem>>, vector<8x128xbf16>,
    %69 = vector.extract_strided_slice %12 {offsets = [0, 384], sizes = [8, 128], strides = [1, 1]} : vector<8x512xbf16> to vector<8x128xbf16>
    %70 = vector.extract_strided_slice %13 {offsets = [0, 384], sizes = [8, 128], strides = [1, 1]} : vector<8x512xbf16> to vector<8x128xbf16>
    %71 = vector.extract_strided_slice %14 {offsets = [0, 384], sizes = [8, 128], strides = [1, 1]} : vector<8x512xbf16> to vector<8x128xbf16>
    %cst_32 = arith.constant dense<0.000000e+00> : vector<8x8xf32>
    %72 = tpu.matmul %69, %70, %cst_32 {dimension_numbers = #tpu.dot_dimension_numbers<[1], [1], [0], [0], [0, 0, 1, 0], [], []>} : vector<8x128xbf16>, vector<8x128xbf16>, vector<8x8xf32> -> vector<8x8xf32>
    %cst_33 = arith.constant dense<0xFF800000> : vector<8xf32>
    %73 = vector.multi_reduction <maximumf>, %72, %cst_33 [1] : vector<8x8xf32> to vector<8xf32>
    %74 = vector.shape_cast %73 : vector<8xf32> to vector<8x1xf32>
    %75 = vector.broadcast %74 : vector<8x1xf32> to vector<8x8xf32>
    %76 = arith.subf %72, %75 : vector<8x8xf32>
    %77 = math.exp %76 : vector<8x8xf32>
    %cst_34 = arith.constant dense<0.000000e+00> : vector<8xf32>
    %78 = vector.multi_reduction <add>, %77, %cst_34 [1] : vector<8x8xf32> to vector<8xf32>
    %79 = vector.shape_cast %78 : vector<8xf32> to vector<8x1xf32>
    %80 = arith.truncf %77 : vector<8x8xf32> to vector<8x8xbf16>
    %cst_35 = arith.constant dense<0.000000e+00> : vector<8x128xf32>
    %81 = tpu.matmul %80, %71, %cst_35 {dimension_numbers = #tpu.dot_dimension_numbers<[1], [0], [0], [1], [0, 0, 1, 1], [], []>} : vector<8x8xbf16>, vector<8x128xbf16>, vector<8x128xf32> -> vector<8x128xf32>
    %82 = tpu.reciprocal %79 {approx = true} : vector<8x1xf32> -> vector<8x1xf32>
    %83 = vector.broadcast %82 : vector<8x1xf32> to vector<8x128xf32>
    %84 = arith.mulf %81, %83 : vector<8x128xf32>
    %85 = arith.truncf %84 : vector<8x128xf32> to vector<8x128xbf16>
    %c0_36 = arith.constant 0 : index
    %c384 = arith.constant 384 : index
    %86 = vector.load %arg9[%c0_36, %c384] : memref<8x512xbf16, #tpu.memory_space<vmem>>, vector<8x128xbf16>
    tpu.vector_store %arg9[%c0_36, %c384], %85 {strides = array<i32>} : memref<8x512xbf16, #tpu.memory_space<vmem>>, vector<8x128xbf16>,
    %c0_37 = arith.constant 0 : index
    %c0_38 = arith.constant 0 : index
    %87 = vector.load %arg9[%c0_37, %c0_38] : memref<8x512xbf16, #tpu.memory_space<vmem>>, vector<8x512xbf16>
    %c0_39 = arith.constant 0 : index
    %c0_40 = arith.constant 0 : index
    %88 = vector.load %arg7[%c0_39, %c0_40] : memref<512x128xbf16, #tpu.memory_space<vmem>>, vector<512x128xbf16>
    %cst_41 = arith.constant dense<0.000000e+00> : vector<8x128xf32>
    %89 = tpu.matmul %87, %88, %cst_41 {dimension_numbers = #tpu.dot_dimension_numbers<[1], [0], [0], [1], [0, 0, 1, 1], [], []>} : vector<8x512xbf16>, vector<512x128xbf16>, vector<8x128xf32> -> vector<8x128xf32>
    %90 = vector.shape_cast %89 : vector<8x128xf32> to vector<1x8x128xf32>
    %c0_42 = arith.constant 0 : index
    %c0_43 = arith.constant 0 : index
    %c0_44 = arith.constant 0 : index
    %91 = vector.load %arg8[%c0_42, %c0_43, %c0_44] : memref<1x8x128xf32, #tpu.memory_space<vmem>>, vector<1x8x128xf32>
    tpu.vector_store %arg8[%c0_42, %c0_43, %c0_44], %90 {strides = array<i32>} : memref<1x8x128xf32, #tpu.memory_space<vmem>>, vector<1x8x128xf32>,
    return
  }
  func.func @transform_0(%arg0: i32) -> (i32, i32, i32) {
    %c0_i32 = arith.constant 0 : i32
    %c0_i32_0 = arith.constant 0 : i32
    %c0_i32_1 = arith.constant 0 : i32
    return %arg0, %c0_i32, %c0_i32_0 : i32, i32, i32
  }
  func.func @transform_1(%arg0: i32) -> (i32, i32, i32) {
    %c0_i32 = arith.constant 0 : i32
    %c0_i32_0 = arith.constant 0 : i32
    %c0_i32_1 = arith.constant 0 : i32
    return %arg0, %c0_i32, %c0_i32_0 : i32, i32, i32
  }
  func.func @transform_2(%arg0: i32) -> (i32, i32, i32) {
    %c0_i32 = arith.constant 0 : i32
    %c0_i32_0 = arith.constant 0 : i32
    %c0_i32_1 = arith.constant 0 : i32
    return %arg0, %c0_i32, %c0_i32_0 : i32, i32, i32
  }
  func.func @transform_3(%arg0: i32) -> (i32, i32) {
    %c0_i32 = arith.constant 0 : i32
    %c0_i32_0 = arith.constant 0 : i32
    %c0_i32_1 = arith.constant 0 : i32
    return %c0_i32, %c0_i32_0 : i32, i32
  }
  func.func @transform_4(%arg0: i32) -> (i32, i32) {
    %c0_i32 = arith.constant 0 : i32
    %c0_i32_0 = arith.constant 0 : i32
    %c0_i32_1 = arith.constant 0 : i32
    return %c0_i32, %c0_i32_0 : i32, i32
  }
  func.func @transform_5(%arg0: i32) -> (i32, i32) {
    %c0_i32 = arith.constant 0 : i32
    %c0_i32_0 = arith.constant 0 : i32
    %c0_i32_1 = arith.constant 0 : i32
    return %c0_i32, %c0_i32_0 : i32, i32
  }
  func.func @transform_6(%arg0: i32) -> (i32, i32) {
    %c0_i32 = arith.constant 0 : i32
    %c0_i32_0 = arith.constant 0 : i32
    %c0_i32_1 = arith.constant 0 : i32
    return %c0_i32, %c0_i32_0 : i32, i32
  }
  func.func @transform_7(%arg0: i32) -> (i32, i32, i32) {
    %c0_i32 = arith.constant 0 : i32
    %c0_i32_0 = arith.constant 0 : i32
    %c0_i32_1 = arith.constant 0 : i32
    return %arg0, %c0_i32, %c0_i32_0 : i32, i32, i32
  }
}

module attributes {stable_mosaic.version = 11 : i64} {
  func.func @_cross_attn_kernel(%arg0: i32, %arg1: memref<1x8x128xbf16, #tpu.memory_space<vmem>>, %arg2: memref<1x8x128xbf16, #tpu.memory_space<vmem>>, %arg3: memref<1x8x128xbf16, #tpu.memory_space<vmem>>, %arg4: memref<128x512xbf16, #tpu.memory_space<vmem>>, %arg5: memref<128x512xbf16, #tpu.memory_space<vmem>>, %arg6: memref<128x512xbf16, #tpu.memory_space<vmem>>, %arg7: memref<512x128xbf16, #tpu.memory_space<vmem>>, %arg8: memref<1x8x128xf32, #tpu.memory_space<vmem>>, %arg9: memref<8x512xbf16, #tpu.memory_space<vmem>>) attributes {dimension_semantics = [#tpu.dimension_semantics<parallel>], iteration_bounds = array<i64: 2>, scalar_prefetch = 0 : i64, scratch_operands = 1 : i64, tpu.core_type = #tpu.core_type<tc>, window_params = [{transform_indices = @transform_0, window_bounds = array<i64: 1, 8, 128>}, {transform_indices = @transform_1, window_bounds = array<i64: 1, 8, 128>}, {transform_indices = @transform_2, window_bounds = array<i64: 1, 8, 128>}, {pipeline_mode = #tpu.pipeline_mode<synchronous>, transform_indices = @transform_3, window_bounds = array<i64: 128, 512>}, {pipeline_mode = #tpu.pipeline_mode<synchronous>, transform_indices = @transform_4, window_bounds = array<i64: 128, 512>}, {pipeline_mode = #tpu.pipeline_mode<synchronous>, transform_indices = @transform_5, window_bounds = array<i64: 128, 512>}, {pipeline_mode = #tpu.pipeline_mode<synchronous>, transform_indices = @transform_6, window_bounds = array<i64: 512, 128>}, {transform_indices = @transform_7, window_bounds = array<i64: 1, 8, 128>}]} {
    %c0 = arith.constant 0 : index
    %c0_0 = arith.constant 0 : index
    %c0_1 = arith.constant 0 : index
    %0 = vector.load %arg1[%c0, %c0_0, %c0_1] : memref<1x8x128xbf16, #tpu.memory_space<vmem>>, vector<1x8x128xbf16>
    %1 = vector.shape_cast %0 : vector<1x8x128xbf16> to vector<8x128xbf16>
    %c0_2 = arith.constant 0 : index
    %c0_3 = arith.constant 0 : index
    %c0_4 = arith.constant 0 : index
    %2 = vector.load %arg2[%c0_2, %c0_3, %c0_4] : memref<1x8x128xbf16, #tpu.memory_space<vmem>>, vector<1x8x128xbf16>
    %3 = vector.shape_cast %2 : vector<1x8x128xbf16> to vector<8x128xbf16>
    %c0_5 = arith.constant 0 : index
    %c0_6 = arith.constant 0 : index
    %c0_7 = arith.constant 0 : index
    %4 = vector.load %arg3[%c0_5, %c0_6, %c0_7] : memref<1x8x128xbf16, #tpu.memory_space<vmem>>, vector<1x8x128xbf16>
    %5 = vector.shape_cast %4 : vector<1x8x128xbf16> to vector<8x128xbf16>
    %c0_8 = arith.constant 0 : index
    %c0_9 = arith.constant 0 : index
    %6 = vector.load %arg4[%c0_8, %c0_9] : memref<128x512xbf16, #tpu.memory_space<vmem>>, vector<128x512xbf16>
    %cst = arith.constant dense<0.000000e+00> : vector<8x512xf32>
    %7 = tpu.matmul %1, %6, %cst {dimension_numbers = #tpu.dot_dimension_numbers<[1], [0], [0], [1], [0, 0, 1, 1], [], []>} : vector<8x128xbf16>, vector<128x512xbf16>, vector<8x512xf32> -> vector<8x512xf32>
    %c0_10 = arith.constant 0 : index
    %c0_11 = arith.constant 0 : index
    %8 = vector.load %arg5[%c0_10, %c0_11] : memref<128x512xbf16, #tpu.memory_space<vmem>>, vector<128x512xbf16>
    %cst_12 = arith.constant dense<0.000000e+00> : vector<8x512xf32>
    %9 = tpu.matmul %3, %8, %cst_12 {dimension_numbers = #tpu.dot_dimension_numbers<[1], [0], [0], [1], [0, 0, 1, 1], [], []>} : vector<8x128xbf16>, vector<128x512xbf16>, vector<8x512xf32> -> vector<8x512xf32>
    %c0_13 = arith.constant 0 : index
    %c0_14 = arith.constant 0 : index
    %10 = vector.load %arg6[%c0_13, %c0_14] : memref<128x512xbf16, #tpu.memory_space<vmem>>, vector<128x512xbf16>
    %cst_15 = arith.constant dense<0.000000e+00> : vector<8x512xf32>
    %11 = tpu.matmul %5, %10, %cst_15 {dimension_numbers = #tpu.dot_dimension_numbers<[1], [0], [0], [1], [0, 0, 1, 1], [], []>} : vector<8x128xbf16>, vector<128x512xbf16>, vector<8x512xf32> -> vector<8x512xf32>
    %12 = arith.truncf %7 : vector<8x512xf32> to vector<8x512xbf16>
    %13 = arith.truncf %9 : vector<8x512xf32> to vector<8x512xbf16>
    %14 = arith.truncf %11 : vector<8x512xf32> to vector<8x512xbf16>
    %15 = vector.extract_strided_slice %12 {offsets = [0, 0], sizes = [8, 128], strides = [1, 1]} : vector<8x512xbf16> to vector<8x128xbf16>
    %16 = vector.extract_strided_slice %13 {offsets = [0, 0], sizes = [8, 128], strides = [1, 1]} : vector<8x512xbf16> to vector<8x128xbf16>
    %17 = vector.extract_strided_slice %14 {offsets = [0, 0], sizes = [8, 128], strides = [1, 1]} : vector<8x512xbf16> to vector<8x128xbf16>
    %cst_16 = arith.constant dense<0.000000e+00> : vector<8x8xf32>
    %18 = tpu.matmul %15, %16, %cst_16 {dimension_numbers = #tpu.dot_dimension_numbers<[1], [1], [0], [0], [0, 0, 1, 0], [], []>} : vector<8x128xbf16>, vector<8x128xbf16>, vector<8x8xf32> -> vector<8x8xf32>
    %cst_17 = arith.constant dense<0xFF800000> : vector<8xf32>
    %19 = vector.multi_reduction <maximumf>, %18, %cst_17 [1] : vector<8x8xf32> to vector<8xf32>
    %20 = vector.shape_cast %19 : vector<8xf32> to vector<8x1xf32>
    %21 = vector.broadcast %20 : vector<8x1xf32> to vector<8x8xf32>
    %22 = arith.subf %18, %21 : vector<8x8xf32>
    %23 = math.exp %22 : vector<8x8xf32>
    %cst_18 = arith.constant dense<0.000000e+00> : vector<8xf32>
    %24 = vector.multi_reduction <add>, %23, %cst_18 [1] : vector<8x8xf32> to vector<8xf32>
    %25 = vector.shape_cast %24 : vector<8xf32> to vector<8x1xf32>
    %26 = arith.truncf %23 : vector<8x8xf32> to vector<8x8xbf16>
    %cst_19 = arith.constant dense<0.000000e+00> : vector<8x128xf32>
    %27 = tpu.matmul %26, %17, %cst_19 {dimension_numbers = #tpu.dot_dimension_numbers<[1], [0], [0], [1], [0, 0, 1, 1], [], []>} : vector<8x8xbf16>, vector<8x128xbf16>, vector<8x128xf32> -> vector<8x128xf32>
    %28 = tpu.reciprocal %25 {approx = true} : vector<8x1xf32> -> vector<8x1xf32>
    %29 = vector.broadcast %28 : vector<8x1xf32> to vector<8x128xf32>
    %30 = arith.mulf %27, %29 : vector<8x128xf32>
    %31 = arith.truncf %30 : vector<8x128xf32> to vector<8x128xbf16>
    %c0_20 = arith.constant 0 : index
    %c0_21 = arith.constant 0 : index
    %32 = vector.load %arg9[%c0_20, %c0_21] : memref<8x512xbf16, #tpu.memory_space<vmem>>, vector<8x128xbf16>
    tpu.vector_store %arg9[%c0_20, %c0_21], %31 {strides = array<i32>} : memref<8x512xbf16, #tpu.memory_space<vmem>>, vector<8x128xbf16>,
    %33 = vector.extract_strided_slice %12 {offsets = [0, 128], sizes = [8, 128], strides = [1, 1]} : vector<8x512xbf16> to vector<8x128xbf16>
    %34 = vector.extract_strided_slice %13 {offsets = [0, 128], sizes = [8, 128], strides = [1, 1]} : vector<8x512xbf16> to vector<8x128xbf16>
    %35 = vector.extract_strided_slice %14 {offsets = [0, 128], sizes = [8, 128], strides = [1, 1]} : vector<8x512xbf16> to vector<8x128xbf16>
    %cst_22 = arith.constant dense<0.000000e+00> : vector<8x8xf32>
    %36 = tpu.matmul %33, %34, %cst_22 {dimension_numbers = #tpu.dot_dimension_numbers<[1], [1], [0], [0], [0, 0, 1, 0], [], []>} : vector<8x128xbf16>, vector<8x128xbf16>, vector<8x8xf32> -> vector<8x8xf32>
    %cst_23 = arith.constant dense<0xFF800000> : vector<8xf32>
    %37 = vector.multi_reduction <maximumf>, %36, %cst_23 [1] : vector<8x8xf32> to vector<8xf32>
    %38 = vector.shape_cast %37 : vector<8xf32> to vector<8x1xf32>
    %39 = vector.broadcast %38 : vector<8x1xf32> to vector<8x8xf32>
    %40 = arith.subf %36, %39 : vector<8x8xf32>
    %41 = math.exp %40 : vector<8x8xf32>
    %cst_24 = arith.constant dense<0.000000e+00> : vector<8xf32>
    %42 = vector.multi_reduction <add>, %41, %cst_24 [1] : vector<8x8xf32> to vector<8xf32>
    %43 = vector.shape_cast %42 : vector<8xf32> to vector<8x1xf32>
    %44 = arith.truncf %41 : vector<8x8xf32> to vector<8x8xbf16>
    %cst_25 = arith.constant dense<0.000000e+00> : vector<8x128xf32>
    %45 = tpu.matmul %44, %35, %cst_25 {dimension_numbers = #tpu.dot_dimension_numbers<[1], [0], [0], [1], [0, 0, 1, 1], [], []>} : vector<8x8xbf16>, vector<8x128xbf16>, vector<8x128xf32> -> vector<8x128xf32>
    %46 = tpu.reciprocal %43 {approx = true} : vector<8x1xf32> -> vector<8x1xf32>
    %47 = vector.broadcast %46 : vector<8x1xf32> to vector<8x128xf32>
    %48 = arith.mulf %45, %47 : vector<8x128xf32>
    %49 = arith.truncf %48 : vector<8x128xf32> to vector<8x128xbf16>
    %c0_26 = arith.constant 0 : index
    %c128 = arith.constant 128 : index
    %50 = vector.load %arg9[%c0_26, %c128] : memref<8x512xbf16, #tpu.memory_space<vmem>>, vector<8x128xbf16>
    tpu.vector_store %arg9[%c0_26, %c128], %49 {strides = array<i32>} : memref<8x512xbf16, #tpu.memory_space<vmem>>, vector<8x128xbf16>,
    %51 = vector.extract_strided_slice %12 {offsets = [0, 256], sizes = [8, 128], strides = [1, 1]} : vector<8x512xbf16> to vector<8x128xbf16>
    %52 = vector.extract_strided_slice %13 {offsets = [0, 256], sizes = [8, 128], strides = [1, 1]} : vector<8x512xbf16> to vector<8x128xbf16>
    %53 = vector.extract_strided_slice %14 {offsets = [0, 256], sizes = [8, 128], strides = [1, 1]} : vector<8x512xbf16> to vector<8x128xbf16>
    %cst_27 = arith.constant dense<0.000000e+00> : vector<8x8xf32>
    %54 = tpu.matmul %51, %52, %cst_27 {dimension_numbers = #tpu.dot_dimension_numbers<[1], [1], [0], [0], [0, 0, 1, 0], [], []>} : vector<8x128xbf16>, vector<8x128xbf16>, vector<8x8xf32> -> vector<8x8xf32>
    %cst_28 = arith.constant dense<0xFF800000> : vector<8xf32>
    %55 = vector.multi_reduction <maximumf>, %54, %cst_28 [1] : vector<8x8xf32> to vector<8xf32>
    %56 = vector.shape_cast %55 : vector<8xf32> to vector<8x1xf32>
    %57 = vector.broadcast %56 : vector<8x1xf32> to vector<8x8xf32>
    %58 = arith.subf %54, %57 : vector<8x8xf32>
    %59 = math.exp %58 : vector<8x8xf32>
    %cst_29 = arith.constant dense<0.000000e+00> : vector<8xf32>
    %60 = vector.multi_reduction <add>, %59, %cst_29 [1] : vector<8x8xf32> to vector<8xf32>
    %61 = vector.shape_cast %60 : vector<8xf32> to vector<8x1xf32>
    %62 = arith.truncf %59 : vector<8x8xf32> to vector<8x8xbf16>
    %cst_30 = arith.constant dense<0.000000e+00> : vector<8x128xf32>
    %63 = tpu.matmul %62, %53, %cst_30 {dimension_numbers = #tpu.dot_dimension_numbers<[1], [0], [0], [1], [0, 0, 1, 1], [], []>} : vector<8x8xbf16>, vector<8x128xbf16>, vector<8x128xf32> -> vector<8x128xf32>
    %64 = tpu.reciprocal %61 {approx = true} : vector<8x1xf32> -> vector<8x1xf32>
    %65 = vector.broadcast %64 : vector<8x1xf32> to vector<8x128xf32>
    %66 = arith.mulf %63, %65 : vector<8x128xf32>
    %67 = arith.truncf %66 : vector<8x128xf32> to vector<8x128xbf16>
    %c0_31 = arith.constant 0 : index
    %c256 = arith.constant 256 : index
    %68 = vector.load %arg9[%c0_31, %c256] : memref<8x512xbf16, #tpu.memory_space<vmem>>, vector<8x128xbf16>
    tpu.vector_store %arg9[%c0_31, %c256], %67 {strides = array<i32>} : memref<8x512xbf16, #tpu.memory_space<vmem>>, vector<8x128xbf16>,
    %69 = vector.extract_strided_slice %12 {offsets = [0, 384], sizes = [8, 128], strides = [1, 1]} : vector<8x512xbf16> to vector<8x128xbf16>
    %70 = vector.extract_strided_slice %13 {offsets = [0, 384], sizes = [8, 128], strides = [1, 1]} : vector<8x512xbf16> to vector<8x128xbf16>
    %71 = vector.extract_strided_slice %14 {offsets = [0, 384], sizes = [8, 128], strides = [1, 1]} : vector<8x512xbf16> to vector<8x128xbf16>
    %cst_32 = arith.constant dense<0.000000e+00> : vector<8x8xf32>
    %72 = tpu.matmul %69, %70, %cst_32 {dimension_numbers = #tpu.dot_dimension_numbers<[1], [1], [0], [0], [0, 0, 1, 0], [], []>} : vector<8x128xbf16>, vector<8x128xbf16>, vector<8x8xf32> -> vector<8x8xf32>
    %cst_33 = arith.constant dense<0xFF800000> : vector<8xf32>
    %73 = vector.multi_reduction <maximumf>, %72, %cst_33 [1] : vector<8x8xf32> to vector<8xf32>
    %74 = vector.shape_cast %73 : vector<8xf32> to vector<8x1xf32>
    %75 = vector.broadcast %74 : vector<8x1xf32> to vector<8x8xf32>
    %76 = arith.subf %72, %75 : vector<8x8xf32>
    %77 = math.exp %76 : vector<8x8xf32>
    %cst_34 = arith.constant dense<0.000000e+00> : vector<8xf32>
    %78 = vector.multi_reduction <add>, %77, %cst_34 [1] : vector<8x8xf32> to vector<8xf32>
    %79 = vector.shape_cast %78 : vector<8xf32> to vector<8x1xf32>
    %80 = arith.truncf %77 : vector<8x8xf32> to vector<8x8xbf16>
    %cst_35 = arith.constant dense<0.000000e+00> : vector<8x128xf32>
    %81 = tpu.matmul %80, %71, %cst_35 {dimension_numbers = #tpu.dot_dimension_numbers<[1], [0], [0], [1], [0, 0, 1, 1], [], []>} : vector<8x8xbf16>, vector<8x128xbf16>, vector<8x128xf32> -> vector<8x128xf32>
    %82 = tpu.reciprocal %79 {approx = true} : vector<8x1xf32> -> vector<8x1xf32>
    %83 = vector.broadcast %82 : vector<8x1xf32> to vector<8x128xf32>
    %84 = arith.mulf %81, %83 : vector<8x128xf32>
    %85 = arith.truncf %84 : vector<8x128xf32> to vector<8x128xbf16>
    %c0_36 = arith.constant 0 : index
    %c384 = arith.constant 384 : index
    %86 = vector.load %arg9[%c0_36, %c384] : memref<8x512xbf16, #tpu.memory_space<vmem>>, vector<8x128xbf16>
    tpu.vector_store %arg9[%c0_36, %c384], %85 {strides = array<i32>} : memref<8x512xbf16, #tpu.memory_space<vmem>>, vector<8x128xbf16>,
    %c0_37 = arith.constant 0 : index
    %c0_38 = arith.constant 0 : index
    %87 = vector.load %arg9[%c0_37, %c0_38] : memref<8x512xbf16, #tpu.memory_space<vmem>>, vector<8x512xbf16>
    %c0_39 = arith.constant 0 : index
    %c0_40 = arith.constant 0 : index
    %88 = vector.load %arg7[%c0_39, %c0_40] : memref<512x128xbf16, #tpu.memory_space<vmem>>, vector<512x128xbf16>
    %cst_41 = arith.constant dense<0.000000e+00> : vector<8x128xf32>
    %89 = tpu.matmul %87, %88, %cst_41 {dimension_numbers = #tpu.dot_dimension_numbers<[1], [0], [0], [1], [0, 0, 1, 1], [], []>} : vector<8x512xbf16>, vector<512x128xbf16>, vector<8x128xf32> -> vector<8x128xf32>
    %90 = vector.shape_cast %89 : vector<8x128xf32> to vector<1x8x128xf32>
    %c0_42 = arith.constant 0 : index
    %c0_43 = arith.constant 0 : index
    %c0_44 = arith.constant 0 : index
    %91 = vector.load %arg8[%c0_42, %c0_43, %c0_44] : memref<1x8x128xf32, #tpu.memory_space<vmem>>, vector<1x8x128xf32>
    tpu.vector_store %arg8[%c0_42, %c0_43, %c0_44], %90 {strides = array<i32>} : memref<1x8x128xf32, #tpu.memory_space<vmem>>, vector<1x8x128xf32>,
    return
  }
  func.func @transform_0(%arg0: i32) -> (i32, i32, i32) {
    %c0_i32 = arith.constant 0 : i32
    %c0_i32_0 = arith.constant 0 : i32
    %c0_i32_1 = arith.constant 0 : i32
    return %arg0, %c0_i32, %c0_i32_0 : i32, i32, i32
  }
  func.func @transform_1(%arg0: i32) -> (i32, i32, i32) {
    %c0_i32 = arith.constant 0 : i32
    %c0_i32_0 = arith.constant 0 : i32
    %c0_i32_1 = arith.constant 0 : i32
    return %arg0, %c0_i32, %c0_i32_0 : i32, i32, i32
  }
  func.func @transform_2(%arg0: i32) -> (i32, i32, i32) {
    %c0_i32 = arith.constant 0 : i32
    %c0_i32_0 = arith.constant 0 : i32
    %c0_i32_1 = arith.constant 0 : i32
    return %arg0, %c0_i32, %c0_i32_0 : i32, i32, i32
  }
  func.func @transform_3(%arg0: i32) -> (i32, i32) {
    %c0_i32 = arith.constant 0 : i32
    %c0_i32_0 = arith.constant 0 : i32
    %c0_i32_1 = arith.constant 0 : i32
    return %c0_i32, %c0_i32_0 : i32, i32
  }
  func.func @transform_4(%arg0: i32) -> (i32, i32) {
    %c0_i32 = arith.constant 0 : i32
    %c0_i32_0 = arith.constant 0 : i32
    %c0_i32_1 = arith.constant 0 : i32
    return %c0_i32, %c0_i32_0 : i32, i32
  }
  func.func @transform_5(%arg0: i32) -> (i32, i32) {
    %c0_i32 = arith.constant 0 : i32
    %c0_i32_0 = arith.constant 0 : i32
    %c0_i32_1 = arith.constant 0 : i32
    return %c0_i32, %c0_i32_0 : i32, i32
  }
  func.func @transform_6(%arg0: i32) -> (i32, i32) {
    %c0_i32 = arith.constant 0 : i32
    %c0_i32_0 = arith.constant 0 : i32
    %c0_i32_1 = arith.constant 0 : i32
    return %c0_i32, %c0_i32_0 : i32, i32
  }
  func.func @transform_7(%arg0: i32) -> (i32, i32, i32) {
    %c0_i32 = arith.constant 0 : i32
    %c0_i32_0 = arith.constant 0 : i32
    %c0_i32_1 = arith.constant 0 : i32
    return %arg0, %c0_i32, %c0_i32_0 : i32, i32, i32
  }
}

</mosaic_0001>

<llo_original>
// kernel: tpu_custom_call.1
$region0: #{tpu_custom_call.1}
  #allocation0 [shape = 'u32[]', space=smem, size = 0x4, offset = 0x4, fixed_abs, tag = 'smem constant byte address 0x4 - core index']
  #allocation1 [shape = 'u32[72,128]{1,0:T(1,128)}', space=vmem, size = 0x9000, scoped, tag = 'internal scratch']
  #allocation2 [shape = 'bf16[8,512]{1,0:T(8,128)(2,1)}', space=vmem, size = 0x2000, scoped, tag = 'scratch operand']
  %s0 = inlined_call_operand.hbm [shape: bf16[2,8,128], index: 0, kind: input, shape index: {}]
  %s1 = inlined_call_operand.hbm [shape: bf16[2,8,128], index: 1, kind: input, shape index: {}]
  %s2 = inlined_call_operand.hbm [shape: bf16[2,8,128], index: 2, kind: input, shape index: {}]
  %s3 = inlined_call_operand.hbm [shape: bf16[128,512], index: 3, kind: input, shape index: {}]
  %s4 = inlined_call_operand.hbm [shape: bf16[128,512], index: 4, kind: input, shape index: {}]
  %s5 = inlined_call_operand.hbm [shape: bf16[128,512], index: 5, kind: input, shape index: {}]
  %s6 = inlined_call_operand.hbm [shape: bf16[512,128], index: 6, kind: input, shape index: {}]
  %s7 = inlined_call_operand.hbm [shape: f32[2,8,128], index: 7, kind: output, shape index: {}]
  %s8 = sld [smem:[#allocation0]]
  $region89: #{tpu_custom_call.1} parent=0
    _
  %s10 = ssub.s32 1, %s8
  %s11 = scalar_select 0, %s10, %s8
  $region1: #{tpu_custom_call.1} parent=0
    #allocation3 [shape = 'u8[4096]{0}', space=vmem, size = 0x1000, scoped, tag = 'input window, operand 0']
    #allocation4 [shape = 's32[2]{0}', space=sflag, size = 0x8, scoped, tag = 'scoped memory for tpu_custom_call.1']
    #allocation5 [shape = 's32[2]{0}', space=sflag, size = 0x8, scoped, tag = 'scoped memory for tpu_custom_call.1']
    #allocation6 [shape = 'u8[4096]{0}', space=vmem, size = 0x1000, scoped, tag = 'input window, operand 1']
    #allocation7 [shape = 's32[2]{0}', space=sflag, size = 0x8, scoped, tag = 'scoped memory for tpu_custom_call.1']
    #allocation8 [shape = 'u8[4096]{0}', space=vmem, size = 0x1000, scoped, tag = 'input window, operand 2']
    #allocation9 [shape = 'u8[131072]{0}', space=vmem, size = 0x20000, scoped, tag = 'input window, operand 3, single buffered']
    #allocation10 [shape = 's32[1]{0}', space=sflag, size = 0x4, scoped, tag = 'scoped memory for tpu_custom_call.1']
    #allocation11 [shape = 'u8[131072]{0}', space=vmem, size = 0x20000, scoped, tag = 'input window, operand 4, single buffered']
    #allocation12 [shape = 'u8[131072]{0}', space=vmem, size = 0x20000, scoped, tag = 'input window, operand 5, single buffered']
    #allocation13 [shape = 's32[1]{0}', space=sflag, size = 0x4, scoped, tag = 'scoped memory for tpu_custom_call.1']
    #allocation14 [shape = 'u8[131072]{0}', space=vmem, size = 0x20000, scoped, tag = 'input window, operand 6, single buffered']
    #allocation15 [shape = 'u8[8192]{0}', space=vmem, size = 0x2000, scoped, tag = 'output window, operand 0']
    %12 = vsyncpa [#allocation4], 0
    %s13 = scalar_lea.sflag [#allocation4], 1
    %14 = vsyncpa %s13, 0
    %15 = vsyncpa [#allocation7], 0
    %s16 = scalar_lea.sflag [#allocation7], 1
    %17 = vsyncpa %s16, 0
    %18 = vsyncpa [#allocation10], 0
    %19 = vsyncpa [#allocation13], 0
    %20 = vsyncpa [#allocation5], 0
    %s21 = scalar_lea.sflag [#allocation5], 1
    %22 = vsyncpa %s21, 0
    loop: start=0, step=1, limit=4
    $region2: #{tpu_custom_call.1} parent=1 // loop_pre_header
      _
    $region3: #{tpu_custom_call.1} parent=1 // loop_header
      %s24 = sphi 0, %s28
      %p25 = scmp.ge.s32.totalorder %s24, 4
      %s34 = sphi 0, %s36
      %s37 = sphi 0, %s34
      %s38 = sphi 0, %s37
      %s54 = sphi 0, %s38
      %s60 = sphi 0, %s62
      %s63 = sphi 0, %s60
      %s64 = sphi 0, %s63
      %s80 = sphi 0, %s64
      %s86 = sphi 0, %s88
      %s89 = sphi 0, %s86
      %s90 = sphi 0, %s89
      %s106 = sphi 0, %s90
      %s110 = sphi 0, %s110
      %s112 = sphi 0, %s110
      %s113 = sphi 0, %s112
      %s127 = sphi 0, %s113
      %s131 = sphi 0, %s131
      %s133 = sphi 0, %s131
      %s134 = sphi 0, %s133
      %s148 = sphi 0, %s134
      %s152 = sphi 0, %s152
      %s154 = sphi 0, %s152
      %s155 = sphi 0, %s154
      %s169 = sphi 0, %s155
      %s173 = sphi 0, %s173
      %s175 = sphi 0, %s173
      %s176 = sphi 0, %s175
      %s190 = sphi 0, %s176
      %s196 = sphi 0, %s198
      %s199 = sphi 0, %s196
      %s200 = sphi 0, %s199
      %s216 = sphi 0, %s200
    $region4: #{tpu_custom_call.1} parent=1 // loop_header_branch
      %27 = sbr.rel (%p25) target = $region8
    $region5: #{tpu_custom_call.1} parent=1 // loop_body
      %s29 = ssub.s32 %s24, 1
      %s30 = ssub.s32 %s24, 2
      %s31 = sadd.s32 %s24, 1
      %s32 = ssub.s32 %s24, %s31
      %p33 = scmp.eq.s32.totalorder %s32, 0
      %s35 = sadd.s32 %s34, 1
      %s36 = scalar_select %p33, %s34, %s35
      %p39 = pneg %p33
      %p40 = scmp.eq.s32.totalorder %s24, 1
      %p41 = por %p39, %p40
      %p42 = scmp.ne.s32.totalorder %s34, %s37
      %p43 = scmp.eq.s32.totalorder %s24, 0
      %p44 = por %p42, %p43
      %p45 = scmp.ne.s32.totalorder %s34, %s37
      %p46 = scmp.eq.s32.totalorder %s29, 1
      %p47 = por %p45, %p46
      %p48 = scmp.ne.s32.totalorder %s37, %s38
      %p49 = scmp.eq.s32.totalorder %s29, 0
      %p50 = por %p48, %p49
      %p51 = scmp.ne.s32.totalorder %s37, %s38
      %p52 = scmp.eq.s32.totalorder %s30, 1
      %p53 = por %p51, %p52
      %p55 = scmp.ne.s32.totalorder %s38, %s54
      %p56 = scmp.eq.s32.totalorder %s30, 0
      %p57 = por %p55, %p56
      %s58 = ssub.s32 %s24, %s31
      %p59 = scmp.eq.s32.totalorder %s58, 0
      %s61 = sadd.s32 %s60, 1
      %s62 = scalar_select %p59, %s60, %s61
      %p65 = pneg %p59
      %p66 = scmp.eq.s32.totalorder %s24, 1
      %p67 = por %p65, %p66
      %p68 = scmp.ne.s32.totalorder %s60, %s63
      %p69 = scmp.eq.s32.totalorder %s24, 0
      %p70 = por %p68, %p69
      %p71 = scmp.ne.s32.totalorder %s60, %s63
      %p72 = scmp.eq.s32.totalorder %s29, 1
      %p73 = por %p71, %p72
      %p74 = scmp.ne.s32.totalorder %s63, %s64
      %p75 = scmp.eq.s32.totalorder %s29, 0
      %p76 = por %p74, %p75
      %p77 = scmp.ne.s32.totalorder %s63, %s64
      %p78 = scmp.eq.s32.totalorder %s30, 1
      %p79 = por %p77, %p78
      %p81 = scmp.ne.s32.totalorder %s64, %s80
      %p82 = scmp.eq.s32.totalorder %s30, 0
      %p83 = por %p81, %p82
      %s84 = ssub.s32 %s24, %s31
      %p85 = scmp.eq.s32.totalorder %s84, 0
      %s87 = sadd.s32 %s86, 1
      %s88 = scalar_select %p85, %s86, %s87
      %p91 = pneg %p85
      %p92 = scmp.eq.s32.totalorder %s24, 1
      %p93 = por %p91, %p92
      %p94 = scmp.ne.s32.totalorder %s86, %s89
      %p95 = scmp.eq.s32.totalorder %s24, 0
      %p96 = por %p94, %p95
      %p97 = scmp.ne.s32.totalorder %s86, %s89
      %p98 = scmp.eq.s32.totalorder %s29, 1
      %p99 = por %p97, %p98
      %p100 = scmp.ne.s32.totalorder %s89, %s90
      %p101 = scmp.eq.s32.totalorder %s29, 0
      %p102 = por %p100, %p101
      %p103 = scmp.ne.s32.totalorder %s89, %s90
      %p104 = scmp.eq.s32.totalorder %s30, 1
      %p105 = por %p103, %p104
      %p107 = scmp.ne.s32.totalorder %s90, %s106
      %p108 = scmp.eq.s32.totalorder %s30, 0
      %p109 = por %p107, %p108
      %s111 = sadd.s32 %s110, 1
      %p114 = scmp.eq.s32.totalorder %s24, 1
      %p115 = scmp.ne.s32.totalorder %s110, %s112
      %p116 = scmp.eq.s32.totalorder %s24, 0
      %p117 = por %p115, %p116
      %p118 = scmp.ne.s32.totalorder %s110, %s112
      %p119 = scmp.eq.s32.totalorder %s29, 1
      %p120 = por %p118, %p119
      %p121 = scmp.ne.s32.totalorder %s112, %s113
      %p122 = scmp.eq.s32.totalorder %s29, 0
      %p123 = por %p121, %p122
      %p124 = scmp.ne.s32.totalorder %s112, %s113
      %p125 = scmp.eq.s32.totalorder %s30, 1
      %p126 = por %p124, %p125
      %p128 = scmp.ne.s32.totalorder %s113, %s127
      %p129 = scmp.eq.s32.totalorder %s30, 0
      %p130 = por %p128, %p129
      %s132 = sadd.s32 %s131, 1
      %p135 = scmp.eq.s32.totalorder %s24, 1
      %p136 = scmp.ne.s32.totalorder %s131, %s133
      %p137 = scmp.eq.s32.totalorder %s24, 0
      %p138 = por %p136, %p137
      %p139 = scmp.ne.s32.totalorder %s131, %s133
      %p140 = scmp.eq.s32.totalorder %s29, 1
      %p141 = por %p139, %p140
      %p142 = scmp.ne.s32.totalorder %s133, %s134
      %p143 = scmp.eq.s32.totalorder %s29, 0
      %p144 = por %p142, %p143
      %p145 = scmp.ne.s32.totalorder %s133, %s134
      %p146 = scmp.eq.s32.totalorder %s30, 1
      %p147 = por %p145, %p146
      %p149 = scmp.ne.s32.totalorder %s134, %s148
      %p150 = scmp.eq.s32.totalorder %s30, 0
      %p151 = por %p149, %p150
      %s153 = sadd.s32 %s152, 1
      %p156 = scmp.eq.s32.totalorder %s24, 1
      %p157 = scmp.ne.s32.totalorder %s152, %s154
      %p158 = scmp.eq.s32.totalorder %s24, 0
      %p159 = por %p157, %p158
      %p160 = scmp.ne.s32.totalorder %s152, %s154
      %p161 = scmp.eq.s32.totalorder %s29, 1
      %p162 = por %p160, %p161
      %p163 = scmp.ne.s32.totalorder %s154, %s155
      %p164 = scmp.eq.s32.totalorder %s29, 0
      %p165 = por %p163, %p164
      %p166 = scmp.ne.s32.totalorder %s154, %s155
      %p167 = scmp.eq.s32.totalorder %s30, 1
      %p168 = por %p166, %p167
      %p170 = scmp.ne.s32.totalorder %s155, %s169
      %p171 = scmp.eq.s32.totalorder %s30, 0
      %p172 = por %p170, %p171
      %s174 = sadd.s32 %s173, 1
      %p177 = scmp.eq.s32.totalorder %s24, 1
      %p178 = scmp.ne.s32.totalorder %s173, %s175
      %p179 = scmp.eq.s32.totalorder %s24, 0
      %p180 = por %p178, %p179
      %p181 = scmp.ne.s32.totalorder %s173, %s175
      %p182 = scmp.eq.s32.totalorder %s29, 1
      %p183 = por %p181, %p182
      %p184 = scmp.ne.s32.totalorder %s175, %s176
      %p185 = scmp.eq.s32.totalorder %s29, 0
      %p186 = por %p184, %p185
      %p187 = scmp.ne.s32.totalorder %s175, %s176
      %p188 = scmp.eq.s32.totalorder %s30, 1
      %p189 = por %p187, %p188
      %p191 = scmp.ne.s32.totalorder %s176, %s190
      %p192 = scmp.eq.s32.totalorder %s30, 0
      %p193 = por %p191, %p192
      %s194 = ssub.s32 %s24, %s31
      %p195 = scmp.eq.s32.totalorder %s194, 0
      %s197 = sadd.s32 %s196, 1
      %s198 = scalar_select %p195, %s196, %s197
      %p201 = pneg %p195
      %p202 = scmp.eq.s32.totalorder %s24, 1
      %p203 = por %p201, %p202
      %p204 = scmp.ne.s32.totalorder %s196, %s199
      %p205 = scmp.eq.s32.totalorder %s24, 0
      %p206 = por %p204, %p205
      %p207 = scmp.ne.s32.totalorder %s196, %s199
      %p208 = scmp.eq.s32.totalorder %s29, 1
      %p209 = por %p207, %p208
      %p210 = scmp.ne.s32.totalorder %s199, %s200
      %p211 = scmp.eq.s32.totalorder %s29, 0
      %p212 = por %p210, %p211
      %p213 = scmp.ne.s32.totalorder %s199, %s200
      %p214 = scmp.eq.s32.totalorder %s30, 1
      %p215 = por %p213, %p214
      %p217 = scmp.ne.s32.totalorder %s200, %s216
      %p218 = scmp.eq.s32.totalorder %s30, 0
      %p219 = por %p217, %p218
      %p220 = scmp.le.s32.totalorder 1, %s24
      %p221 = scmp.lt.s32.totalorder %s24, 3
      %p222 = pnand %p220, %p221
      %p223 = pneg %p222
      // Predicated region
      $region9: #{tpu_custom_call.1} parent=5 // pred_check
        _
      $region10: #{tpu_custom_call.1} parent=5 // pred_check_branch
        %225 = sbr.rel (%p222) target = $region12
      $region11: #{tpu_custom_call.1} parent=5 // pred_region
        %s226 = ssub.s32 %s24, 1
        // Predicated region
        $region13: #{tpu_custom_call.1} parent=11 // pred_check
          %p227 = pneg %p123
        $region14: #{tpu_custom_call.1} parent=11 // pred_check_branch
          %229 = sbr.rel (%p227) target = $region16
        $region15: #{tpu_custom_call.1} parent=11 // pred_region
          %231 = vsyncadd [#allocation10], 0
          %s232 = sshll.u32 %s3, 4
          %s233 = int_to_ptr.hbm [resolvable:$true] %s232
          %s234 = sshll.u32 [#allocation9], 4
          %s235 = int_to_ptr.vmem [resolvable:$true] %s234
          %240 = dma.hbm_to_vmem [thread:$0]  %s233, 4096, %s235, [#allocation10], 256, 256, 16
        $region16: #{tpu_custom_call.1} parent=11 // pred_fallthru
          _
        // Predicated region
        $region17: #{tpu_custom_call.1} parent=11 // pred_check
          %p241 = pneg %p144
        $region18: #{tpu_custom_call.1} parent=11 // pred_check_branch
          %243 = sbr.rel (%p241) target = $region20
        $region19: #{tpu_custom_call.1} parent=11 // pred_region
          %245 = vsyncadd [#allocation10], 0
          %s246 = sshll.u32 %s4, 4
          %s247 = int_to_ptr.hbm [resolvable:$true] %s246
          %s248 = sshll.u32 [#allocation11], 4
          %s249 = int_to_ptr.vmem [resolvable:$true] %s248
          %254 = dma.hbm_to_vmem [thread:$0]  %s247, 4096, %s249, [#allocation10], 256, 256, 16
        $region20: #{tpu_custom_call.1} parent=11 // pred_fallthru
          _
        // Predicated region
        $region21: #{tpu_custom_call.1} parent=11 // pred_check
          %p255 = pneg %p165
        $region22: #{tpu_custom_call.1} parent=11 // pred_check_branch
          %257 = sbr.rel (%p255) target = $region24
        $region23: #{tpu_custom_call.1} parent=11 // pred_region
          %259 = vsyncadd [#allocation13], 0
          %s260 = sshll.u32 %s5, 4
          %s261 = int_to_ptr.hbm [resolvable:$true] %s260
          %s262 = sshll.u32 [#allocation12], 4
          %s263 = int_to_ptr.vmem [resolvable:$true] %s262
          %268 = dma.hbm_to_vmem [thread:$0]  %s261, 4096, %s263, [#allocation13], 256, 256, 16
        $region24: #{tpu_custom_call.1} parent=11 // pred_fallthru
          _
        // Predicated region
        $region25: #{tpu_custom_call.1} parent=11 // pred_check
          %p269 = pneg %p186
        $region26: #{tpu_custom_call.1} parent=11 // pred_check_branch
          %271 = sbr.rel (%p269) target = $region28
        $region27: #{tpu_custom_call.1} parent=11 // pred_region
          %273 = vsyncadd [#allocation13], 0
          %s274 = sshll.u32 %s6, 4
          %s275 = int_to_ptr.hbm [resolvable:$true] %s274
          %s276 = sshll.u32 [#allocation14], 4
          %s277 = int_to_ptr.vmem [resolvable:$true] %s276
          %282 = dma.hbm_to_vmem [thread:$0]  %s275, 4096, %s277, [#allocation13], 64, 64, 4
        $region28: #{tpu_custom_call.1} parent=11 // pred_fallthru
          _
      $region12: #{tpu_custom_call.1} parent=5 // pred_fallthru
        _
      %p283 = scmp.lt.s32.totalorder %s24, 2
      // Predicated region
      $region29: #{tpu_custom_call.1} parent=5 // pred_check
        %p284 = pneg %p283
      $region30: #{tpu_custom_call.1} parent=5 // pred_check_branch
        %286 = sbr.rel (%p284) target = $region32
      $region31: #{tpu_custom_call.1} parent=5 // pred_region
        // Predicated region
        $region33: #{tpu_custom_call.1} parent=31 // pred_check
          %p287 = pneg %p44
        $region34: #{tpu_custom_call.1} parent=31 // pred_check_branch
          %289 = sbr.rel (%p287) target = $region36
        $region35: #{tpu_custom_call.1} parent=31 // pred_region
          %s290 = sand.u32 %s34, 1
          %s291 = scalar_lea.sflag [#allocation4], %s290
          %s292 = sand.u32 %s34, 1
          %s293 = smul.addr %s292, 4
          %s294 = scalar_lea.vmem [#allocation3], %s293
          %296 = vsyncadd %s291, 0
          %s297 = smul.addr %s24, 4
          %s298 = scalar_lea.hbm %s0, %s297
          %s300 = sshll.u32 %s298, 4
          %s301 = int_to_ptr.hbm [resolvable:$true] %s300
          %s302 = sshll.u32 %s294, 4
          %s303 = int_to_ptr.vmem [resolvable:$true] %s302
          %305 = dma.hbm_to_vmem [thread:$0]  %s301, 64, %s303, %s291
        $region36: #{tpu_custom_call.1} parent=31 // pred_fallthru
          _
        // Predicated region
        $region37: #{tpu_custom_call.1} parent=31 // pred_check
          %p306 = pneg %p70
        $region38: #{tpu_custom_call.1} parent=31 // pred_check_branch
          %308 = sbr.rel (%p306) target = $region40
        $region39: #{tpu_custom_call.1} parent=31 // pred_region
          %s309 = sand.u32 %s24, 1
          %s310 = scalar_lea.sflag [#allocation7], %s309
          %s311 = sand.u32 %s60, 1
          %s312 = smul.addr %s311, 4
          %s313 = scalar_lea.vmem [#allocation6], %s312
          %315 = vsyncadd %s310, 0
          %s316 = smul.addr %s24, 4
          %s317 = scalar_lea.hbm %s1, %s316
          %s319 = sshll.u32 %s317, 4
          %s320 = int_to_ptr.hbm [resolvable:$true] %s319
          %s321 = sshll.u32 %s313, 4
          %s322 = int_to_ptr.vmem [resolvable:$true] %s321
          %324 = dma.hbm_to_vmem [thread:$0]  %s320, 64, %s322, %s310
        $region40: #{tpu_custom_call.1} parent=31 // pred_fallthru
          _
        // Predicated region
        $region41: #{tpu_custom_call.1} parent=31 // pred_check
          %p325 = pneg %p96
        $region42: #{tpu_custom_call.1} parent=31 // pred_check_branch
          %327 = sbr.rel (%p325) target = $region44
        $region43: #{tpu_custom_call.1} parent=31 // pred_region
          %s328 = sand.u32 %s24, 1
          %s329 = scalar_lea.sflag [#allocation7], %s328
          %s330 = sand.u32 %s86, 1
          %s331 = smul.addr %s330, 4
          %s332 = scalar_lea.vmem [#allocation8], %s331
          %334 = vsyncadd %s329, 0
          %s335 = smul.addr %s24, 4
          %s336 = scalar_lea.hbm %s2, %s335
          %s338 = sshll.u32 %s336, 4
          %s339 = int_to_ptr.hbm [resolvable:$true] %s338
          %s340 = sshll.u32 %s332, 4
          %s341 = int_to_ptr.vmem [resolvable:$true] %s340
          %343 = dma.hbm_to_vmem [thread:$0]  %s339, 64, %s341, %s329
        $region44: #{tpu_custom_call.1} parent=31 // pred_fallthru
          _
      $region32: #{tpu_custom_call.1} parent=5 // pred_fallthru
        _
      %p344 = scmp.le.s32.totalorder 1, %s24
      %p345 = scmp.lt.s32.totalorder %s24, 3
      %p346 = pnand %p344, %p345
      %p347 = pneg %p346
      // Predicated region
      $region45: #{tpu_custom_call.1} parent=5 // pred_check
        _
      $region46: #{tpu_custom_call.1} parent=5 // pred_check_branch
        %349 = sbr.rel (%p346) target = $region48
      $region47: #{tpu_custom_call.1} parent=5 // pred_region
        %s350 = ssub.s32 %s24, 1
        %s351 = sand.u32 %s37, 1
        %s352 = scalar_lea.sflag [#allocation4], %s351
        %s353 = sand.u32 %s37, 1
        %s354 = smul.addr %s353, 4
        %s355 = scalar_lea.vmem [#allocation3], %s354
        // Predicated region
        $region49: #{tpu_custom_call.1} parent=47 // pred_check
          %p356 = pneg %p50
        $region50: #{tpu_custom_call.1} parent=47 // pred_check_branch
          %358 = sbr.rel (%p356) target = $region52
        $region51: #{tpu_custom_call.1} parent=47 // pred_region
          %360 = dma.done %s352, 64
        $region52: #{tpu_custom_call.1} parent=47 // pred_fallthru
          _
        %s361 = sand.u32 %s29, 1
        %s362 = scalar_lea.sflag [#allocation7], %s361
        %s363 = sand.u32 %s63, 1
        %s364 = smul.addr %s363, 4
        %s365 = scalar_lea.vmem [#allocation6], %s364
        // Predicated region
        $region53: #{tpu_custom_call.1} parent=47 // pred_check
          %p366 = pneg %p76
        $region54: #{tpu_custom_call.1} parent=47 // pred_check_branch
          %368 = sbr.rel (%p366) target = $region56
        $region55: #{tpu_custom_call.1} parent=47 // pred_region
          %370 = dma.done %s362, 64
        $region56: #{tpu_custom_call.1} parent=47 // pred_fallthru
          _
        %s371 = sand.u32 %s29, 1
        %s372 = scalar_lea.sflag [#allocation7], %s371
        %s373 = sand.u32 %s89, 1
        %s374 = smul.addr %s373, 4
        %s375 = scalar_lea.vmem [#allocation8], %s374
        // Predicated region
        $region57: #{tpu_custom_call.1} parent=47 // pred_check
          %p376 = pneg %p102
        $region58: #{tpu_custom_call.1} parent=47 // pred_check_branch
          %378 = sbr.rel (%p376) target = $region60
        $region59: #{tpu_custom_call.1} parent=47 // pred_region
          %380 = dma.done %s372, 64
        $region60: #{tpu_custom_call.1} parent=47 // pred_fallthru
          _
        // Predicated region
        $region61: #{tpu_custom_call.1} parent=47 // pred_check
          %p381 = pneg %p123
        $region62: #{tpu_custom_call.1} parent=47 // pred_check_branch
          %383 = sbr.rel (%p381) target = $region64
        $region63: #{tpu_custom_call.1} parent=47 // pred_region
          %385 = dma.done [#allocation10], 4096
        $region64: #{tpu_custom_call.1} parent=47 // pred_fallthru
          _
        // Predicated region
        $region65: #{tpu_custom_call.1} parent=47 // pred_check
          %p386 = pneg %p144
        $region66: #{tpu_custom_call.1} parent=47 // pred_check_branch
          %388 = sbr.rel (%p386) target = $region68
        $region67: #{tpu_custom_call.1} parent=47 // pred_region
          %390 = dma.done [#allocation10], 4096
        $region68: #{tpu_custom_call.1} parent=47 // pred_fallthru
          _
        // Predicated region
        $region69: #{tpu_custom_call.1} parent=47 // pred_check
          %p391 = pneg %p165
        $region70: #{tpu_custom_call.1} parent=47 // pred_check_branch
          %393 = sbr.rel (%p391) target = $region72
        $region71: #{tpu_custom_call.1} parent=47 // pred_region
          %395 = dma.done [#allocation13], 4096
        $region72: #{tpu_custom_call.1} parent=47 // pred_fallthru
          _
        // Predicated region
        $region73: #{tpu_custom_call.1} parent=47 // pred_check
          %p396 = pneg %p186
        $region74: #{tpu_custom_call.1} parent=47 // pred_check_branch
          %398 = sbr.rel (%p396) target = $region76
        $region75: #{tpu_custom_call.1} parent=47 // pred_region
          %400 = dma.done [#allocation13], 4096
        $region76: #{tpu_custom_call.1} parent=47 // pred_fallthru
          _
        %s401 = sand.u32 %s37, 1
        %s402 = scalar_lea.sflag [#allocation4], %s401
        %s403 = sand.u32 %s37, 1
        %s404 = smul.addr %s403, 4
        %s405 = scalar_lea.vmem [#allocation3], %s404
        %p406 = pneg %p50
        %p407 = pneg %p47
        %s408 = sand.u32 %s29, 1
        %s409 = scalar_lea.sflag [#allocation7], %s408
        %s410 = sand.u32 %s63, 1
        %s411 = smul.addr %s410, 4
        %s412 = scalar_lea.vmem [#allocation6], %s411
        %p413 = pneg %p76
        %p414 = pneg %p73
        %s415 = sand.u32 %s29, 1
        %s416 = scalar_lea.sflag [#allocation7], %s415
        %s417 = sand.u32 %s89, 1
        %s418 = smul.addr %s417, 4
        %s419 = scalar_lea.vmem [#allocation8], %s418
        %p420 = pneg %p102
        %p421 = pneg %p99
        %p422 = pneg %p123
        %p423 = pneg %p120
        %p424 = pneg %p144
        %p425 = pneg %p141
        %p426 = pneg %p165
        %p427 = pneg %p162
        %p428 = pneg %p186
        %p429 = pneg %p183
        %p430 = pneg %p212
        %p431 = pneg %p209
        %s432 = sand.u32 %s199, 1
        %s433 = scalar_lea.sflag [#allocation5], %s432
        %s434 = sand.u32 %s199, 1
        %s435 = smul.addr %s434, 8
        %s436 = scalar_lea.vmem [#allocation15], %s435
        %v438 = vld [vmem:[%s355] sm:$0xf]
        %v439 = vld [vmem:[%s365] sm:$0xf]
        %v440 = vld [vmem:[%s375] sm:$0xf]
        %v441 = vld [vmem:[#allocation9] sm:$0xff]
        %v442 = vld [vmem:[#allocation9 + $0x8] sm:$0xff]
        %v443 = vld [vmem:[#allocation9 + $0x10] sm:$0xff]
        %v444 = vld [vmem:[#allocation9 + $0x18] sm:$0xff]
        %v445 = vld [vmem:[#allocation9 + $0x20] sm:$0xff]
        %v446 = vld [vmem:[#allocation9 + $0x28] sm:$0xff]
        %v447 = vld [vmem:[#allocation9 + $0x30] sm:$0xff]
        %v448 = vld [vmem:[#allocation9 + $0x38] sm:$0xff]
        %v449 = vld [vmem:[#allocation9 + $0x40] sm:$0xff]
        %v450 = vld [vmem:[#allocation9 + $0x48] sm:$0xff]
        %v451 = vld [vmem:[#allocation9 + $0x50] sm:$0xff]
        %v452 = vld [vmem:[#allocation9 + $0x58] sm:$0xff]
        %v453 = vld [vmem:[#allocation9 + $0x60] sm:$0xff]
        %v454 = vld [vmem:[#allocation9 + $0x68] sm:$0xff]
        %v455 = vld [vmem:[#allocation9 + $0x70] sm:$0xff]
        %v456 = vld [vmem:[#allocation9 + $0x78] sm:$0xff]
        %v457 = vld [vmem:[#allocation9 + $0x80] sm:$0xff]
        %v458 = vld [vmem:[#allocation9 + $0x88] sm:$0xff]
        %v459 = vld [vmem:[#allocation9 + $0x90] sm:$0xff]
        %v460 = vld [vmem:[#allocation9 + $0x98] sm:$0xff]
        %v461 = vld [vmem:[#allocation9 + $0xa0] sm:$0xff]
        %v462 = vld [vmem:[#allocation9 + $0xa8] sm:$0xff]
        %v463 = vld [vmem:[#allocation9 + $0xb0] sm:$0xff]
        %v464 = vld [vmem:[#allocation9 + $0xb8] sm:$0xff]
        %v465 = vld [vmem:[#allocation9 + $0xc0] sm:$0xff]
        %v466 = vld [vmem:[#allocation9 + $0xc8] sm:$0xff]
        %v467 = vld [vmem:[#allocation9 + $0xd0] sm:$0xff]
        %v468 = vld [vmem:[#allocation9 + $0xd8] sm:$0xff]
        %v469 = vld [vmem:[#allocation9 + $0xe0] sm:$0xff]
        %v470 = vld [vmem:[#allocation9 + $0xe8] sm:$0xff]
        %v471 = vld [vmem:[#allocation9 + $0xf0] sm:$0xff]
        %v472 = vld [vmem:[#allocation9 + $0xf8] sm:$0xff]
        %v505 = vunpack.c.l.b16 %v441
        %v506 = vunpack.c.h.b16 %v441
        %v507 = vunpack.c.l.b16 %v442
        %v508 = vunpack.c.h.b16 %v442
        %v509 = vunpack.c.l.b16 %v443
        %v510 = vunpack.c.h.b16 %v443
        %v511 = vunpack.c.l.b16 %v444
        %v512 = vunpack.c.h.b16 %v444
        %v513 = vunpack.c.l.b16 %v445
        %v514 = vunpack.c.h.b16 %v445
        %v515 = vunpack.c.l.b16 %v446
        %v516 = vunpack.c.h.b16 %v446
        %v517 = vunpack.c.l.b16 %v447
        %v518 = vunpack.c.h.b16 %v447
        %v519 = vunpack.c.l.b16 %v448
        %v520 = vunpack.c.h.b16 %v448
        %v521 = vunpack.c.l.b16 %v449
        %v522 = vunpack.c.h.b16 %v449
        %v523 = vunpack.c.l.b16 %v450
        %v524 = vunpack.c.h.b16 %v450
        %v525 = vunpack.c.l.b16 %v451
        %v526 = vunpack.c.h.b16 %v451
        %v527 = vunpack.c.l.b16 %v452
        %v528 = vunpack.c.h.b16 %v452
        %v529 = vunpack.c.l.b16 %v453
        %v530 = vunpack.c.h.b16 %v453
        %v531 = vunpack.c.l.b16 %v454
        %v532 = vunpack.c.h.b16 %v454
        %v533 = vunpack.c.l.b16 %v455
        %v534 = vunpack.c.h.b16 %v455
        %v535 = vunpack.c.l.b16 %v456
        %v536 = vunpack.c.h.b16 %v456
        %v537 = vunpack.c.l.b16 %v457
        %v538 = vunpack.c.h.b16 %v457
        %v539 = vunpack.c.l.b16 %v458
        %v540 = vunpack.c.h.b16 %v458
        %v541 = vunpack.c.l.b16 %v459
        %v542 = vunpack.c.h.b16 %v459
        %v543 = vunpack.c.l.b16 %v460
        %v544 = vunpack.c.h.b16 %v460
        %v545 = vunpack.c.l.b16 %v461
        %v546 = vunpack.c.h.b16 %v461
        %v547 = vunpack.c.l.b16 %v462
        %v548 = vunpack.c.h.b16 %v462
        %v549 = vunpack.c.l.b16 %v463
        %v550 = vunpack.c.h.b16 %v463
        %v551 = vunpack.c.l.b16 %v464
        %v552 = vunpack.c.h.b16 %v464
        %v553 = vunpack.c.l.b16 %v465
        %v554 = vunpack.c.h.b16 %v465
        %v555 = vunpack.c.l.b16 %v466
        %v556 = vunpack.c.h.b16 %v466
        %v557 = vunpack.c.l.b16 %v467
        %v558 = vunpack.c.h.b16 %v467
        %v559 = vunpack.c.l.b16 %v468
        %v560 = vunpack.c.h.b16 %v468
        %v561 = vunpack.c.l.b16 %v469
        %v562 = vunpack.c.h.b16 %v469
        %v563 = vunpack.c.l.b16 %v470
        %v564 = vunpack.c.h.b16 %v470
        %v565 = vunpack.c.l.b16 %v471
        %v566 = vunpack.c.h.b16 %v471
        %v567 = vunpack.c.l.b16 %v472
        %v568 = vunpack.c.h.b16 %v472
        %v569 = vpack.c.b16 %v509, %v505
        %v570 = vpack.c.b16 %v510, %v506
        %v571 = vpack.c.b16 %v511, %v507
        %v572 = vpack.c.b16 %v512, %v508
        %v573 = vpack.c.b16 %v517, %v513
        %v574 = vpack.c.b16 %v518, %v514
        %v575 = vpack.c.b16 %v519, %v515
        %v576 = vpack.c.b16 %v520, %v516
        %v577 = vpack.c.b16 %v525, %v521
        %v578 = vpack.c.b16 %v526, %v522
        %v579 = vpack.c.b16 %v527, %v523
        %v580 = vpack.c.b16 %v528, %v524
        %v581 = vpack.c.b16 %v533, %v529
        %v582 = vpack.c.b16 %v534, %v530
        %v583 = vpack.c.b16 %v535, %v531
        %v584 = vpack.c.b16 %v536, %v532
        %v585 = vpack.c.b16 %v541, %v537
        %v586 = vpack.c.b16 %v542, %v538
        %v587 = vpack.c.b16 %v543, %v539
        %v588 = vpack.c.b16 %v544, %v540
        %v589 = vpack.c.b16 %v549, %v545
        %v590 = vpack.c.b16 %v550, %v546
        %v591 = vpack.c.b16 %v551, %v547
        %v592 = vpack.c.b16 %v552, %v548
        %v593 = vpack.c.b16 %v557, %v553
        %v594 = vpack.c.b16 %v558, %v554
        %v595 = vpack.c.b16 %v559, %v555
        %v596 = vpack.c.b16 %v560, %v556
        %v597 = vpack.c.b16 %v565, %v561
        %v598 = vpack.c.b16 %v566, %v562
        %v599 = vpack.c.b16 %v567, %v563
        %v600 = vpack.c.b16 %v568, %v564
        %633 = vmatpush.bf16.msra.mxu0 %v597
        %634 = vmatpush.bf16.msra.mxu0 %v593
        %635 = vmatpush.bf16.msra.mxu0 %v589
        %636 = vmatpush.bf16.msra.mxu0 %v585
        %637 = vmatpush.bf16.msra.mxu0 %v581
        %638 = vmatpush.bf16.msra.mxu0 %v577
        %639 = vmatpush.bf16.msra.mxu0 %v573
        %640 = vmatpush.bf16.msra.mxu0 %v569
        %641 = vmatmul.bf16.gmra.mxu0 %v438
        %v642 = vpop.f32.mrf.mxu0
        %v643 = vadd.f32 0.0, %v642
        %v644 = vpop.f32.mrf.mxu0
        %645 = vdwg.mxu0
        %646 = vmatpush.bf16.msra.mxu0 %v598
        %647 = vmatpush.bf16.msra.mxu0 %v594
        %648 = vmatpush.bf16.msra.mxu0 %v590
        %649 = vmatpush.bf16.msra.mxu0 %v586
        %650 = vmatpush.bf16.msra.mxu0 %v582
        %651 = vmatpush.bf16.msra.mxu0 %v578
        %652 = vmatpush.bf16.msra.mxu0 %v574
        %653 = vmatpush.bf16.msra.mxu0 %v570
        %654 = vmatmul.bf16.gmra.mxu0 %v438
        %v655 = vpop.f32.mrf.mxu0
        %v656 = vadd.f32 0.0, %v655
        %v657 = vpop.f32.mrf.mxu0
        %658 = vdwg.mxu0
        %659 = vmatpush.bf16.msra.mxu0 %v599
        %660 = vmatpush.bf16.msra.mxu0 %v595
        %661 = vmatpush.bf16.msra.mxu0 %v591
        %662 = vmatpush.bf16.msra.mxu0 %v587
        %663 = vmatpush.bf16.msra.mxu0 %v583
        %664 = vmatpush.bf16.msra.mxu0 %v579
        %665 = vmatpush.bf16.msra.mxu0 %v575
        %666 = vmatpush.bf16.msra.mxu0 %v571
        %667 = vmatmul.bf16.gmra.mxu0 %v438
        %v668 = vpop.f32.mrf.mxu0
        %v669 = vadd.f32 0.0, %v668
        %v670 = vpop.f32.mrf.mxu0
        %671 = vdwg.mxu0
        %672 = vmatpush.bf16.msra.mxu0 %v600
        %673 = vmatpush.bf16.msra.mxu0 %v596
        %674 = vmatpush.bf16.msra.mxu0 %v592
        %675 = vmatpush.bf16.msra.mxu0 %v588
        %676 = vmatpush.bf16.msra.mxu0 %v584
        %677 = vmatpush.bf16.msra.mxu0 %v580
        %678 = vmatpush.bf16.msra.mxu0 %v576
        %679 = vmatpush.bf16.msra.mxu0 %v572
        %680 = vmatmul.bf16.gmra.mxu0 %v438
        %v681 = vpop.f32.mrf.mxu0
        %v682 = vadd.f32 0.0, %v681
        %v683 = vpop.f32.mrf.mxu0
        %684 = vdwg.mxu0
        %v685 = vld [vmem:[#allocation11] sm:$0xff]
        %v686 = vld [vmem:[#allocation11 + $0x8] sm:$0xff]
        %v687 = vld [vmem:[#allocation11 + $0x10] sm:$0xff]
        %v688 = vld [vmem:[#allocation11 + $0x18] sm:$0xff]
        %v689 = vld [vmem:[#allocation11 + $0x20] sm:$0xff]
        %v690 = vld [vmem:[#allocation11 + $0x28] sm:$0xff]
        %v691 = vld [vmem:[#allocation11 + $0x30] sm:$0xff]
        %v692 = vld [vmem:[#allocation11 + $0x38] sm:$0xff]
        %v693 = vld [vmem:[#allocation11 + $0x40] sm:$0xff]
        %v694 = vld [vmem:[#allocation11 + $0x48] sm:$0xff]
        %v695 = vld [vmem:[#allocation11 + $0x50] sm:$0xff]
        %v696 = vld [vmem:[#allocation11 + $0x58] sm:$0xff]
        %v697 = vld [vmem:[#allocation11 + $0x60] sm:$0xff]
        %v698 = vld [vmem:[#allocation11 + $0x68] sm:$0xff]
        %v699 = vld [vmem:[#allocation11 + $0x70] sm:$0xff]
        %v700 = vld [vmem:[#allocation11 + $0x78] sm:$0xff]
        %v701 = vld [vmem:[#allocation11 + $0x80] sm:$0xff]
        %v702 = vld [vmem:[#allocation11 + $0x88] sm:$0xff]
        %v703 = vld [vmem:[#allocation11 + $0x90] sm:$0xff]
        %v704 = vld [vmem:[#allocation11 + $0x98] sm:$0xff]
        %v705 = vld [vmem:[#allocation11 + $0xa0] sm:$0xff]
        %v706 = vld [vmem:[#allocation11 + $0xa8] sm:$0xff]
        %v707 = vld [vmem:[#allocation11 + $0xb0] sm:$0xff]
        %v708 = vld [vmem:[#allocation11 + $0xb8] sm:$0xff]
        %v709 = vld [vmem:[#allocation11 + $0xc0] sm:$0xff]
        %v710 = vld [vmem:[#allocation11 + $0xc8] sm:$0xff]
        %v711 = vld [vmem:[#allocation11 + $0xd0] sm:$0xff]
        %v712 = vld [vmem:[#allocation11 + $0xd8] sm:$0xff]
        %v713 = vld [vmem:[#allocation11 + $0xe0] sm:$0xff]
        %v714 = vld [vmem:[#allocation11 + $0xe8] sm:$0xff]
        %v715 = vld [vmem:[#allocation11 + $0xf0] sm:$0xff]
        %v716 = vld [vmem:[#allocation11 + $0xf8] sm:$0xff]
        %v749 = vunpack.c.l.b16 %v685
        %v750 = vunpack.c.h.b16 %v685
        %v751 = vunpack.c.l.b16 %v686
        %v752 = vunpack.c.h.b16 %v686
        %v753 = vunpack.c.l.b16 %v687
        %v754 = vunpack.c.h.b16 %v687
        %v755 = vunpack.c.l.b16 %v688
        %v756 = vunpack.c.h.b16 %v688
        %v757 = vunpack.c.l.b16 %v689
        %v758 = vunpack.c.h.b16 %v689
        %v759 = vunpack.c.l.b16 %v690
        %v760 = vunpack.c.h.b16 %v690
        %v761 = vunpack.c.l.b16 %v691
        %v762 = vunpack.c.h.b16 %v691
        %v763 = vunpack.c.l.b16 %v692
        %v764 = vunpack.c.h.b16 %v692
        %v765 = vunpack.c.l.b16 %v693
        %v766 = vunpack.c.h.b16 %v693
        %v767 = vunpack.c.l.b16 %v694
        %v768 = vunpack.c.h.b16 %v694
        %v769 = vunpack.c.l.b16 %v695
        %v770 = vunpack.c.h.b16 %v695
        %v771 = vunpack.c.l.b16 %v696
        %v772 = vunpack.c.h.b16 %v696
        %v773 = vunpack.c.l.b16 %v697
        %v774 = vunpack.c.h.b16 %v697
        %v775 = vunpack.c.l.b16 %v698
        %v776 = vunpack.c.h.b16 %v698
        %v777 = vunpack.c.l.b16 %v699
        %v778 = vunpack.c.h.b16 %v699
        %v779 = vunpack.c.l.b16 %v700
        %v780 = vunpack.c.h.b16 %v700
        %v781 = vunpack.c.l.b16 %v701
        %v782 = vunpack.c.h.b16 %v701
        %v783 = vunpack.c.l.b16 %v702
        %v784 = vunpack.c.h.b16 %v702
        %v785 = vunpack.c.l.b16 %v703
        %v786 = vunpack.c.h.b16 %v703
        %v787 = vunpack.c.l.b16 %v704
        %v788 = vunpack.c.h.b16 %v704
        %v789 = vunpack.c.l.b16 %v705
        %v790 = vunpack.c.h.b16 %v705
        %v791 = vunpack.c.l.b16 %v706
        %v792 = vunpack.c.h.b16 %v706
        %v793 = vunpack.c.l.b16 %v707
        %v794 = vunpack.c.h.b16 %v707
        %v795 = vunpack.c.l.b16 %v708
        %v796 = vunpack.c.h.b16 %v708
        %v797 = vunpack.c.l.b16 %v709
        %v798 = vunpack.c.h.b16 %v709
        %v799 = vunpack.c.l.b16 %v710
        %v800 = vunpack.c.h.b16 %v710
        %v801 = vunpack.c.l.b16 %v711
        %v802 = vunpack.c.h.b16 %v711
        %v803 = vunpack.c.l.b16 %v712
        %v804 = vunpack.c.h.b16 %v712
        %v805 = vunpack.c.l.b16 %v713
        %v806 = vunpack.c.h.b16 %v713
        %v807 = vunpack.c.l.b16 %v714
        %v808 = vunpack.c.h.b16 %v714
        %v809 = vunpack.c.l.b16 %v715
        %v810 = vunpack.c.h.b16 %v715
        %v811 = vunpack.c.l.b16 %v716
        %v812 = vunpack.c.h.b16 %v716
        %v813 = vpack.c.b16 %v753, %v749
        %v814 = vpack.c.b16 %v754, %v750
        %v815 = vpack.c.b16 %v755, %v751
        %v816 = vpack.c.b16 %v756, %v752
        %v817 = vpack.c.b16 %v761, %v757
        %v818 = vpack.c.b16 %v762, %v758
        %v819 = vpack.c.b16 %v763, %v759
        %v820 = vpack.c.b16 %v764, %v760
        %v821 = vpack.c.b16 %v769, %v765
        %v822 = vpack.c.b16 %v770, %v766
        %v823 = vpack.c.b16 %v771, %v767
        %v824 = vpack.c.b16 %v772, %v768
        %v825 = vpack.c.b16 %v777, %v773
        %v826 = vpack.c.b16 %v778, %v774
        %v827 = vpack.c.b16 %v779, %v775
        %v828 = vpack.c.b16 %v780, %v776
        %v829 = vpack.c.b16 %v785, %v781
        %v830 = vpack.c.b16 %v786, %v782
        %v831 = vpack.c.b16 %v787, %v783
        %v832 = vpack.c.b16 %v788, %v784
        %v833 = vpack.c.b16 %v793, %v789
        %v834 = vpack.c.b16 %v794, %v790
        %v835 = vpack.c.b16 %v795, %v791
        %v836 = vpack.c.b16 %v796, %v792
        %v837 = vpack.c.b16 %v801, %v797
        %v838 = vpack.c.b16 %v802, %v798
        %v839 = vpack.c.b16 %v803, %v799
        %v840 = vpack.c.b16 %v804, %v800
        %v841 = vpack.c.b16 %v809, %v805
        %v842 = vpack.c.b16 %v810, %v806
        %v843 = vpack.c.b16 %v811, %v807
        %v844 = vpack.c.b16 %v812, %v808
        %877 = vmatpush.bf16.msra.mxu0 %v841
        %878 = vmatpush.bf16.msra.mxu0 %v837
        %879 = vmatpush.bf16.msra.mxu0 %v833
        %880 = vmatpush.bf16.msra.mxu0 %v829
        %881 = vmatpush.bf16.msra.mxu0 %v825
        %882 = vmatpush.bf16.msra.mxu0 %v821
        %883 = vmatpush.bf16.msra.mxu0 %v817
        %884 = vmatpush.bf16.msra.mxu0 %v813
        %885 = vmatmul.bf16.gmra.mxu0 %v439
        %v886 = vpop.f32.mrf.mxu0
        %v887 = vadd.f32 0.0, %v886
        %v888 = vpop.f32.mrf.mxu0
        %889 = vdwg.mxu0
        %890 = vmatpush.bf16.msra.mxu0 %v842
        %891 = vmatpush.bf16.msra.mxu0 %v838
        %892 = vmatpush.bf16.msra.mxu0 %v834
        %893 = vmatpush.bf16.msra.mxu0 %v830
        %894 = vmatpush.bf16.msra.mxu0 %v826
        %895 = vmatpush.bf16.msra.mxu0 %v822
        %896 = vmatpush.bf16.msra.mxu0 %v818
        %897 = vmatpush.bf16.msra.mxu0 %v814
        %898 = vmatmul.bf16.gmra.mxu0 %v439
        %v899 = vpop.f32.mrf.mxu0
        %v900 = vadd.f32 0.0, %v899
        %v901 = vpop.f32.mrf.mxu0
        %902 = vdwg.mxu0
        %903 = vmatpush.bf16.msra.mxu0 %v843
        %904 = vmatpush.bf16.msra.mxu0 %v839
        %905 = vmatpush.bf16.msra.mxu0 %v835
        %906 = vmatpush.bf16.msra.mxu0 %v831
        %907 = vmatpush.bf16.msra.mxu0 %v827
        %908 = vmatpush.bf16.msra.mxu0 %v823
        %909 = vmatpush.bf16.msra.mxu0 %v819
        %910 = vmatpush.bf16.msra.mxu0 %v815
        %911 = vmatmul.bf16.gmra.mxu0 %v439
        %v912 = vpop.f32.mrf.mxu0
        %v913 = vadd.f32 0.0, %v912
        %v914 = vpop.f32.mrf.mxu0
        %915 = vdwg.mxu0
        %916 = vmatpush.bf16.msra.mxu0 %v844
        %917 = vmatpush.bf16.msra.mxu0 %v840
        %918 = vmatpush.bf16.msra.mxu0 %v836
        %919 = vmatpush.bf16.msra.mxu0 %v832
        %920 = vmatpush.bf16.msra.mxu0 %v828
        %921 = vmatpush.bf16.msra.mxu0 %v824
        %922 = vmatpush.bf16.msra.mxu0 %v820
        %923 = vmatpush.bf16.msra.mxu0 %v816
        %924 = vmatmul.bf16.gmra.mxu0 %v439
        %v925 = vpop.f32.mrf.mxu0
        %v926 = vadd.f32 0.0, %v925
        %v927 = vpop.f32.mrf.mxu0
        %928 = vdwg.mxu0
        %v929 = vld [vmem:[#allocation12] sm:$0xff]
        %v930 = vld [vmem:[#allocation12 + $0x8] sm:$0xff]
        %v931 = vld [vmem:[#allocation12 + $0x10] sm:$0xff]
        %v932 = vld [vmem:[#allocation12 + $0x18] sm:$0xff]
        %v933 = vld [vmem:[#allocation12 + $0x20] sm:$0xff]
        %v934 = vld [vmem:[#allocation12 + $0x28] sm:$0xff]
        %v935 = vld [vmem:[#allocation12 + $0x30] sm:$0xff]
        %v936 = vld [vmem:[#allocation12 + $0x38] sm:$0xff]
        %v937 = vld [vmem:[#allocation12 + $0x40] sm:$0xff]
        %v938 = vld [vmem:[#allocation12 + $0x48] sm:$0xff]
        %v939 = vld [vmem:[#allocation12 + $0x50] sm:$0xff]
        %v940 = vld [vmem:[#allocation12 + $0x58] sm:$0xff]
        %v941 = vld [vmem:[#allocation12 + $0x60] sm:$0xff]
        %v942 = vld [vmem:[#allocation12 + $0x68] sm:$0xff]
        %v943 = vld [vmem:[#allocation12 + $0x70] sm:$0xff]
        %v944 = vld [vmem:[#allocation12 + $0x78] sm:$0xff]
        %v945 = vld [vmem:[#allocation12 + $0x80] sm:$0xff]
        %v946 = vld [vmem:[#allocation12 + $0x88] sm:$0xff]
        %v947 = vld [vmem:[#allocation12 + $0x90] sm:$0xff]
        %v948 = vld [vmem:[#allocation12 + $0x98] sm:$0xff]
        %v949 = vld [vmem:[#allocation12 + $0xa0] sm:$0xff]
        %v950 = vld [vmem:[#allocation12 + $0xa8] sm:$0xff]
        %v951 = vld [vmem:[#allocation12 + $0xb0] sm:$0xff]
        %v952 = vld [vmem:[#allocation12 + $0xb8] sm:$0xff]
        %v953 = vld [vmem:[#allocation12 + $0xc0] sm:$0xff]
        %v954 = vld [vmem:[#allocation12 + $0xc8] sm:$0xff]
        %v955 = vld [vmem:[#allocation12 + $0xd0] sm:$0xff]
        %v956 = vld [vmem:[#allocation12 + $0xd8] sm:$0xff]
        %v957 = vld [vmem:[#allocation12 + $0xe0] sm:$0xff]
        %v958 = vld [vmem:[#allocation12 + $0xe8] sm:$0xff]
        %v959 = vld [vmem:[#allocation12 + $0xf0] sm:$0xff]
        %v960 = vld [vmem:[#allocation12 + $0xf8] sm:$0xff]
        %v993 = vunpack.c.l.b16 %v929
        %v994 = vunpack.c.h.b16 %v929
        %v995 = vunpack.c.l.b16 %v930
        %v996 = vunpack.c.h.b16 %v930
        %v997 = vunpack.c.l.b16 %v931
        %v998 = vunpack.c.h.b16 %v931
        %v999 = vunpack.c.l.b16 %v932
        %v1000 = vunpack.c.h.b16 %v932
        %v1001 = vunpack.c.l.b16 %v933
        %v1002 = vunpack.c.h.b16 %v933
        %v1003 = vunpack.c.l.b16 %v934
        %v1004 = vunpack.c.h.b16 %v934
        %v1005 = vunpack.c.l.b16 %v935
        %v1006 = vunpack.c.h.b16 %v935
        %v1007 = vunpack.c.l.b16 %v936
        %v1008 = vunpack.c.h.b16 %v936
        %v1009 = vunpack.c.l.b16 %v937
        %v1010 = vunpack.c.h.b16 %v937
        %v1011 = vunpack.c.l.b16 %v938
        %v1012 = vunpack.c.h.b16 %v938
        %v1013 = vunpack.c.l.b16 %v939
        %v1014 = vunpack.c.h.b16 %v939
        %v1015 = vunpack.c.l.b16 %v940
        %v1016 = vunpack.c.h.b16 %v940
        %v1017 = vunpack.c.l.b16 %v941
        %v1018 = vunpack.c.h.b16 %v941
        %v1019 = vunpack.c.l.b16 %v942
        %v1020 = vunpack.c.h.b16 %v942
        %v1021 = vunpack.c.l.b16 %v943
        %v1022 = vunpack.c.h.b16 %v943
        %v1023 = vunpack.c.l.b16 %v944
        %v1024 = vunpack.c.h.b16 %v944
        %v1025 = vunpack.c.l.b16 %v945
        %v1026 = vunpack.c.h.b16 %v945
        %v1027 = vunpack.c.l.b16 %v946
        %v1028 = vunpack.c.h.b16 %v946
        %v1029 = vunpack.c.l.b16 %v947
        %v1030 = vunpack.c.h.b16 %v947
        %v1031 = vunpack.c.l.b16 %v948
        %v1032 = vunpack.c.h.b16 %v948
        %v1033 = vunpack.c.l.b16 %v949
        %v1034 = vunpack.c.h.b16 %v949
        %v1035 = vunpack.c.l.b16 %v950
        %v1036 = vunpack.c.h.b16 %v950
        %v1037 = vunpack.c.l.b16 %v951
        %v1038 = vunpack.c.h.b16 %v951
        %v1039 = vunpack.c.l.b16 %v952
        %v1040 = vunpack.c.h.b16 %v952
        %v1041 = vunpack.c.l.b16 %v953
        %v1042 = vunpack.c.h.b16 %v953
        %v1043 = vunpack.c.l.b16 %v954
        %v1044 = vunpack.c.h.b16 %v954
        %v1045 = vunpack.c.l.b16 %v955
        %v1046 = vunpack.c.h.b16 %v955
        %v1047 = vunpack.c.l.b16 %v956
        %v1048 = vunpack.c.h.b16 %v956
        %v1049 = vunpack.c.l.b16 %v957
        %v1050 = vunpack.c.h.b16 %v957
        %v1051 = vunpack.c.l.b16 %v958
        %v1052 = vunpack.c.h.b16 %v958
        %v1053 = vunpack.c.l.b16 %v959
        %v1054 = vunpack.c.h.b16 %v959
        %v1055 = vunpack.c.l.b16 %v960
        %v1056 = vunpack.c.h.b16 %v960
        %v1057 = vpack.c.b16 %v997, %v993
        %v1058 = vpack.c.b16 %v998, %v994
        %v1059 = vpack.c.b16 %v999, %v995
        %v1060 = vpack.c.b16 %v1000, %v996
        %v1061 = vpack.c.b16 %v1005, %v1001
        %v1062 = vpack.c.b16 %v1006, %v1002
        %v1063 = vpack.c.b16 %v1007, %v1003
        %v1064 = vpack.c.b16 %v1008, %v1004
        %v1065 = vpack.c.b16 %v1013, %v1009
        %v1066 = vpack.c.b16 %v1014, %v1010
        %v1067 = vpack.c.b16 %v1015, %v1011
        %v1068 = vpack.c.b16 %v1016, %v1012
        %v1069 = vpack.c.b16 %v1021, %v1017
        %v1070 = vpack.c.b16 %v1022, %v1018
        %v1071 = vpack.c.b16 %v1023, %v1019
        %v1072 = vpack.c.b16 %v1024, %v1020
        %v1073 = vpack.c.b16 %v1029, %v1025
        %v1074 = vpack.c.b16 %v1030, %v1026
        %v1075 = vpack.c.b16 %v1031, %v1027
        %v1076 = vpack.c.b16 %v1032, %v1028
        %v1077 = vpack.c.b16 %v1037, %v1033
        %v1078 = vpack.c.b16 %v1038, %v1034
        %v1079 = vpack.c.b16 %v1039, %v1035
        %v1080 = vpack.c.b16 %v1040, %v1036
        %v1081 = vpack.c.b16 %v1045, %v1041
        %v1082 = vpack.c.b16 %v1046, %v1042
        %v1083 = vpack.c.b16 %v1047, %v1043
        %v1084 = vpack.c.b16 %v1048, %v1044
        %v1085 = vpack.c.b16 %v1053, %v1049
        %v1086 = vpack.c.b16 %v1054, %v1050
        %v1087 = vpack.c.b16 %v1055, %v1051
        %v1088 = vpack.c.b16 %v1056, %v1052
        %1121 = vmatpush.bf16.msra.mxu0 %v1085
        %1122 = vmatpush.bf16.msra.mxu0 %v1081
        %1123 = vmatpush.bf16.msra.mxu0 %v1077
        %1124 = vmatpush.bf16.msra.mxu0 %v1073
        %1125 = vmatpush.bf16.msra.mxu0 %v1069
        %1126 = vmatpush.bf16.msra.mxu0 %v1065
        %1127 = vmatpush.bf16.msra.mxu0 %v1061
        %1128 = vmatpush.bf16.msra.mxu0 %v1057
        %1129 = vmatmul.bf16.gmra.mxu0 %v440
        %v1130 = vpop.f32.mrf.mxu0
        %v1131 = vadd.f32 0.0, %v1130
        %v1132 = vpop.f32.mrf.mxu0
        %1133 = vdwg.mxu0
        %1134 = vmatpush.bf16.msra.mxu0 %v1086
        %1135 = vmatpush.bf16.msra.mxu0 %v1082
        %1136 = vmatpush.bf16.msra.mxu0 %v1078
        %1137 = vmatpush.bf16.msra.mxu0 %v1074
        %1138 = vmatpush.bf16.msra.mxu0 %v1070
        %1139 = vmatpush.bf16.msra.mxu0 %v1066
        %1140 = vmatpush.bf16.msra.mxu0 %v1062
        %1141 = vmatpush.bf16.msra.mxu0 %v1058
        %1142 = vmatmul.bf16.gmra.mxu0 %v440
        %v1143 = vpop.f32.mrf.mxu0
        %v1144 = vadd.f32 0.0, %v1143
        %v1145 = vpop.f32.mrf.mxu0
        %1146 = vdwg.mxu0
        %1147 = vmatpush.bf16.msra.mxu0 %v1087
        %1148 = vmatpush.bf16.msra.mxu0 %v1083
        %1149 = vmatpush.bf16.msra.mxu0 %v1079
        %1150 = vmatpush.bf16.msra.mxu0 %v1075
        %1151 = vmatpush.bf16.msra.mxu0 %v1071
        %1152 = vmatpush.bf16.msra.mxu0 %v1067
        %1153 = vmatpush.bf16.msra.mxu0 %v1063
        %1154 = vmatpush.bf16.msra.mxu0 %v1059
        %1155 = vmatmul.bf16.gmra.mxu0 %v440
        %v1156 = vpop.f32.mrf.mxu0
        %v1157 = vadd.f32 0.0, %v1156
        %v1158 = vpop.f32.mrf.mxu0
        %1159 = vdwg.mxu0
        %1160 = vmatpush.bf16.msra.mxu0 %v1088
        %1161 = vmatpush.bf16.msra.mxu0 %v1084
        %1162 = vmatpush.bf16.msra.mxu0 %v1080
        %1163 = vmatpush.bf16.msra.mxu0 %v1076
        %1164 = vmatpush.bf16.msra.mxu0 %v1072
        %1165 = vmatpush.bf16.msra.mxu0 %v1068
        %1166 = vmatpush.bf16.msra.mxu0 %v1064
        %1167 = vmatpush.bf16.msra.mxu0 %v1060
        %1168 = vmatmul.bf16.gmra.mxu0 %v440
        %v1169 = vpop.f32.mrf.mxu0
        %v1170 = vadd.f32 0.0, %v1169
        %v1171 = vpop.f32.mrf.mxu0
        %1172 = vdwg.mxu0
        %v1173 = vpack.c.bf16 %v656, %v643
        %v1174 = vpack.c.bf16 %v682, %v669
        %v1175 = vpack.c.bf16 %v900, %v887
        %v1176 = vpack.c.bf16 %v926, %v913
        %v1177 = vpack.c.bf16 %v1144, %v1131
        %v1178 = vpack.c.bf16 %v1170, %v1157
        %1179 = vmatpush.bf16.xpose.msra.mxu0 0
        %1180 = vmatpush.bf16.xpose.msra.mxu0 0
        %1181 = vmatpush.bf16.xpose.msra.mxu0 0
        %1182 = vmatpush.bf16.xpose.msra.mxu0 0
        %1183 = vmatpush.bf16.xpose.msra.mxu0 0
        %1184 = vmatpush.bf16.xpose.msra.mxu0 0
        %1185 = vmatpush.bf16.xpose.msra.mxu0 0
        %1186 = vmatpush.bf16.xpose.msra.mxu0 %v1175
        %1187 = vmatmul.bf16.gmra.mxu0 %v1173
        %v1188 = vpop.f32.mrf.mxu0
        %v1189 = vadd.f32 0.0, %v1188
        %v1190 = vpop.f32.mrf.mxu0
        %1191 = vdwg.mxu0
        %vm1192 = vcmask 64512
        %v1193 = vsel %vm1192, %v1189, -inf
        %1194 = vmax.xlane.f32.xlu0 %v1193
        %v1195 = vpop.xlane.xlu0 %1194
        %v1196 = vsub.f32 %v1189, %v1195
        %v1197 = vmul.f32 %v1196, 1.442695
        %v1198 = vpow.pop %v1197
        %v1199 = vsel %vm1192, %v1198, 0.0
        %1200 = vadd.xlane.f32.xlu0 %v1199
        %v1201 = vpop.xlane.xlu0 %1200
        %v1202 = vpack.c.bf16 %v1198, %v1198
        %v1204 = vsel %vm1192, %v1202, 0
        %vm1206 = vcmask 1043456
        %v1208 = vsel %vm1206, %v1177, 0
        %1210 = vmatpush.bf16.msra.mxu0 0
        %1211 = vmatpush.bf16.msra.mxu0 0
        %1212 = vmatpush.bf16.msra.mxu0 0
        %1213 = vmatpush.bf16.msra.mxu0 0
        %1214 = vmatpush.bf16.msra.mxu0 0
        %1215 = vmatpush.bf16.msra.mxu0 0
        %1216 = vmatpush.bf16.msra.mxu0 0
        %1217 = vmatpush.bf16.msra.mxu0 %v1208
        %1218 = vmatmul.bf16.gmra.mxu0 %v1204
        %v1219 = vpop.f32.mrf.mxu0
        %v1220 = vadd.f32 0.0, %v1219
        %v1221 = vpop.f32.mrf.mxu0
        %1222 = vdwg.mxu0
        %v1223 = vrcp.pop %v1201
        %v1224 = vmul.f32 %v1220, %v1223
        %v1225 = vpack.c.bf16 %v1224, %v1224
        %1226 = vst [vmem:[#allocation2] sm:$0xf] %v1225
        %v1228 = vunpack.c.h.b16 %v1173
        %v1229 = vpack.c.b16 %v1228, %v1228
        %v1232 = vunpack.c.h.b16 %v1175
        %v1233 = vpack.c.b16 %v1232, %v1232
        %1235 = vmatpush.bf16.xpose.msra.mxu0 0
        %1236 = vmatpush.bf16.xpose.msra.mxu0 0
        %1237 = vmatpush.bf16.xpose.msra.mxu0 0
        %1238 = vmatpush.bf16.xpose.msra.mxu0 0
        %1239 = vmatpush.bf16.xpose.msra.mxu0 0
        %1240 = vmatpush.bf16.xpose.msra.mxu0 0
        %1241 = vmatpush.bf16.xpose.msra.mxu0 0
        %1242 = vmatpush.bf16.xpose.msra.mxu0 %v1233
        %1243 = vmatmul.bf16.gmra.mxu0 %v1229
        %v1244 = vpop.f32.mrf.mxu0
        %v1245 = vadd.f32 0.0, %v1244
        %v1246 = vpop.f32.mrf.mxu0
        %1247 = vdwg.mxu0
        %v1248 = vsel %vm1192, %v1245, -inf
        %1249 = vmax.xlane.f32.xlu0 %v1248
        %v1250 = vpop.xlane.xlu0 %1249
        %v1251 = vsub.f32 %v1245, %v1250
        %v1252 = vmul.f32 %v1251, 1.442695
        %v1253 = vpow.pop %v1252
        %v1254 = vsel %vm1192, %v1253, 0.0
        %1255 = vadd.xlane.f32.xlu0 %v1254
        %v1256 = vpop.xlane.xlu0 %1255
        %v1257 = vpack.c.bf16 %v1253, %v1253
        %v1259 = vunpack.c.h.b16 %v1177
        %v1260 = vpack.c.b16 %v1259, %v1259
        %v1262 = vsel %vm1192, %v1257, 0
        %v1265 = vsel %vm1206, %v1260, 0
        %1267 = vmatpush.bf16.msra.mxu0 0
        %1268 = vmatpush.bf16.msra.mxu0 0
        %1269 = vmatpush.bf16.msra.mxu0 0
        %1270 = vmatpush.bf16.msra.mxu0 0
        %1271 = vmatpush.bf16.msra.mxu0 0
        %1272 = vmatpush.bf16.msra.mxu0 0
        %1273 = vmatpush.bf16.msra.mxu0 0
        %1274 = vmatpush.bf16.msra.mxu0 %v1265
        %1275 = vmatmul.bf16.gmra.mxu0 %v1262
        %v1276 = vpop.f32.mrf.mxu0
        %v1277 = vadd.f32 0.0, %v1276
        %v1278 = vpop.f32.mrf.mxu0
        %1279 = vdwg.mxu0
        %v1280 = vrcp.pop %v1256
        %v1281 = vmul.f32 %v1277, %v1280
        %v1282 = vpack.c.bf16 %v1281, %v1281
        %1283 = vst [vmem:[#allocation2 + $0x4] sm:$0xf] %v1282
        %1284 = vmatpush.bf16.xpose.msra.mxu0 0
        %1285 = vmatpush.bf16.xpose.msra.mxu0 0
        %1286 = vmatpush.bf16.xpose.msra.mxu0 0
        %1287 = vmatpush.bf16.xpose.msra.mxu0 0
        %1288 = vmatpush.bf16.xpose.msra.mxu0 0
        %1289 = vmatpush.bf16.xpose.msra.mxu0 0
        %1290 = vmatpush.bf16.xpose.msra.mxu0 0
        %1291 = vmatpush.bf16.xpose.msra.mxu0 %v1176
        %1292 = vmatmul.bf16.gmra.mxu0 %v1174
        %v1293 = vpop.f32.mrf.mxu0
        %v1294 = vadd.f32 0.0, %v1293
        %v1295 = vpop.f32.mrf.mxu0
        %1296 = vdwg.mxu0
        %v1297 = vsel %vm1192, %v1294, -inf
        %1298 = vmax.xlane.f32.xlu0 %v1297
        %v1299 = vpop.xlane.xlu0 %1298
        %v1300 = vsub.f32 %v1294, %v1299
        %v1301 = vmul.f32 %v1300, 1.442695
        %v1302 = vpow.pop %v1301
        %v1303 = vsel %vm1192, %v1302, 0.0
        %1304 = vadd.xlane.f32.xlu0 %v1303
        %v1305 = vpop.xlane.xlu0 %1304
        %v1306 = vpack.c.bf16 %v1302, %v1302
        %v1308 = vsel %vm1192, %v1306, 0
        %v1311 = vsel %vm1206, %v1178, 0
        %1313 = vmatpush.bf16.msra.mxu0 0
        %1314 = vmatpush.bf16.msra.mxu0 0
        %1315 = vmatpush.bf16.msra.mxu0 0
        %1316 = vmatpush.bf16.msra.mxu0 0
        %1317 = vmatpush.bf16.msra.mxu0 0
        %1318 = vmatpush.bf16.msra.mxu0 0
        %1319 = vmatpush.bf16.msra.mxu0 0
        %1320 = vmatpush.bf16.msra.mxu0 %v1311
        %1321 = vmatmul.bf16.gmra.mxu0 %v1308
        %v1322 = vpop.f32.mrf.mxu0
        %v1323 = vadd.f32 0.0, %v1322
        %v1324 = vpop.f32.mrf.mxu0
        %1325 = vdwg.mxu0
        %v1326 = vrcp.pop %v1305
        %v1327 = vmul.f32 %v1323, %v1326
        %v1328 = vpack.c.bf16 %v1327, %v1327
        %1329 = vst [vmem:[#allocation2 + $0x8] sm:$0xf] %v1328
        %v1331 = vunpack.c.h.b16 %v1174
        %v1332 = vpack.c.b16 %v1331, %v1331
        %v1335 = vunpack.c.h.b16 %v1176
        %v1336 = vpack.c.b16 %v1335, %v1335
        %1338 = vmatpush.bf16.xpose.msra.mxu0 0
        %1339 = vmatpush.bf16.xpose.msra.mxu0 0
        %1340 = vmatpush.bf16.xpose.msra.mxu0 0
        %1341 = vmatpush.bf16.xpose.msra.mxu0 0
        %1342 = vmatpush.bf16.xpose.msra.mxu0 0
        %1343 = vmatpush.bf16.xpose.msra.mxu0 0
        %1344 = vmatpush.bf16.xpose.msra.mxu0 0
        %1345 = vmatpush.bf16.xpose.msra.mxu0 %v1336
        %1346 = vmatmul.bf16.gmra.mxu0 %v1332
        %v1347 = vpop.f32.mrf.mxu0
        %v1348 = vadd.f32 0.0, %v1347
        %v1349 = vpop.f32.mrf.mxu0
        %1350 = vdwg.mxu0
        %v1351 = vsel %vm1192, %v1348, -inf
        %1352 = vmax.xlane.f32.xlu0 %v1351
        %v1353 = vpop.xlane.xlu0 %1352
        %v1354 = vsub.f32 %v1348, %v1353
        %v1355 = vmul.f32 %v1354, 1.442695
        %v1356 = vpow.pop %v1355
        %v1357 = vsel %vm1192, %v1356, 0.0
        %1358 = vadd.xlane.f32.xlu0 %v1357
        %v1359 = vpop.xlane.xlu0 %1358
        %v1360 = vpack.c.bf16 %v1356, %v1356
        %v1362 = vunpack.c.h.b16 %v1178
        %v1363 = vpack.c.b16 %v1362, %v1362
        %v1365 = vsel %vm1192, %v1360, 0
        %v1368 = vsel %vm1206, %v1363, 0
        %1370 = vmatpush.bf16.msra.mxu0 0
        %1371 = vmatpush.bf16.msra.mxu0 0
        %1372 = vmatpush.bf16.msra.mxu0 0
        %1373 = vmatpush.bf16.msra.mxu0 0
        %1374 = vmatpush.bf16.msra.mxu0 0
        %1375 = vmatpush.bf16.msra.mxu0 0
        %1376 = vmatpush.bf16.msra.mxu0 0
        %1377 = vmatpush.bf16.msra.mxu0 %v1368
        %1378 = vmatmul.bf16.gmra.mxu0 %v1365
        %v1379 = vpop.f32.mrf.mxu0
        %v1380 = vadd.f32 0.0, %v1379
        %v1381 = vpop.f32.mrf.mxu0
        %1382 = vdwg.mxu0
        %v1383 = vrcp.pop %v1359
        %v1384 = vmul.f32 %v1380, %v1383
        %v1385 = vpack.c.bf16 %v1384, %v1384
        %1386 = vst [vmem:[#allocation2 + $0xc] sm:$0xf] %v1385
        %v1387 = vld [vmem:[#allocation2] sm:$0xff]
        %v1388 = vld [vmem:[#allocation2 + $0x8] sm:$0xff]
        %v1389 = vld [vmem:[#allocation14] sm:$0xf]
        %v1390 = vld [vmem:[#allocation14 + $0x4] sm:$0xf]
        %v1391 = vld [vmem:[#allocation14 + $0x8] sm:$0xf]
        %v1392 = vld [vmem:[#allocation14 + $0xc] sm:$0xf]
        %v1393 = vld [vmem:[#allocation14 + $0x10] sm:$0xf]
        %v1394 = vld [vmem:[#allocation14 + $0x14] sm:$0xf]
        %v1395 = vld [vmem:[#allocation14 + $0x18] sm:$0xf]
        %v1396 = vld [vmem:[#allocation14 + $0x1c] sm:$0xf]
        %v1397 = vld [vmem:[#allocation14 + $0x20] sm:$0xf]
        %v1398 = vld [vmem:[#allocation14 + $0x24] sm:$0xf]
        %v1399 = vld [vmem:[#allocation14 + $0x28] sm:$0xf]
        %v1400 = vld [vmem:[#allocation14 + $0x2c] sm:$0xf]
        %v1401 = vld [vmem:[#allocation14 + $0x30] sm:$0xf]
        %v1402 = vld [vmem:[#allocation14 + $0x34] sm:$0xf]
        %v1403 = vld [vmem:[#allocation14 + $0x38] sm:$0xf]
        %v1404 = vld [vmem:[#allocation14 + $0x3c] sm:$0xf]
        %v1405 = vld [vmem:[#allocation14 + $0x40] sm:$0xf]
        %v1406 = vld [vmem:[#allocation14 + $0x44] sm:$0xf]
        %v1407 = vld [vmem:[#allocation14 + $0x48] sm:$0xf]
        %v1408 = vld [vmem:[#allocation14 + $0x4c] sm:$0xf]
        %v1409 = vld [vmem:[#allocation14 + $0x50] sm:$0xf]
        %v1410 = vld [vmem:[#allocation14 + $0x54] sm:$0xf]
        %v1411 = vld [vmem:[#allocation14 + $0x58] sm:$0xf]
        %v1412 = vld [vmem:[#allocation14 + $0x5c] sm:$0xf]
        %v1413 = vld [vmem:[#allocation14 + $0x60] sm:$0xf]
        %v1414 = vld [vmem:[#allocation14 + $0x64] sm:$0xf]
        %v1415 = vld [vmem:[#allocation14 + $0x68] sm:$0xf]
        %v1416 = vld [vmem:[#allocation14 + $0x6c] sm:$0xf]
        %v1417 = vld [vmem:[#allocation14 + $0x70] sm:$0xf]
        %v1418 = vld [vmem:[#allocation14 + $0x74] sm:$0xf]
        %v1419 = vld [vmem:[#allocation14 + $0x78] sm:$0xf]
        %v1420 = vld [vmem:[#allocation14 + $0x7c] sm:$0xf]
        %v1421 = vld [vmem:[#allocation14 + $0x80] sm:$0xf]
        %v1422 = vld [vmem:[#allocation14 + $0x84] sm:$0xf]
        %v1423 = vld [vmem:[#allocation14 + $0x88] sm:$0xf]
        %v1424 = vld [vmem:[#allocation14 + $0x8c] sm:$0xf]
        %v1425 = vld [vmem:[#allocation14 + $0x90] sm:$0xf]
        %v1426 = vld [vmem:[#allocation14 + $0x94] sm:$0xf]
        %v1427 = vld [vmem:[#allocation14 + $0x98] sm:$0xf]
        %v1428 = vld [vmem:[#allocation14 + $0x9c] sm:$0xf]
        %v1429 = vld [vmem:[#allocation14 + $0xa0] sm:$0xf]
        %v1430 = vld [vmem:[#allocation14 + $0xa4] sm:$0xf]
        %v1431 = vld [vmem:[#allocation14 + $0xa8] sm:$0xf]
        %v1432 = vld [vmem:[#allocation14 + $0xac] sm:$0xf]
        %v1433 = vld [vmem:[#allocation14 + $0xb0] sm:$0xf]
        %v1434 = vld [vmem:[#allocation14 + $0xb4] sm:$0xf]
        %v1435 = vld [vmem:[#allocation14 + $0xb8] sm:$0xf]
        %v1436 = vld [vmem:[#allocation14 + $0xbc] sm:$0xf]
        %v1437 = vld [vmem:[#allocation14 + $0xc0] sm:$0xf]
        %v1438 = vld [vmem:[#allocation14 + $0xc4] sm:$0xf]
        %v1439 = vld [vmem:[#allocation14 + $0xc8] sm:$0xf]
        %v1440 = vld [vmem:[#allocation14 + $0xcc] sm:$0xf]
        %v1441 = vld [vmem:[#allocation14 + $0xd0] sm:$0xf]
        %v1442 = vld [vmem:[#allocation14 + $0xd4] sm:$0xf]
        %v1443 = vld [vmem:[#allocation14 + $0xd8] sm:$0xf]
        %v1444 = vld [vmem:[#allocation14 + $0xdc] sm:$0xf]
        %v1445 = vld [vmem:[#allocation14 + $0xe0] sm:$0xf]
        %v1446 = vld [vmem:[#allocation14 + $0xe4] sm:$0xf]
        %v1447 = vld [vmem:[#allocation14 + $0xe8] sm:$0xf]
        %v1448 = vld [vmem:[#allocation14 + $0xec] sm:$0xf]
        %v1449 = vld [vmem:[#allocation14 + $0xf0] sm:$0xf]
        %v1450 = vld [vmem:[#allocation14 + $0xf4] sm:$0xf]
        %v1451 = vld [vmem:[#allocation14 + $0xf8] sm:$0xf]
        %v1452 = vld [vmem:[#allocation14 + $0xfc] sm:$0xf]
        %v1455 = vunpack.c.l.b16 %v1387
        %v1456 = vunpack.c.h.b16 %v1387
        %v1457 = vunpack.c.l.b16 %v1388
        %v1458 = vunpack.c.h.b16 %v1388
        %v1459 = vpack.c.b16 %v1455, %v1455
        %v1460 = vpack.c.b16 %v1456, %v1456
        %v1461 = vpack.c.b16 %v1457, %v1457
        %v1462 = vpack.c.b16 %v1458, %v1458
        %v1531 = vunpack.c.l.b16 %v1389
        %v1532 = vunpack.c.l.b16 %v1390
        %v1533 = vunpack.c.l.b16 %v1391
        %v1534 = vunpack.c.l.b16 %v1392
        %v1535 = vunpack.c.l.b16 %v1393
        %v1536 = vunpack.c.l.b16 %v1394
        %v1537 = vunpack.c.l.b16 %v1395
        %v1538 = vunpack.c.l.b16 %v1396
        %v1539 = vunpack.c.l.b16 %v1397
        %v1540 = vunpack.c.l.b16 %v1398
        %v1541 = vunpack.c.l.b16 %v1399
        %v1542 = vunpack.c.l.b16 %v1400
        %v1543 = vunpack.c.l.b16 %v1401
        %v1544 = vunpack.c.l.b16 %v1402
        %v1545 = vunpack.c.l.b16 %v1403
        %v1546 = vunpack.c.l.b16 %v1404
        %v1547 = vunpack.c.l.b16 %v1405
        %v1548 = vunpack.c.l.b16 %v1406
        %v1549 = vunpack.c.l.b16 %v1407
        %v1550 = vunpack.c.l.b16 %v1408
        %v1551 = vunpack.c.l.b16 %v1409
        %v1552 = vunpack.c.l.b16 %v1410
        %v1553 = vunpack.c.l.b16 %v1411
        %v1554 = vunpack.c.l.b16 %v1412
        %v1555 = vunpack.c.l.b16 %v1413
        %v1556 = vunpack.c.l.b16 %v1414
        %v1557 = vunpack.c.l.b16 %v1415
        %v1558 = vunpack.c.l.b16 %v1416
        %v1559 = vunpack.c.l.b16 %v1417
        %v1560 = vunpack.c.l.b16 %v1418
        %v1561 = vunpack.c.l.b16 %v1419
        %v1562 = vunpack.c.l.b16 %v1420
        %v1563 = vunpack.c.l.b16 %v1421
        %v1564 = vunpack.c.l.b16 %v1422
        %v1565 = vunpack.c.l.b16 %v1423
        %v1566 = vunpack.c.l.b16 %v1424
        %v1567 = vunpack.c.l.b16 %v1425
        %v1568 = vunpack.c.l.b16 %v1426
        %v1569 = vunpack.c.l.b16 %v1427
        %v1570 = vunpack.c.l.b16 %v1428
        %v1571 = vunpack.c.l.b16 %v1429
        %v1572 = vunpack.c.l.b16 %v1430
        %v1573 = vunpack.c.l.b16 %v1431
        %v1574 = vunpack.c.l.b16 %v1432
        %v1575 = vunpack.c.l.b16 %v1433
        %v1576 = vunpack.c.l.b16 %v1434
        %v1577 = vunpack.c.l.b16 %v1435
        %v1578 = vunpack.c.l.b16 %v1436
        %v1579 = vunpack.c.l.b16 %v1437
        %v1580 = vunpack.c.l.b16 %v1438
        %v1581 = vunpack.c.l.b16 %v1439
        %v1582 = vunpack.c.l.b16 %v1440
        %v1583 = vunpack.c.l.b16 %v1441
        %v1584 = vunpack.c.l.b16 %v1442
        %v1585 = vunpack.c.l.b16 %v1443
        %v1586 = vunpack.c.l.b16 %v1444
        %v1587 = vunpack.c.l.b16 %v1445
        %v1588 = vunpack.c.l.b16 %v1446
        %v1589 = vunpack.c.l.b16 %v1447
        %v1590 = vunpack.c.l.b16 %v1448
        %v1591 = vunpack.c.l.b16 %v1449
        %v1592 = vunpack.c.l.b16 %v1450
        %v1593 = vunpack.c.l.b16 %v1451
        %v1594 = vunpack.c.l.b16 %v1452
        %v1595 = vpack.c.b16 %v1532, %v1531
        %v1596 = vpack.c.b16 %v1534, %v1533
        %v1597 = vpack.c.b16 %v1536, %v1535
        %v1598 = vpack.c.b16 %v1538, %v1537
        %v1599 = vpack.c.b16 %v1540, %v1539
        %v1600 = vpack.c.b16 %v1542, %v1541
        %v1601 = vpack.c.b16 %v1544, %v1543
        %v1602 = vpack.c.b16 %v1546, %v1545
        %v1603 = vpack.c.b16 %v1548, %v1547
        %v1604 = vpack.c.b16 %v1550, %v1549
        %v1605 = vpack.c.b16 %v1552, %v1551
        %v1606 = vpack.c.b16 %v1554, %v1553
        %v1607 = vpack.c.b16 %v1556, %v1555
        %v1608 = vpack.c.b16 %v1558, %v1557
        %v1609 = vpack.c.b16 %v1560, %v1559
        %v1610 = vpack.c.b16 %v1562, %v1561
        %v1611 = vpack.c.b16 %v1564, %v1563
        %v1612 = vpack.c.b16 %v1566, %v1565
        %v1613 = vpack.c.b16 %v1568, %v1567
        %v1614 = vpack.c.b16 %v1570, %v1569
        %v1615 = vpack.c.b16 %v1572, %v1571
        %v1616 = vpack.c.b16 %v1574, %v1573
        %v1617 = vpack.c.b16 %v1576, %v1575
        %v1618 = vpack.c.b16 %v1578, %v1577
        %v1619 = vpack.c.b16 %v1580, %v1579
        %v1620 = vpack.c.b16 %v1582, %v1581
        %v1621 = vpack.c.b16 %v1584, %v1583
        %v1622 = vpack.c.b16 %v1586, %v1585
        %v1623 = vpack.c.b16 %v1588, %v1587
        %v1624 = vpack.c.b16 %v1590, %v1589
        %v1625 = vpack.c.b16 %v1592, %v1591
        %v1626 = vpack.c.b16 %v1594, %v1593
        %1659 = vmatpush.bf16.msra.mxu0 %v1602
        %1660 = vmatpush.bf16.msra.mxu0 %v1601
        %1661 = vmatpush.bf16.msra.mxu0 %v1600
        %1662 = vmatpush.bf16.msra.mxu0 %v1599
        %1663 = vmatpush.bf16.msra.mxu0 %v1598
        %1664 = vmatpush.bf16.msra.mxu0 %v1597
        %1665 = vmatpush.bf16.msra.mxu0 %v1596
        %1666 = vmatpush.bf16.msra.mxu0 %v1595
        %1667 = vmatmul.bf16.gmra.mxu0 %v1459
        %v1668 = vpop.f32.mrf.mxu0
        %v1669 = vadd.f32 0.0, %v1668
        %v1670 = vpop.f32.mrf.mxu0
        %1671 = vdwg.mxu0
        %1672 = vmatpush.bf16.msra.mxu0 %v1610
        %1673 = vmatpush.bf16.msra.mxu0 %v1609
        %1674 = vmatpush.bf16.msra.mxu0 %v1608
        %1675 = vmatpush.bf16.msra.mxu0 %v1607
        %1676 = vmatpush.bf16.msra.mxu0 %v1606
        %1677 = vmatpush.bf16.msra.mxu0 %v1605
        %1678 = vmatpush.bf16.msra.mxu0 %v1604
        %1679 = vmatpush.bf16.msra.mxu0 %v1603
        %1680 = vmatmul.bf16.gmra.mxu0 %v1460
        %v1681 = vpop.f32.mrf.mxu0
        %v1682 = vadd.f32 %v1669, %v1681
        %v1683 = vpop.f32.mrf.mxu0
        %1684 = vdwg.mxu0
        %1685 = vmatpush.bf16.msra.mxu0 %v1618
        %1686 = vmatpush.bf16.msra.mxu0 %v1617
        %1687 = vmatpush.bf16.msra.mxu0 %v1616
        %1688 = vmatpush.bf16.msra.mxu0 %v1615
        %1689 = vmatpush.bf16.msra.mxu0 %v1614
        %1690 = vmatpush.bf16.msra.mxu0 %v1613
        %1691 = vmatpush.bf16.msra.mxu0 %v1612
        %1692 = vmatpush.bf16.msra.mxu0 %v1611
        %1693 = vmatmul.bf16.gmra.mxu0 %v1461
        %v1694 = vpop.f32.mrf.mxu0
        %v1695 = vadd.f32 %v1682, %v1694
        %v1696 = vpop.f32.mrf.mxu0
        %1697 = vdwg.mxu0
        %1698 = vmatpush.bf16.msra.mxu0 %v1626
        %1699 = vmatpush.bf16.msra.mxu0 %v1625
        %1700 = vmatpush.bf16.msra.mxu0 %v1624
        %1701 = vmatpush.bf16.msra.mxu0 %v1623
        %1702 = vmatpush.bf16.msra.mxu0 %v1622
        %1703 = vmatpush.bf16.msra.mxu0 %v1621
        %1704 = vmatpush.bf16.msra.mxu0 %v1620
        %1705 = vmatpush.bf16.msra.mxu0 %v1619
        %1706 = vmatmul.bf16.gmra.mxu0 %v1462
        %v1707 = vpop.f32.mrf.mxu0
        %v1708 = vadd.f32 %v1695, %v1707
        %v1709 = vpop.f32.mrf.mxu0
        %1710 = vdwg.mxu0
        %1711 = vst [vmem:[%s436] sm:$0xff] %v1708
        %s1712 = sand.u32 %s199, 1
        %s1713 = scalar_lea.sflag [#allocation5], %s1712
        %s1714 = sand.u32 %s199, 1
        %s1715 = smul.addr %s1714, 8
        %s1716 = scalar_lea.vmem [#allocation15], %s1715
        // Predicated region
        $region77: #{tpu_custom_call.1} parent=47 // pred_check
          %p1717 = pneg %p209
        $region78: #{tpu_custom_call.1} parent=47 // pred_check_branch
          %1719 = sbr.rel (%p1717) target = $region80
        $region79: #{tpu_custom_call.1} parent=47 // pred_region
          %1721 = vsyncadd %s1713, 0
          %s1722 = smul.addr %s29, 8
          %s1723 = scalar_lea.hbm %s7, %s1722
          %s1725 = sshll.u32 %s1716, 4
          %s1726 = int_to_ptr.vmem [resolvable:$true] %s1725
          %s1727 = sshll.u32 %s1723, 4
          %s1728 = int_to_ptr.hbm [resolvable:$true] %s1727
          %1730 = dma.vmem_to_hbm [thread:$0]  %s1726, 128, %s1728, %s1713
        $region80: #{tpu_custom_call.1} parent=47 // pred_fallthru
          _
      $region48: #{tpu_custom_call.1} parent=5 // pred_fallthru
        _
      %p1731 = scmp.le.s32.totalorder 2, %s24
      // Predicated region
      $region81: #{tpu_custom_call.1} parent=5 // pred_check
        %p1732 = pneg %p1731
      $region82: #{tpu_custom_call.1} parent=5 // pred_check_branch
        %1734 = sbr.rel (%p1732) target = $region84
      $region83: #{tpu_custom_call.1} parent=5 // pred_region
        %s1735 = ssub.s32 %s24, 2
        // Predicated region
        $region85: #{tpu_custom_call.1} parent=83 // pred_check
          %p1736 = pneg %p215
        $region86: #{tpu_custom_call.1} parent=83 // pred_check_branch
          %1738 = sbr.rel (%p1736) target = $region88
        $region87: #{tpu_custom_call.1} parent=83 // pred_region
          %s1739 = sand.u32 %s200, 1
          %s1740 = scalar_lea.sflag [#allocation5], %s1739
          %s1741 = sand.u32 %s200, 1
          %s1742 = smul.addr %s1741, 8
          %s1743 = scalar_lea.vmem [#allocation15], %s1742
          %1745 = dma.done %s1740, 128
        $region88: #{tpu_custom_call.1} parent=83 // pred_fallthru
          _
      $region84: #{tpu_custom_call.1} parent=5 // pred_fallthru
        _
    $region6: #{tpu_custom_call.1} parent=1 // loop_footer
      %s28 = sadd.s32 1, %s24
    $region7: #{tpu_custom_call.1} parent=1 // loop_footer_branch
      %23 = sbr.rel target = $region3
    $region8: #{tpu_custom_call.1} parent=1 // loop_exit
      _
    %1746 = vsyncpa [#allocation4], 1
    %s1747 = scalar_lea.sflag [#allocation4], 1
    %1748 = vsyncpa %s1747, 1
    %1749 = vsyncpa [#allocation7], 1
    %s1750 = scalar_lea.sflag [#allocation7], 1
    %1751 = vsyncpa %s1750, 1
    %1752 = vsyncpa [#allocation10], 1
    %1753 = vsyncpa [#allocation13], 1
    %1754 = vsyncpa [#allocation5], 1
    %s1755 = scalar_lea.sflag [#allocation5], 1
    %1756 = vsyncpa %s1755, 1

// kernel: tpu_custom_call.1
$region0: #{tpu_custom_call.1}
  #allocation0 [shape = 'u32[]', space=smem, size = 0x4, offset = 0x4, fixed_abs, tag = 'smem constant byte address 0x4 - core index']
  #allocation1 [shape = 'u32[72,128]{1,0:T(1,128)}', space=vmem, size = 0x9000, scoped, tag = 'internal scratch']
  #allocation2 [shape = 'bf16[8,512]{1,0:T(8,128)(2,1)}', space=vmem, size = 0x2000, scoped, tag = 'scratch operand']
  %s0 = inlined_call_operand.hbm [shape: bf16[2,8,128], index: 0, kind: input, shape index: {}]
  %s1 = inlined_call_operand.hbm [shape: bf16[2,8,128], index: 1, kind: input, shape index: {}]
  %s2 = inlined_call_operand.hbm [shape: bf16[2,8,128], index: 2, kind: input, shape index: {}]
  %s3 = inlined_call_operand.hbm [shape: bf16[128,512], index: 3, kind: input, shape index: {}]
  %s4 = inlined_call_operand.hbm [shape: bf16[128,512], index: 4, kind: input, shape index: {}]
  %s5 = inlined_call_operand.hbm [shape: bf16[128,512], index: 5, kind: input, shape index: {}]
  %s6 = inlined_call_operand.hbm [shape: bf16[512,128], index: 6, kind: input, shape index: {}]
  %s7 = inlined_call_operand.hbm [shape: f32[2,8,128], index: 7, kind: output, shape index: {}]
  %s8 = sld [smem:[#allocation0]]
  $region89: #{tpu_custom_call.1} parent=0
    _
  %s10 = ssub.s32 1, %s8
  %s11 = scalar_select 0, %s10, %s8
  $region1: #{tpu_custom_call.1} parent=0
    #allocation3 [shape = 'u8[4096]{0}', space=vmem, size = 0x1000, scoped, tag = 'input window, operand 0']
    #allocation4 [shape = 's32[2]{0}', space=sflag, size = 0x8, scoped, tag = 'scoped memory for tpu_custom_call.1']
    #allocation5 [shape = 's32[2]{0}', space=sflag, size = 0x8, scoped, tag = 'scoped memory for tpu_custom_call.1']
    #allocation6 [shape = 'u8[4096]{0}', space=vmem, size = 0x1000, scoped, tag = 'input window, operand 1']
    #allocation7 [shape = 's32[2]{0}', space=sflag, size = 0x8, scoped, tag = 'scoped memory for tpu_custom_call.1']
    #allocation8 [shape = 'u8[4096]{0}', space=vmem, size = 0x1000, scoped, tag = 'input window, operand 2']
    #allocation9 [shape = 'u8[131072]{0}', space=vmem, size = 0x20000, scoped, tag = 'input window, operand 3, single buffered']
    #allocation10 [shape = 's32[1]{0}', space=sflag, size = 0x4, scoped, tag = 'scoped memory for tpu_custom_call.1']
    #allocation11 [shape = 'u8[131072]{0}', space=vmem, size = 0x20000, scoped, tag = 'input window, operand 4, single buffered']
    #allocation12 [shape = 'u8[131072]{0}', space=vmem, size = 0x20000, scoped, tag = 'input window, operand 5, single buffered']
    #allocation13 [shape = 's32[1]{0}', space=sflag, size = 0x4, scoped, tag = 'scoped memory for tpu_custom_call.1']
    #allocation14 [shape = 'u8[131072]{0}', space=vmem, size = 0x20000, scoped, tag = 'input window, operand 6, single buffered']
    #allocation15 [shape = 'u8[8192]{0}', space=vmem, size = 0x2000, scoped, tag = 'output window, operand 0']
    %12 = vsyncpa [#allocation4], 0
    %s13 = scalar_lea.sflag [#allocation4], 1
    %14 = vsyncpa %s13, 0
    %15 = vsyncpa [#allocation7], 0
    %s16 = scalar_lea.sflag [#allocation7], 1
    %17 = vsyncpa %s16, 0
    %18 = vsyncpa [#allocation10], 0
    %19 = vsyncpa [#allocation13], 0
    %20 = vsyncpa [#allocation5], 0
    %s21 = scalar_lea.sflag [#allocation5], 1
    %22 = vsyncpa %s21, 0
    loop: start=0, step=1, limit=4
    $region2: #{tpu_custom_call.1} parent=1 // loop_pre_header
      _
    $region3: #{tpu_custom_call.1} parent=1 // loop_header
      %s24 = sphi 0, %s28
      %p25 = scmp.ge.s32.totalorder %s24, 4
      %s34 = sphi 0, %s36
      %s37 = sphi 0, %s34
      %s38 = sphi 0, %s37
      %s54 = sphi 0, %s38
      %s60 = sphi 0, %s62
      %s63 = sphi 0, %s60
      %s64 = sphi 0, %s63
      %s80 = sphi 0, %s64
      %s86 = sphi 0, %s88
      %s89 = sphi 0, %s86
      %s90 = sphi 0, %s89
      %s106 = sphi 0, %s90
      %s110 = sphi 0, %s110
      %s112 = sphi 0, %s110
      %s113 = sphi 0, %s112
      %s127 = sphi 0, %s113
      %s131 = sphi 0, %s131
      %s133 = sphi 0, %s131
      %s134 = sphi 0, %s133
      %s148 = sphi 0, %s134
      %s152 = sphi 0, %s152
      %s154 = sphi 0, %s152
      %s155 = sphi 0, %s154
      %s169 = sphi 0, %s155
      %s173 = sphi 0, %s173
      %s175 = sphi 0, %s173
      %s176 = sphi 0, %s175
      %s190 = sphi 0, %s176
      %s196 = sphi 0, %s198
      %s199 = sphi 0, %s196
      %s200 = sphi 0, %s199
      %s216 = sphi 0, %s200
    $region4: #{tpu_custom_call.1} parent=1 // loop_header_branch
      %27 = sbr.rel (%p25) target = $region8
    $region5: #{tpu_custom_call.1} parent=1 // loop_body
      %s29 = ssub.s32 %s24, 1
      %s30 = ssub.s32 %s24, 2
      %s31 = sadd.s32 %s24, 1
      %s32 = ssub.s32 %s24, %s31
      %p33 = scmp.eq.s32.totalorder %s32, 0
      %s35 = sadd.s32 %s34, 1
      %s36 = scalar_select %p33, %s34, %s35
      %p39 = pneg %p33
      %p40 = scmp.eq.s32.totalorder %s24, 1
      %p41 = por %p39, %p40
      %p42 = scmp.ne.s32.totalorder %s34, %s37
      %p43 = scmp.eq.s32.totalorder %s24, 0
      %p44 = por %p42, %p43
      %p45 = scmp.ne.s32.totalorder %s34, %s37
      %p46 = scmp.eq.s32.totalorder %s29, 1
      %p47 = por %p45, %p46
      %p48 = scmp.ne.s32.totalorder %s37, %s38
      %p49 = scmp.eq.s32.totalorder %s29, 0
      %p50 = por %p48, %p49
      %p51 = scmp.ne.s32.totalorder %s37, %s38
      %p52 = scmp.eq.s32.totalorder %s30, 1
      %p53 = por %p51, %p52
      %p55 = scmp.ne.s32.totalorder %s38, %s54
      %p56 = scmp.eq.s32.totalorder %s30, 0
      %p57 = por %p55, %p56
      %s58 = ssub.s32 %s24, %s31
      %p59 = scmp.eq.s32.totalorder %s58, 0
      %s61 = sadd.s32 %s60, 1
      %s62 = scalar_select %p59, %s60, %s61
      %p65 = pneg %p59
      %p66 = scmp.eq.s32.totalorder %s24, 1
      %p67 = por %p65, %p66
      %p68 = scmp.ne.s32.totalorder %s60, %s63
      %p69 = scmp.eq.s32.totalorder %s24, 0
      %p70 = por %p68, %p69
      %p71 = scmp.ne.s32.totalorder %s60, %s63
      %p72 = scmp.eq.s32.totalorder %s29, 1
      %p73 = por %p71, %p72
      %p74 = scmp.ne.s32.totalorder %s63, %s64
      %p75 = scmp.eq.s32.totalorder %s29, 0
      %p76 = por %p74, %p75
      %p77 = scmp.ne.s32.totalorder %s63, %s64
      %p78 = scmp.eq.s32.totalorder %s30, 1
      %p79 = por %p77, %p78
      %p81 = scmp.ne.s32.totalorder %s64, %s80
      %p82 = scmp.eq.s32.totalorder %s30, 0
      %p83 = por %p81, %p82
      %s84 = ssub.s32 %s24, %s31
      %p85 = scmp.eq.s32.totalorder %s84, 0
      %s87 = sadd.s32 %s86, 1
      %s88 = scalar_select %p85, %s86, %s87
      %p91 = pneg %p85
      %p92 = scmp.eq.s32.totalorder %s24, 1
      %p93 = por %p91, %p92
      %p94 = scmp.ne.s32.totalorder %s86, %s89
      %p95 = scmp.eq.s32.totalorder %s24, 0
      %p96 = por %p94, %p95
      %p97 = scmp.ne.s32.totalorder %s86, %s89
      %p98 = scmp.eq.s32.totalorder %s29, 1
      %p99 = por %p97, %p98
      %p100 = scmp.ne.s32.totalorder %s89, %s90
      %p101 = scmp.eq.s32.totalorder %s29, 0
      %p102 = por %p100, %p101
      %p103 = scmp.ne.s32.totalorder %s89, %s90
      %p104 = scmp.eq.s32.totalorder %s30, 1
      %p105 = por %p103, %p104
      %p107 = scmp.ne.s32.totalorder %s90, %s106
      %p108 = scmp.eq.s32.totalorder %s30, 0
      %p109 = por %p107, %p108
      %s111 = sadd.s32 %s110, 1
      %p114 = scmp.eq.s32.totalorder %s24, 1
      %p115 = scmp.ne.s32.totalorder %s110, %s112
      %p116 = scmp.eq.s32.totalorder %s24, 0
      %p117 = por %p115, %p116
      %p118 = scmp.ne.s32.totalorder %s110, %s112
      %p119 = scmp.eq.s32.totalorder %s29, 1
      %p120 = por %p118, %p119
      %p121 = scmp.ne.s32.totalorder %s112, %s113
      %p122 = scmp.eq.s32.totalorder %s29, 0
      %p123 = por %p121, %p122
      %p124 = scmp.ne.s32.totalorder %s112, %s113
      %p125 = scmp.eq.s32.totalorder %s30, 1
      %p126 = por %p124, %p125
      %p128 = scmp.ne.s32.totalorder %s113, %s127
      %p129 = scmp.eq.s32.totalorder %s30, 0
      %p130 = por %p128, %p129
      %s132 = sadd.s32 %s131, 1
      %p135 = scmp.eq.s32.totalorder %s24, 1
      %p136 = scmp.ne.s32.totalorder %s131, %s133
      %p137 = scmp.eq.s32.totalorder %s24, 0
      %p138 = por %p136, %p137
      %p139 = scmp.ne.s32.totalorder %s131, %s133
      %p140 = scmp.eq.s32.totalorder %s29, 1
      %p141 = por %p139, %p140
      %p142 = scmp.ne.s32.totalorder %s133, %s134
      %p143 = scmp.eq.s32.totalorder %s29, 0
      %p144 = por %p142, %p143
      %p145 = scmp.ne.s32.totalorder %s133, %s134
      %p146 = scmp.eq.s32.totalorder %s30, 1
      %p147 = por %p145, %p146
      %p149 = scmp.ne.s32.totalorder %s134, %s148
      %p150 = scmp.eq.s32.totalorder %s30, 0
      %p151 = por %p149, %p150
      %s153 = sadd.s32 %s152, 1
      %p156 = scmp.eq.s32.totalorder %s24, 1
      %p157 = scmp.ne.s32.totalorder %s152, %s154
      %p158 = scmp.eq.s32.totalorder %s24, 0
      %p159 = por %p157, %p158
      %p160 = scmp.ne.s32.totalorder %s152, %s154
      %p161 = scmp.eq.s32.totalorder %s29, 1
      %p162 = por %p160, %p161
      %p163 = scmp.ne.s32.totalorder %s154, %s155
      %p164 = scmp.eq.s32.totalorder %s29, 0
      %p165 = por %p163, %p164
      %p166 = scmp.ne.s32.totalorder %s154, %s155
      %p167 = scmp.eq.s32.totalorder %s30, 1
      %p168 = por %p166, %p167
      %p170 = scmp.ne.s32.totalorder %s155, %s169
      %p171 = scmp.eq.s32.totalorder %s30, 0
      %p172 = por %p170, %p171
      %s174 = sadd.s32 %s173, 1
      %p177 = scmp.eq.s32.totalorder %s24, 1
      %p178 = scmp.ne.s32.totalorder %s173, %s175
      %p179 = scmp.eq.s32.totalorder %s24, 0
      %p180 = por %p178, %p179
      %p181 = scmp.ne.s32.totalorder %s173, %s175
      %p182 = scmp.eq.s32.totalorder %s29, 1
      %p183 = por %p181, %p182
      %p184 = scmp.ne.s32.totalorder %s175, %s176
      %p185 = scmp.eq.s32.totalorder %s29, 0
      %p186 = por %p184, %p185
      %p187 = scmp.ne.s32.totalorder %s175, %s176
      %p188 = scmp.eq.s32.totalorder %s30, 1
      %p189 = por %p187, %p188
      %p191 = scmp.ne.s32.totalorder %s176, %s190
      %p192 = scmp.eq.s32.totalorder %s30, 0
      %p193 = por %p191, %p192
      %s194 = ssub.s32 %s24, %s31
      %p195 = scmp.eq.s32.totalorder %s194, 0
      %s197 = sadd.s32 %s196, 1
      %s198 = scalar_select %p195, %s196, %s197
      %p201 = pneg %p195
      %p202 = scmp.eq.s32.totalorder %s24, 1
      %p203 = por %p201, %p202
      %p204 = scmp.ne.s32.totalorder %s196, %s199
      %p205 = scmp.eq.s32.totalorder %s24, 0
      %p206 = por %p204, %p205
      %p207 = scmp.ne.s32.totalorder %s196, %s199
      %p208 = scmp.eq.s32.totalorder %s29, 1
      %p209 = por %p207, %p208
      %p210 = scmp.ne.s32.totalorder %s199, %s200
      %p211 = scmp.eq.s32.totalorder %s29, 0
      %p212 = por %p210, %p211
      %p213 = scmp.ne.s32.totalorder %s199, %s200
      %p214 = scmp.eq.s32.totalorder %s30, 1
      %p215 = por %p213, %p214
      %p217 = scmp.ne.s32.totalorder %s200, %s216
      %p218 = scmp.eq.s32.totalorder %s30, 0
      %p219 = por %p217, %p218
      %p220 = scmp.le.s32.totalorder 1, %s24
      %p221 = scmp.lt.s32.totalorder %s24, 3
      %p222 = pnand %p220, %p221
      %p223 = pneg %p222
      // Predicated region
      $region9: #{tpu_custom_call.1} parent=5 // pred_check
        _
      $region10: #{tpu_custom_call.1} parent=5 // pred_check_branch
        %225 = sbr.rel (%p222) target = $region12
      $region11: #{tpu_custom_call.1} parent=5 // pred_region
        %s226 = ssub.s32 %s24, 1
        // Predicated region
        $region13: #{tpu_custom_call.1} parent=11 // pred_check
          %p227 = pneg %p123
        $region14: #{tpu_custom_call.1} parent=11 // pred_check_branch
          %229 = sbr.rel (%p227) target = $region16
        $region15: #{tpu_custom_call.1} parent=11 // pred_region
          %231 = vsyncadd [#allocation10], 0
          %s232 = sshll.u32 %s3, 4
          %s233 = int_to_ptr.hbm [resolvable:$true] %s232
          %s234 = sshll.u32 [#allocation9], 4
          %s235 = int_to_ptr.vmem [resolvable:$true] %s234
          %240 = dma.hbm_to_vmem [thread:$0]  %s233, 4096, %s235, [#allocation10], 256, 256, 16
        $region16: #{tpu_custom_call.1} parent=11 // pred_fallthru
          _
        // Predicated region
        $region17: #{tpu_custom_call.1} parent=11 // pred_check
          %p241 = pneg %p144
        $region18: #{tpu_custom_call.1} parent=11 // pred_check_branch
          %243 = sbr.rel (%p241) target = $region20
        $region19: #{tpu_custom_call.1} parent=11 // pred_region
          %245 = vsyncadd [#allocation10], 0
          %s246 = sshll.u32 %s4, 4
          %s247 = int_to_ptr.hbm [resolvable:$true] %s246
          %s248 = sshll.u32 [#allocation11], 4
          %s249 = int_to_ptr.vmem [resolvable:$true] %s248
          %254 = dma.hbm_to_vmem [thread:$0]  %s247, 4096, %s249, [#allocation10], 256, 256, 16
        $region20: #{tpu_custom_call.1} parent=11 // pred_fallthru
          _
        // Predicated region
        $region21: #{tpu_custom_call.1} parent=11 // pred_check
          %p255 = pneg %p165
        $region22: #{tpu_custom_call.1} parent=11 // pred_check_branch
          %257 = sbr.rel (%p255) target = $region24
        $region23: #{tpu_custom_call.1} parent=11 // pred_region
          %259 = vsyncadd [#allocation13], 0
          %s260 = sshll.u32 %s5, 4
          %s261 = int_to_ptr.hbm [resolvable:$true] %s260
          %s262 = sshll.u32 [#allocation12], 4
          %s263 = int_to_ptr.vmem [resolvable:$true] %s262
          %268 = dma.hbm_to_vmem [thread:$0]  %s261, 4096, %s263, [#allocation13], 256, 256, 16
        $region24: #{tpu_custom_call.1} parent=11 // pred_fallthru
          _
        // Predicated region
        $region25: #{tpu_custom_call.1} parent=11 // pred_check
          %p269 = pneg %p186
        $region26: #{tpu_custom_call.1} parent=11 // pred_check_branch
          %271 = sbr.rel (%p269) target = $region28
        $region27: #{tpu_custom_call.1} parent=11 // pred_region
          %273 = vsyncadd [#allocation13], 0
          %s274 = sshll.u32 %s6, 4
          %s275 = int_to_ptr.hbm [resolvable:$true] %s274
          %s276 = sshll.u32 [#allocation14], 4
          %s277 = int_to_ptr.vmem [resolvable:$true] %s276
          %282 = dma.hbm_to_vmem [thread:$0]  %s275, 4096, %s277, [#allocation13], 64, 64, 4
        $region28: #{tpu_custom_call.1} parent=11 // pred_fallthru
          _
      $region12: #{tpu_custom_call.1} parent=5 // pred_fallthru
        _
      %p283 = scmp.lt.s32.totalorder %s24, 2
      // Predicated region
      $region29: #{tpu_custom_call.1} parent=5 // pred_check
        %p284 = pneg %p283
      $region30: #{tpu_custom_call.1} parent=5 // pred_check_branch
        %286 = sbr.rel (%p284) target = $region32
      $region31: #{tpu_custom_call.1} parent=5 // pred_region
        // Predicated region
        $region33: #{tpu_custom_call.1} parent=31 // pred_check
          %p287 = pneg %p44
        $region34: #{tpu_custom_call.1} parent=31 // pred_check_branch
          %289 = sbr.rel (%p287) target = $region36
        $region35: #{tpu_custom_call.1} parent=31 // pred_region
          %s290 = sand.u32 %s34, 1
          %s291 = scalar_lea.sflag [#allocation4], %s290
          %s292 = sand.u32 %s34, 1
          %s293 = smul.addr %s292, 4
          %s294 = scalar_lea.vmem [#allocation3], %s293
          %296 = vsyncadd %s291, 0
          %s297 = smul.addr %s24, 4
          %s298 = scalar_lea.hbm %s0, %s297
          %s300 = sshll.u32 %s298, 4
          %s301 = int_to_ptr.hbm [resolvable:$true] %s300
          %s302 = sshll.u32 %s294, 4
          %s303 = int_to_ptr.vmem [resolvable:$true] %s302
          %305 = dma.hbm_to_vmem [thread:$0]  %s301, 64, %s303, %s291
        $region36: #{tpu_custom_call.1} parent=31 // pred_fallthru
          _
        // Predicated region
        $region37: #{tpu_custom_call.1} parent=31 // pred_check
          %p306 = pneg %p70
        $region38: #{tpu_custom_call.1} parent=31 // pred_check_branch
          %308 = sbr.rel (%p306) target = $region40
        $region39: #{tpu_custom_call.1} parent=31 // pred_region
          %s309 = sand.u32 %s24, 1
          %s310 = scalar_lea.sflag [#allocation7], %s309
          %s311 = sand.u32 %s60, 1
          %s312 = smul.addr %s311, 4
          %s313 = scalar_lea.vmem [#allocation6], %s312
          %315 = vsyncadd %s310, 0
          %s316 = smul.addr %s24, 4
          %s317 = scalar_lea.hbm %s1, %s316
          %s319 = sshll.u32 %s317, 4
          %s320 = int_to_ptr.hbm [resolvable:$true] %s319
          %s321 = sshll.u32 %s313, 4
          %s322 = int_to_ptr.vmem [resolvable:$true] %s321
          %324 = dma.hbm_to_vmem [thread:$0]  %s320, 64, %s322, %s310
        $region40: #{tpu_custom_call.1} parent=31 // pred_fallthru
          _
        // Predicated region
        $region41: #{tpu_custom_call.1} parent=31 // pred_check
          %p325 = pneg %p96
        $region42: #{tpu_custom_call.1} parent=31 // pred_check_branch
          %327 = sbr.rel (%p325) target = $region44
        $region43: #{tpu_custom_call.1} parent=31 // pred_region
          %s328 = sand.u32 %s24, 1
          %s329 = scalar_lea.sflag [#allocation7], %s328
          %s330 = sand.u32 %s86, 1
          %s331 = smul.addr %s330, 4
          %s332 = scalar_lea.vmem [#allocation8], %s331
          %334 = vsyncadd %s329, 0
          %s335 = smul.addr %s24, 4
          %s336 = scalar_lea.hbm %s2, %s335
          %s338 = sshll.u32 %s336, 4
          %s339 = int_to_ptr.hbm [resolvable:$true] %s338
          %s340 = sshll.u32 %s332, 4
          %s341 = int_to_ptr.vmem [resolvable:$true] %s340
          %343 = dma.hbm_to_vmem [thread:$0]  %s339, 64, %s341, %s329
        $region44: #{tpu_custom_call.1} parent=31 // pred_fallthru
          _
      $region32: #{tpu_custom_call.1} parent=5 // pred_fallthru
        _
      %p344 = scmp.le.s32.totalorder 1, %s24
      %p345 = scmp.lt.s32.totalorder %s24, 3
      %p346 = pnand %p344, %p345
      %p347 = pneg %p346
      // Predicated region
      $region45: #{tpu_custom_call.1} parent=5 // pred_check
        _
      $region46: #{tpu_custom_call.1} parent=5 // pred_check_branch
        %349 = sbr.rel (%p346) target = $region48
      $region47: #{tpu_custom_call.1} parent=5 // pred_region
        %s350 = ssub.s32 %s24, 1
        %s351 = sand.u32 %s37, 1
        %s352 = scalar_lea.sflag [#allocation4], %s351
        %s353 = sand.u32 %s37, 1
        %s354 = smul.addr %s353, 4
        %s355 = scalar_lea.vmem [#allocation3], %s354
        // Predicated region
        $region49: #{tpu_custom_call.1} parent=47 // pred_check
          %p356 = pneg %p50
        $region50: #{tpu_custom_call.1} parent=47 // pred_check_branch
          %358 = sbr.rel (%p356) target = $region52
        $region51: #{tpu_custom_call.1} parent=47 // pred_region
          %360 = dma.done %s352, 64
        $region52: #{tpu_custom_call.1} parent=47 // pred_fallthru
          _
        %s361 = sand.u32 %s29, 1
        %s362 = scalar_lea.sflag [#allocation7], %s361
        %s363 = sand.u32 %s63, 1
        %s364 = smul.addr %s363, 4
        %s365 = scalar_lea.vmem [#allocation6], %s364
        // Predicated region
        $region53: #{tpu_custom_call.1} parent=47 // pred_check
          %p366 = pneg %p76
        $region54: #{tpu_custom_call.1} parent=47 // pred_check_branch
          %368 = sbr.rel (%p366) target = $region56
        $region55: #{tpu_custom_call.1} parent=47 // pred_region
          %370 = dma.done %s362, 64
        $region56: #{tpu_custom_call.1} parent=47 // pred_fallthru
          _
        %s371 = sand.u32 %s29, 1
        %s372 = scalar_lea.sflag [#allocation7], %s371
        %s373 = sand.u32 %s89, 1
        %s374 = smul.addr %s373, 4
        %s375 = scalar_lea.vmem [#allocation8], %s374
        // Predicated region
        $region57: #{tpu_custom_call.1} parent=47 // pred_check
          %p376 = pneg %p102
        $region58: #{tpu_custom_call.1} parent=47 // pred_check_branch
          %378 = sbr.rel (%p376) target = $region60
        $region59: #{tpu_custom_call.1} parent=47 // pred_region
          %380 = dma.done %s372, 64
        $region60: #{tpu_custom_call.1} parent=47 // pred_fallthru
          _
        // Predicated region
        $region61: #{tpu_custom_call.1} parent=47 // pred_check
          %p381 = pneg %p123
        $region62: #{tpu_custom_call.1} parent=47 // pred_check_branch
          %383 = sbr.rel (%p381) target = $region64
        $region63: #{tpu_custom_call.1} parent=47 // pred_region
          %385 = dma.done [#allocation10], 4096
        $region64: #{tpu_custom_call.1} parent=47 // pred_fallthru
          _
        // Predicated region
        $region65: #{tpu_custom_call.1} parent=47 // pred_check
          %p386 = pneg %p144
        $region66: #{tpu_custom_call.1} parent=47 // pred_check_branch
          %388 = sbr.rel (%p386) target = $region68
        $region67: #{tpu_custom_call.1} parent=47 // pred_region
          %390 = dma.done [#allocation10], 4096
        $region68: #{tpu_custom_call.1} parent=47 // pred_fallthru
          _
        // Predicated region
        $region69: #{tpu_custom_call.1} parent=47 // pred_check
          %p391 = pneg %p165
        $region70: #{tpu_custom_call.1} parent=47 // pred_check_branch
          %393 = sbr.rel (%p391) target = $region72
        $region71: #{tpu_custom_call.1} parent=47 // pred_region
          %395 = dma.done [#allocation13], 4096
        $region72: #{tpu_custom_call.1} parent=47 // pred_fallthru
          _
        // Predicated region
        $region73: #{tpu_custom_call.1} parent=47 // pred_check
          %p396 = pneg %p186
        $region74: #{tpu_custom_call.1} parent=47 // pred_check_branch
          %398 = sbr.rel (%p396) target = $region76
        $region75: #{tpu_custom_call.1} parent=47 // pred_region
          %400 = dma.done [#allocation13], 4096
        $region76: #{tpu_custom_call.1} parent=47 // pred_fallthru
          _
        %s401 = sand.u32 %s37, 1
        %s402 = scalar_lea.sflag [#allocation4], %s401
        %s403 = sand.u32 %s37, 1
        %s404 = smul.addr %s403, 4
        %s405 = scalar_lea.vmem [#allocation3], %s404
        %p406 = pneg %p50
        %p407 = pneg %p47
        %s408 = sand.u32 %s29, 1
        %s409 = scalar_lea.sflag [#allocation7], %s408
        %s410 = sand.u32 %s63, 1
        %s411 = smul.addr %s410, 4
        %s412 = scalar_lea.vmem [#allocation6], %s411
        %p413 = pneg %p76
        %p414 = pneg %p73
        %s415 = sand.u32 %s29, 1
        %s416 = scalar_lea.sflag [#allocation7], %s415
        %s417 = sand.u32 %s89, 1
        %s418 = smul.addr %s417, 4
        %s419 = scalar_lea.vmem [#allocation8], %s418
        %p420 = pneg %p102
        %p421 = pneg %p99
        %p422 = pneg %p123
        %p423 = pneg %p120
        %p424 = pneg %p144
        %p425 = pneg %p141
        %p426 = pneg %p165
        %p427 = pneg %p162
        %p428 = pneg %p186
        %p429 = pneg %p183
        %p430 = pneg %p212
        %p431 = pneg %p209
        %s432 = sand.u32 %s199, 1
        %s433 = scalar_lea.sflag [#allocation5], %s432
        %s434 = sand.u32 %s199, 1
        %s435 = smul.addr %s434, 8
        %s436 = scalar_lea.vmem [#allocation15], %s435
        %v438 = vld [vmem:[%s355] sm:$0xf]
        %v439 = vld [vmem:[%s365] sm:$0xf]
        %v440 = vld [vmem:[%s375] sm:$0xf]
        %v441 = vld [vmem:[#allocation9] sm:$0xff]
        %v442 = vld [vmem:[#allocation9 + $0x8] sm:$0xff]
        %v443 = vld [vmem:[#allocation9 + $0x10] sm:$0xff]
        %v444 = vld [vmem:[#allocation9 + $0x18] sm:$0xff]
        %v445 = vld [vmem:[#allocation9 + $0x20] sm:$0xff]
        %v446 = vld [vmem:[#allocation9 + $0x28] sm:$0xff]
        %v447 = vld [vmem:[#allocation9 + $0x30] sm:$0xff]
        %v448 = vld [vmem:[#allocation9 + $0x38] sm:$0xff]
        %v449 = vld [vmem:[#allocation9 + $0x40] sm:$0xff]
        %v450 = vld [vmem:[#allocation9 + $0x48] sm:$0xff]
        %v451 = vld [vmem:[#allocation9 + $0x50] sm:$0xff]
        %v452 = vld [vmem:[#allocation9 + $0x58] sm:$0xff]
        %v453 = vld [vmem:[#allocation9 + $0x60] sm:$0xff]
        %v454 = vld [vmem:[#allocation9 + $0x68] sm:$0xff]
        %v455 = vld [vmem:[#allocation9 + $0x70] sm:$0xff]
        %v456 = vld [vmem:[#allocation9 + $0x78] sm:$0xff]
        %v457 = vld [vmem:[#allocation9 + $0x80] sm:$0xff]
        %v458 = vld [vmem:[#allocation9 + $0x88] sm:$0xff]
        %v459 = vld [vmem:[#allocation9 + $0x90] sm:$0xff]
        %v460 = vld [vmem:[#allocation9 + $0x98] sm:$0xff]
        %v461 = vld [vmem:[#allocation9 + $0xa0] sm:$0xff]
        %v462 = vld [vmem:[#allocation9 + $0xa8] sm:$0xff]
        %v463 = vld [vmem:[#allocation9 + $0xb0] sm:$0xff]
        %v464 = vld [vmem:[#allocation9 + $0xb8] sm:$0xff]
        %v465 = vld [vmem:[#allocation9 + $0xc0] sm:$0xff]
        %v466 = vld [vmem:[#allocation9 + $0xc8] sm:$0xff]
        %v467 = vld [vmem:[#allocation9 + $0xd0] sm:$0xff]
        %v468 = vld [vmem:[#allocation9 + $0xd8] sm:$0xff]
        %v469 = vld [vmem:[#allocation9 + $0xe0] sm:$0xff]
        %v470 = vld [vmem:[#allocation9 + $0xe8] sm:$0xff]
        %v471 = vld [vmem:[#allocation9 + $0xf0] sm:$0xff]
        %v472 = vld [vmem:[#allocation9 + $0xf8] sm:$0xff]
        %v505 = vunpack.c.l.b16 %v441
        %v506 = vunpack.c.h.b16 %v441
        %v507 = vunpack.c.l.b16 %v442
        %v508 = vunpack.c.h.b16 %v442
        %v509 = vunpack.c.l.b16 %v443
        %v510 = vunpack.c.h.b16 %v443
        %v511 = vunpack.c.l.b16 %v444
        %v512 = vunpack.c.h.b16 %v444
        %v513 = vunpack.c.l.b16 %v445
        %v514 = vunpack.c.h.b16 %v445
        %v515 = vunpack.c.l.b16 %v446
        %v516 = vunpack.c.h.b16 %v446
        %v517 = vunpack.c.l.b16 %v447
        %v518 = vunpack.c.h.b16 %v447
        %v519 = vunpack.c.l.b16 %v448
        %v520 = vunpack.c.h.b16 %v448
        %v521 = vunpack.c.l.b16 %v449
        %v522 = vunpack.c.h.b16 %v449
        %v523 = vunpack.c.l.b16 %v450
        %v524 = vunpack.c.h.b16 %v450
        %v525 = vunpack.c.l.b16 %v451
        %v526 = vunpack.c.h.b16 %v451
        %v527 = vunpack.c.l.b16 %v452
        %v528 = vunpack.c.h.b16 %v452
        %v529 = vunpack.c.l.b16 %v453
        %v530 = vunpack.c.h.b16 %v453
        %v531 = vunpack.c.l.b16 %v454
        %v532 = vunpack.c.h.b16 %v454
        %v533 = vunpack.c.l.b16 %v455
        %v534 = vunpack.c.h.b16 %v455
        %v535 = vunpack.c.l.b16 %v456
        %v536 = vunpack.c.h.b16 %v456
        %v537 = vunpack.c.l.b16 %v457
        %v538 = vunpack.c.h.b16 %v457
        %v539 = vunpack.c.l.b16 %v458
        %v540 = vunpack.c.h.b16 %v458
        %v541 = vunpack.c.l.b16 %v459
        %v542 = vunpack.c.h.b16 %v459
        %v543 = vunpack.c.l.b16 %v460
        %v544 = vunpack.c.h.b16 %v460
        %v545 = vunpack.c.l.b16 %v461
        %v546 = vunpack.c.h.b16 %v461
        %v547 = vunpack.c.l.b16 %v462
        %v548 = vunpack.c.h.b16 %v462
        %v549 = vunpack.c.l.b16 %v463
        %v550 = vunpack.c.h.b16 %v463
        %v551 = vunpack.c.l.b16 %v464
        %v552 = vunpack.c.h.b16 %v464
        %v553 = vunpack.c.l.b16 %v465
        %v554 = vunpack.c.h.b16 %v465
        %v555 = vunpack.c.l.b16 %v466
        %v556 = vunpack.c.h.b16 %v466
        %v557 = vunpack.c.l.b16 %v467
        %v558 = vunpack.c.h.b16 %v467
        %v559 = vunpack.c.l.b16 %v468
        %v560 = vunpack.c.h.b16 %v468
        %v561 = vunpack.c.l.b16 %v469
        %v562 = vunpack.c.h.b16 %v469
        %v563 = vunpack.c.l.b16 %v470
        %v564 = vunpack.c.h.b16 %v470
        %v565 = vunpack.c.l.b16 %v471
        %v566 = vunpack.c.h.b16 %v471
        %v567 = vunpack.c.l.b16 %v472
        %v568 = vunpack.c.h.b16 %v472
        %v569 = vpack.c.b16 %v509, %v505
        %v570 = vpack.c.b16 %v510, %v506
        %v571 = vpack.c.b16 %v511, %v507
        %v572 = vpack.c.b16 %v512, %v508
        %v573 = vpack.c.b16 %v517, %v513
        %v574 = vpack.c.b16 %v518, %v514
        %v575 = vpack.c.b16 %v519, %v515
        %v576 = vpack.c.b16 %v520, %v516
        %v577 = vpack.c.b16 %v525, %v521
        %v578 = vpack.c.b16 %v526, %v522
        %v579 = vpack.c.b16 %v527, %v523
        %v580 = vpack.c.b16 %v528, %v524
        %v581 = vpack.c.b16 %v533, %v529
        %v582 = vpack.c.b16 %v534, %v530
        %v583 = vpack.c.b16 %v535, %v531
        %v584 = vpack.c.b16 %v536, %v532
        %v585 = vpack.c.b16 %v541, %v537
        %v586 = vpack.c.b16 %v542, %v538
        %v587 = vpack.c.b16 %v543, %v539
        %v588 = vpack.c.b16 %v544, %v540
        %v589 = vpack.c.b16 %v549, %v545
        %v590 = vpack.c.b16 %v550, %v546
        %v591 = vpack.c.b16 %v551, %v547
        %v592 = vpack.c.b16 %v552, %v548
        %v593 = vpack.c.b16 %v557, %v553
        %v594 = vpack.c.b16 %v558, %v554
        %v595 = vpack.c.b16 %v559, %v555
        %v596 = vpack.c.b16 %v560, %v556
        %v597 = vpack.c.b16 %v565, %v561
        %v598 = vpack.c.b16 %v566, %v562
        %v599 = vpack.c.b16 %v567, %v563
        %v600 = vpack.c.b16 %v568, %v564
        %633 = vmatpush.bf16.msra.mxu0 %v597
        %634 = vmatpush.bf16.msra.mxu0 %v593
        %635 = vmatpush.bf16.msra.mxu0 %v589
        %636 = vmatpush.bf16.msra.mxu0 %v585
        %637 = vmatpush.bf16.msra.mxu0 %v581
        %638 = vmatpush.bf16.msra.mxu0 %v577
        %639 = vmatpush.bf16.msra.mxu0 %v573
        %640 = vmatpush.bf16.msra.mxu0 %v569
        %641 = vmatmul.bf16.gmra.mxu0 %v438
        %v642 = vpop.f32.mrf.mxu0
        %v643 = vadd.f32 0.0, %v642
        %v644 = vpop.f32.mrf.mxu0
        %645 = vdwg.mxu0
        %646 = vmatpush.bf16.msra.mxu0 %v598
        %647 = vmatpush.bf16.msra.mxu0 %v594
        %648 = vmatpush.bf16.msra.mxu0 %v590
        %649 = vmatpush.bf16.msra.mxu0 %v586
        %650 = vmatpush.bf16.msra.mxu0 %v582
        %651 = vmatpush.bf16.msra.mxu0 %v578
        %652 = vmatpush.bf16.msra.mxu0 %v574
        %653 = vmatpush.bf16.msra.mxu0 %v570
        %654 = vmatmul.bf16.gmra.mxu0 %v438
        %v655 = vpop.f32.mrf.mxu0
        %v656 = vadd.f32 0.0, %v655
        %v657 = vpop.f32.mrf.mxu0
        %658 = vdwg.mxu0
        %659 = vmatpush.bf16.msra.mxu0 %v599
        %660 = vmatpush.bf16.msra.mxu0 %v595
        %661 = vmatpush.bf16.msra.mxu0 %v591
        %662 = vmatpush.bf16.msra.mxu0 %v587
        %663 = vmatpush.bf16.msra.mxu0 %v583
        %664 = vmatpush.bf16.msra.mxu0 %v579
        %665 = vmatpush.bf16.msra.mxu0 %v575
        %666 = vmatpush.bf16.msra.mxu0 %v571
        %667 = vmatmul.bf16.gmra.mxu0 %v438
        %v668 = vpop.f32.mrf.mxu0
        %v669 = vadd.f32 0.0, %v668
        %v670 = vpop.f32.mrf.mxu0
        %671 = vdwg.mxu0
        %672 = vmatpush.bf16.msra.mxu0 %v600
        %673 = vmatpush.bf16.msra.mxu0 %v596
        %674 = vmatpush.bf16.msra.mxu0 %v592
        %675 = vmatpush.bf16.msra.mxu0 %v588
        %676 = vmatpush.bf16.msra.mxu0 %v584
        %677 = vmatpush.bf16.msra.mxu0 %v580
        %678 = vmatpush.bf16.msra.mxu0 %v576
        %679 = vmatpush.bf16.msra.mxu0 %v572
        %680 = vmatmul.bf16.gmra.mxu0 %v438
        %v681 = vpop.f32.mrf.mxu0
        %v682 = vadd.f32 0.0, %v681
        %v683 = vpop.f32.mrf.mxu0
        %684 = vdwg.mxu0
        %v685 = vld [vmem:[#allocation11] sm:$0xff]
        %v686 = vld [vmem:[#allocation11 + $0x8] sm:$0xff]
        %v687 = vld [vmem:[#allocation11 + $0x10] sm:$0xff]
        %v688 = vld [vmem:[#allocation11 + $0x18] sm:$0xff]
        %v689 = vld [vmem:[#allocation11 + $0x20] sm:$0xff]
        %v690 = vld [vmem:[#allocation11 + $0x28] sm:$0xff]
        %v691 = vld [vmem:[#allocation11 + $0x30] sm:$0xff]
        %v692 = vld [vmem:[#allocation11 + $0x38] sm:$0xff]
        %v693 = vld [vmem:[#allocation11 + $0x40] sm:$0xff]
        %v694 = vld [vmem:[#allocation11 + $0x48] sm:$0xff]
        %v695 = vld [vmem:[#allocation11 + $0x50] sm:$0xff]
        %v696 = vld [vmem:[#allocation11 + $0x58] sm:$0xff]
        %v697 = vld [vmem:[#allocation11 + $0x60] sm:$0xff]
        %v698 = vld [vmem:[#allocation11 + $0x68] sm:$0xff]
        %v699 = vld [vmem:[#allocation11 + $0x70] sm:$0xff]
        %v700 = vld [vmem:[#allocation11 + $0x78] sm:$0xff]
        %v701 = vld [vmem:[#allocation11 + $0x80] sm:$0xff]
        %v702 = vld [vmem:[#allocation11 + $0x88] sm:$0xff]
        %v703 = vld [vmem:[#allocation11 + $0x90] sm:$0xff]
        %v704 = vld [vmem:[#allocation11 + $0x98] sm:$0xff]
        %v705 = vld [vmem:[#allocation11 + $0xa0] sm:$0xff]
        %v706 = vld [vmem:[#allocation11 + $0xa8] sm:$0xff]
        %v707 = vld [vmem:[#allocation11 + $0xb0] sm:$0xff]
        %v708 = vld [vmem:[#allocation11 + $0xb8] sm:$0xff]
        %v709 = vld [vmem:[#allocation11 + $0xc0] sm:$0xff]
        %v710 = vld [vmem:[#allocation11 + $0xc8] sm:$0xff]
        %v711 = vld [vmem:[#allocation11 + $0xd0] sm:$0xff]
        %v712 = vld [vmem:[#allocation11 + $0xd8] sm:$0xff]
        %v713 = vld [vmem:[#allocation11 + $0xe0] sm:$0xff]
        %v714 = vld [vmem:[#allocation11 + $0xe8] sm:$0xff]
        %v715 = vld [vmem:[#allocation11 + $0xf0] sm:$0xff]
        %v716 = vld [vmem:[#allocation11 + $0xf8] sm:$0xff]
        %v749 = vunpack.c.l.b16 %v685
        %v750 = vunpack.c.h.b16 %v685
        %v751 = vunpack.c.l.b16 %v686
        %v752 = vunpack.c.h.b16 %v686
        %v753 = vunpack.c.l.b16 %v687
        %v754 = vunpack.c.h.b16 %v687
        %v755 = vunpack.c.l.b16 %v688
        %v756 = vunpack.c.h.b16 %v688
        %v757 = vunpack.c.l.b16 %v689
        %v758 = vunpack.c.h.b16 %v689
        %v759 = vunpack.c.l.b16 %v690
        %v760 = vunpack.c.h.b16 %v690
        %v761 = vunpack.c.l.b16 %v691
        %v762 = vunpack.c.h.b16 %v691
        %v763 = vunpack.c.l.b16 %v692
        %v764 = vunpack.c.h.b16 %v692
        %v765 = vunpack.c.l.b16 %v693
        %v766 = vunpack.c.h.b16 %v693
        %v767 = vunpack.c.l.b16 %v694
        %v768 = vunpack.c.h.b16 %v694
        %v769 = vunpack.c.l.b16 %v695
        %v770 = vunpack.c.h.b16 %v695
        %v771 = vunpack.c.l.b16 %v696
        %v772 = vunpack.c.h.b16 %v696
        %v773 = vunpack.c.l.b16 %v697
        %v774 = vunpack.c.h.b16 %v697
        %v775 = vunpack.c.l.b16 %v698
        %v776 = vunpack.c.h.b16 %v698
        %v777 = vunpack.c.l.b16 %v699
        %v778 = vunpack.c.h.b16 %v699
        %v779 = vunpack.c.l.b16 %v700
        %v780 = vunpack.c.h.b16 %v700
        %v781 = vunpack.c.l.b16 %v701
        %v782 = vunpack.c.h.b16 %v701
        %v783 = vunpack.c.l.b16 %v702
        %v784 = vunpack.c.h.b16 %v702
        %v785 = vunpack.c.l.b16 %v703
        %v786 = vunpack.c.h.b16 %v703
        %v787 = vunpack.c.l.b16 %v704
        %v788 = vunpack.c.h.b16 %v704
        %v789 = vunpack.c.l.b16 %v705
        %v790 = vunpack.c.h.b16 %v705
        %v791 = vunpack.c.l.b16 %v706
        %v792 = vunpack.c.h.b16 %v706
        %v793 = vunpack.c.l.b16 %v707
        %v794 = vunpack.c.h.b16 %v707
        %v795 = vunpack.c.l.b16 %v708
        %v796 = vunpack.c.h.b16 %v708
        %v797 = vunpack.c.l.b16 %v709
        %v798 = vunpack.c.h.b16 %v709
        %v799 = vunpack.c.l.b16 %v710
        %v800 = vunpack.c.h.b16 %v710
        %v801 = vunpack.c.l.b16 %v711
        %v802 = vunpack.c.h.b16 %v711
        %v803 = vunpack.c.l.b16 %v712
        %v804 = vunpack.c.h.b16 %v712
        %v805 = vunpack.c.l.b16 %v713
        %v806 = vunpack.c.h.b16 %v713
        %v807 = vunpack.c.l.b16 %v714
        %v808 = vunpack.c.h.b16 %v714
        %v809 = vunpack.c.l.b16 %v715
        %v810 = vunpack.c.h.b16 %v715
        %v811 = vunpack.c.l.b16 %v716
        %v812 = vunpack.c.h.b16 %v716
        %v813 = vpack.c.b16 %v753, %v749
        %v814 = vpack.c.b16 %v754, %v750
        %v815 = vpack.c.b16 %v755, %v751
        %v816 = vpack.c.b16 %v756, %v752
        %v817 = vpack.c.b16 %v761, %v757
        %v818 = vpack.c.b16 %v762, %v758
        %v819 = vpack.c.b16 %v763, %v759
        %v820 = vpack.c.b16 %v764, %v760
        %v821 = vpack.c.b16 %v769, %v765
        %v822 = vpack.c.b16 %v770, %v766
        %v823 = vpack.c.b16 %v771, %v767
        %v824 = vpack.c.b16 %v772, %v768
        %v825 = vpack.c.b16 %v777, %v773
        %v826 = vpack.c.b16 %v778, %v774
        %v827 = vpack.c.b16 %v779, %v775
        %v828 = vpack.c.b16 %v780, %v776
        %v829 = vpack.c.b16 %v785, %v781
        %v830 = vpack.c.b16 %v786, %v782
        %v831 = vpack.c.b16 %v787, %v783
        %v832 = vpack.c.b16 %v788, %v784
        %v833 = vpack.c.b16 %v793, %v789
        %v834 = vpack.c.b16 %v794, %v790
        %v835 = vpack.c.b16 %v795, %v791
        %v836 = vpack.c.b16 %v796, %v792
        %v837 = vpack.c.b16 %v801, %v797
        %v838 = vpack.c.b16 %v802, %v798
        %v839 = vpack.c.b16 %v803, %v799
        %v840 = vpack.c.b16 %v804, %v800
        %v841 = vpack.c.b16 %v809, %v805
        %v842 = vpack.c.b16 %v810, %v806
        %v843 = vpack.c.b16 %v811, %v807
        %v844 = vpack.c.b16 %v812, %v808
        %877 = vmatpush.bf16.msra.mxu0 %v841
        %878 = vmatpush.bf16.msra.mxu0 %v837
        %879 = vmatpush.bf16.msra.mxu0 %v833
        %880 = vmatpush.bf16.msra.mxu0 %v829
        %881 = vmatpush.bf16.msra.mxu0 %v825
        %882 = vmatpush.bf16.msra.mxu0 %v821
        %883 = vmatpush.bf16.msra.mxu0 %v817
        %884 = vmatpush.bf16.msra.mxu0 %v813
        %885 = vmatmul.bf16.gmra.mxu0 %v439
        %v886 = vpop.f32.mrf.mxu0
        %v887 = vadd.f32 0.0, %v886
        %v888 = vpop.f32.mrf.mxu0
        %889 = vdwg.mxu0
        %890 = vmatpush.bf16.msra.mxu0 %v842
        %891 = vmatpush.bf16.msra.mxu0 %v838
        %892 = vmatpush.bf16.msra.mxu0 %v834
        %893 = vmatpush.bf16.msra.mxu0 %v830
        %894 = vmatpush.bf16.msra.mxu0 %v826
        %895 = vmatpush.bf16.msra.mxu0 %v822
        %896 = vmatpush.bf16.msra.mxu0 %v818
        %897 = vmatpush.bf16.msra.mxu0 %v814
        %898 = vmatmul.bf16.gmra.mxu0 %v439
        %v899 = vpop.f32.mrf.mxu0
        %v900 = vadd.f32 0.0, %v899
        %v901 = vpop.f32.mrf.mxu0
        %902 = vdwg.mxu0
        %903 = vmatpush.bf16.msra.mxu0 %v843
        %904 = vmatpush.bf16.msra.mxu0 %v839
        %905 = vmatpush.bf16.msra.mxu0 %v835
        %906 = vmatpush.bf16.msra.mxu0 %v831
        %907 = vmatpush.bf16.msra.mxu0 %v827
        %908 = vmatpush.bf16.msra.mxu0 %v823
        %909 = vmatpush.bf16.msra.mxu0 %v819
        %910 = vmatpush.bf16.msra.mxu0 %v815
        %911 = vmatmul.bf16.gmra.mxu0 %v439
        %v912 = vpop.f32.mrf.mxu0
        %v913 = vadd.f32 0.0, %v912
        %v914 = vpop.f32.mrf.mxu0
        %915 = vdwg.mxu0
        %916 = vmatpush.bf16.msra.mxu0 %v844
        %917 = vmatpush.bf16.msra.mxu0 %v840
        %918 = vmatpush.bf16.msra.mxu0 %v836
        %919 = vmatpush.bf16.msra.mxu0 %v832
        %920 = vmatpush.bf16.msra.mxu0 %v828
        %921 = vmatpush.bf16.msra.mxu0 %v824
        %922 = vmatpush.bf16.msra.mxu0 %v820
        %923 = vmatpush.bf16.msra.mxu0 %v816
        %924 = vmatmul.bf16.gmra.mxu0 %v439
        %v925 = vpop.f32.mrf.mxu0
        %v926 = vadd.f32 0.0, %v925
        %v927 = vpop.f32.mrf.mxu0
        %928 = vdwg.mxu0
        %v929 = vld [vmem:[#allocation12] sm:$0xff]
        %v930 = vld [vmem:[#allocation12 + $0x8] sm:$0xff]
        %v931 = vld [vmem:[#allocation12 + $0x10] sm:$0xff]
        %v932 = vld [vmem:[#allocation12 + $0x18] sm:$0xff]
        %v933 = vld [vmem:[#allocation12 + $0x20] sm:$0xff]
        %v934 = vld [vmem:[#allocation12 + $0x28] sm:$0xff]
        %v935 = vld [vmem:[#allocation12 + $0x30] sm:$0xff]
        %v936 = vld [vmem:[#allocation12 + $0x38] sm:$0xff]
        %v937 = vld [vmem:[#allocation12 + $0x40] sm:$0xff]
        %v938 = vld [vmem:[#allocation12 + $0x48] sm:$0xff]
        %v939 = vld [vmem:[#allocation12 + $0x50] sm:$0xff]
        %v940 = vld [vmem:[#allocation12 + $0x58] sm:$0xff]
        %v941 = vld [vmem:[#allocation12 + $0x60] sm:$0xff]
        %v942 = vld [vmem:[#allocation12 + $0x68] sm:$0xff]
        %v943 = vld [vmem:[#allocation12 + $0x70] sm:$0xff]
        %v944 = vld [vmem:[#allocation12 + $0x78] sm:$0xff]
        %v945 = vld [vmem:[#allocation12 + $0x80] sm:$0xff]
        %v946 = vld [vmem:[#allocation12 + $0x88] sm:$0xff]
        %v947 = vld [vmem:[#allocation12 + $0x90] sm:$0xff]
        %v948 = vld [vmem:[#allocation12 + $0x98] sm:$0xff]
        %v949 = vld [vmem:[#allocation12 + $0xa0] sm:$0xff]
        %v950 = vld [vmem:[#allocation12 + $0xa8] sm:$0xff]
        %v951 = vld [vmem:[#allocation12 + $0xb0] sm:$0xff]
        %v952 = vld [vmem:[#allocation12 + $0xb8] sm:$0xff]
        %v953 = vld [vmem:[#allocation12 + $0xc0] sm:$0xff]
        %v954 = vld [vmem:[#allocation12 + $0xc8] sm:$0xff]
        %v955 = vld [vmem:[#allocation12 + $0xd0] sm:$0xff]
        %v956 = vld [vmem:[#allocation12 + $0xd8] sm:$0xff]
        %v957 = vld [vmem:[#allocation12 + $0xe0] sm:$0xff]
        %v958 = vld [vmem:[#allocation12 + $0xe8] sm:$0xff]
        %v959 = vld [vmem:[#allocation12 + $0xf0] sm:$0xff]
        %v960 = vld [vmem:[#allocation12 + $0xf8] sm:$0xff]
        %v993 = vunpack.c.l.b16 %v929
        %v994 = vunpack.c.h.b16 %v929
        %v995 = vunpack.c.l.b16 %v930
        %v996 = vunpack.c.h.b16 %v930
        %v997 = vunpack.c.l.b16 %v931
        %v998 = vunpack.c.h.b16 %v931
        %v999 = vunpack.c.l.b16 %v932
        %v1000 = vunpack.c.h.b16 %v932
        %v1001 = vunpack.c.l.b16 %v933
        %v1002 = vunpack.c.h.b16 %v933
        %v1003 = vunpack.c.l.b16 %v934
        %v1004 = vunpack.c.h.b16 %v934
        %v1005 = vunpack.c.l.b16 %v935
        %v1006 = vunpack.c.h.b16 %v935
        %v1007 = vunpack.c.l.b16 %v936
        %v1008 = vunpack.c.h.b16 %v936
        %v1009 = vunpack.c.l.b16 %v937
        %v1010 = vunpack.c.h.b16 %v937
        %v1011 = vunpack.c.l.b16 %v938
        %v1012 = vunpack.c.h.b16 %v938
        %v1013 = vunpack.c.l.b16 %v939
        %v1014 = vunpack.c.h.b16 %v939
        %v1015 = vunpack.c.l.b16 %v940
        %v1016 = vunpack.c.h.b16 %v940
        %v1017 = vunpack.c.l.b16 %v941
        %v1018 = vunpack.c.h.b16 %v941
        %v1019 = vunpack.c.l.b16 %v942
        %v1020 = vunpack.c.h.b16 %v942
        %v1021 = vunpack.c.l.b16 %v943
        %v1022 = vunpack.c.h.b16 %v943
        %v1023 = vunpack.c.l.b16 %v944
        %v1024 = vunpack.c.h.b16 %v944
        %v1025 = vunpack.c.l.b16 %v945
        %v1026 = vunpack.c.h.b16 %v945
        %v1027 = vunpack.c.l.b16 %v946
        %v1028 = vunpack.c.h.b16 %v946
        %v1029 = vunpack.c.l.b16 %v947
        %v1030 = vunpack.c.h.b16 %v947
        %v1031 = vunpack.c.l.b16 %v948
        %v1032 = vunpack.c.h.b16 %v948
        %v1033 = vunpack.c.l.b16 %v949
        %v1034 = vunpack.c.h.b16 %v949
        %v1035 = vunpack.c.l.b16 %v950
        %v1036 = vunpack.c.h.b16 %v950
        %v1037 = vunpack.c.l.b16 %v951
        %v1038 = vunpack.c.h.b16 %v951
        %v1039 = vunpack.c.l.b16 %v952
        %v1040 = vunpack.c.h.b16 %v952
        %v1041 = vunpack.c.l.b16 %v953
        %v1042 = vunpack.c.h.b16 %v953
        %v1043 = vunpack.c.l.b16 %v954
        %v1044 = vunpack.c.h.b16 %v954
        %v1045 = vunpack.c.l.b16 %v955
        %v1046 = vunpack.c.h.b16 %v955
        %v1047 = vunpack.c.l.b16 %v956
        %v1048 = vunpack.c.h.b16 %v956
        %v1049 = vunpack.c.l.b16 %v957
        %v1050 = vunpack.c.h.b16 %v957
        %v1051 = vunpack.c.l.b16 %v958
        %v1052 = vunpack.c.h.b16 %v958
        %v1053 = vunpack.c.l.b16 %v959
        %v1054 = vunpack.c.h.b16 %v959
        %v1055 = vunpack.c.l.b16 %v960
        %v1056 = vunpack.c.h.b16 %v960
        %v1057 = vpack.c.b16 %v997, %v993
        %v1058 = vpack.c.b16 %v998, %v994
        %v1059 = vpack.c.b16 %v999, %v995
        %v1060 = vpack.c.b16 %v1000, %v996
        %v1061 = vpack.c.b16 %v1005, %v1001
        %v1062 = vpack.c.b16 %v1006, %v1002
        %v1063 = vpack.c.b16 %v1007, %v1003
        %v1064 = vpack.c.b16 %v1008, %v1004
        %v1065 = vpack.c.b16 %v1013, %v1009
        %v1066 = vpack.c.b16 %v1014, %v1010
        %v1067 = vpack.c.b16 %v1015, %v1011
        %v1068 = vpack.c.b16 %v1016, %v1012
        %v1069 = vpack.c.b16 %v1021, %v1017
        %v1070 = vpack.c.b16 %v1022, %v1018
        %v1071 = vpack.c.b16 %v1023, %v1019
        %v1072 = vpack.c.b16 %v1024, %v1020
        %v1073 = vpack.c.b16 %v1029, %v1025
        %v1074 = vpack.c.b16 %v1030, %v1026
        %v1075 = vpack.c.b16 %v1031, %v1027
        %v1076 = vpack.c.b16 %v1032, %v1028
        %v1077 = vpack.c.b16 %v1037, %v1033
        %v1078 = vpack.c.b16 %v1038, %v1034
        %v1079 = vpack.c.b16 %v1039, %v1035
        %v1080 = vpack.c.b16 %v1040, %v1036
        %v1081 = vpack.c.b16 %v1045, %v1041
        %v1082 = vpack.c.b16 %v1046, %v1042
        %v1083 = vpack.c.b16 %v1047, %v1043
        %v1084 = vpack.c.b16 %v1048, %v1044
        %v1085 = vpack.c.b16 %v1053, %v1049
        %v1086 = vpack.c.b16 %v1054, %v1050
        %v1087 = vpack.c.b16 %v1055, %v1051
        %v1088 = vpack.c.b16 %v1056, %v1052
        %1121 = vmatpush.bf16.msra.mxu0 %v1085
        %1122 = vmatpush.bf16.msra.mxu0 %v1081
        %1123 = vmatpush.bf16.msra.mxu0 %v1077
        %1124 = vmatpush.bf16.msra.mxu0 %v1073
        %1125 = vmatpush.bf16.msra.mxu0 %v1069
        %1126 = vmatpush.bf16.msra.mxu0 %v1065
        %1127 = vmatpush.bf16.msra.mxu0 %v1061
        %1128 = vmatpush.bf16.msra.mxu0 %v1057
        %1129 = vmatmul.bf16.gmra.mxu0 %v440
        %v1130 = vpop.f32.mrf.mxu0
        %v1131 = vadd.f32 0.0, %v1130
        %v1132 = vpop.f32.mrf.mxu0
        %1133 = vdwg.mxu0
        %1134 = vmatpush.bf16.msra.mxu0 %v1086
        %1135 = vmatpush.bf16.msra.mxu0 %v1082
        %1136 = vmatpush.bf16.msra.mxu0 %v1078
        %1137 = vmatpush.bf16.msra.mxu0 %v1074
        %1138 = vmatpush.bf16.msra.mxu0 %v1070
        %1139 = vmatpush.bf16.msra.mxu0 %v1066
        %1140 = vmatpush.bf16.msra.mxu0 %v1062
        %1141 = vmatpush.bf16.msra.mxu0 %v1058
        %1142 = vmatmul.bf16.gmra.mxu0 %v440
        %v1143 = vpop.f32.mrf.mxu0
        %v1144 = vadd.f32 0.0, %v1143
        %v1145 = vpop.f32.mrf.mxu0
        %1146 = vdwg.mxu0
        %1147 = vmatpush.bf16.msra.mxu0 %v1087
        %1148 = vmatpush.bf16.msra.mxu0 %v1083
        %1149 = vmatpush.bf16.msra.mxu0 %v1079
        %1150 = vmatpush.bf16.msra.mxu0 %v1075
        %1151 = vmatpush.bf16.msra.mxu0 %v1071
        %1152 = vmatpush.bf16.msra.mxu0 %v1067
        %1153 = vmatpush.bf16.msra.mxu0 %v1063
        %1154 = vmatpush.bf16.msra.mxu0 %v1059
        %1155 = vmatmul.bf16.gmra.mxu0 %v440
        %v1156 = vpop.f32.mrf.mxu0
        %v1157 = vadd.f32 0.0, %v1156
        %v1158 = vpop.f32.mrf.mxu0
        %1159 = vdwg.mxu0
        %1160 = vmatpush.bf16.msra.mxu0 %v1088
        %1161 = vmatpush.bf16.msra.mxu0 %v1084
        %1162 = vmatpush.bf16.msra.mxu0 %v1080
        %1163 = vmatpush.bf16.msra.mxu0 %v1076
        %1164 = vmatpush.bf16.msra.mxu0 %v1072
        %1165 = vmatpush.bf16.msra.mxu0 %v1068
        %1166 = vmatpush.bf16.msra.mxu0 %v1064
        %1167 = vmatpush.bf16.msra.mxu0 %v1060
        %1168 = vmatmul.bf16.gmra.mxu0 %v440
        %v1169 = vpop.f32.mrf.mxu0
        %v1170 = vadd.f32 0.0, %v1169
        %v1171 = vpop.f32.mrf.mxu0
        %1172 = vdwg.mxu0
        %v1173 = vpack.c.bf16 %v656, %v643
        %v1174 = vpack.c.bf16 %v682, %v669
        %v1175 = vpack.c.bf16 %v900, %v887
        %v1176 = vpack.c.bf16 %v926, %v913
        %v1177 = vpack.c.bf16 %v1144, %v1131
        %v1178 = vpack.c.bf16 %v1170, %v1157
        %1179 = vmatpush.bf16.xpose.msra.mxu0 0
        %1180 = vmatpush.bf16.xpose.msra.mxu0 0
        %1181 = vmatpush.bf16.xpose.msra.mxu0 0
        %1182 = vmatpush.bf16.xpose.msra.mxu0 0
        %1183 = vmatpush.bf16.xpose.msra.mxu0 0
        %1184 = vmatpush.bf16.xpose.msra.mxu0 0
        %1185 = vmatpush.bf16.xpose.msra.mxu0 0
        %1186 = vmatpush.bf16.xpose.msra.mxu0 %v1175
        %1187 = vmatmul.bf16.gmra.mxu0 %v1173
        %v1188 = vpop.f32.mrf.mxu0
        %v1189 = vadd.f32 0.0, %v1188
        %v1190 = vpop.f32.mrf.mxu0
        %1191 = vdwg.mxu0
        %vm1192 = vcmask 64512
        %v1193 = vsel %vm1192, %v1189, -inf
        %1194 = vmax.xlane.f32.xlu0 %v1193
        %v1195 = vpop.xlane.xlu0 %1194
        %v1196 = vsub.f32 %v1189, %v1195
        %v1197 = vmul.f32 %v1196, 1.442695
        %v1198 = vpow.pop %v1197
        %v1199 = vsel %vm1192, %v1198, 0.0
        %1200 = vadd.xlane.f32.xlu0 %v1199
        %v1201 = vpop.xlane.xlu0 %1200
        %v1202 = vpack.c.bf16 %v1198, %v1198
        %v1204 = vsel %vm1192, %v1202, 0
        %vm1206 = vcmask 1043456
        %v1208 = vsel %vm1206, %v1177, 0
        %1210 = vmatpush.bf16.msra.mxu0 0
        %1211 = vmatpush.bf16.msra.mxu0 0
        %1212 = vmatpush.bf16.msra.mxu0 0
        %1213 = vmatpush.bf16.msra.mxu0 0
        %1214 = vmatpush.bf16.msra.mxu0 0
        %1215 = vmatpush.bf16.msra.mxu0 0
        %1216 = vmatpush.bf16.msra.mxu0 0
        %1217 = vmatpush.bf16.msra.mxu0 %v1208
        %1218 = vmatmul.bf16.gmra.mxu0 %v1204
        %v1219 = vpop.f32.mrf.mxu0
        %v1220 = vadd.f32 0.0, %v1219
        %v1221 = vpop.f32.mrf.mxu0
        %1222 = vdwg.mxu0
        %v1223 = vrcp.pop %v1201
        %v1224 = vmul.f32 %v1220, %v1223
        %v1225 = vpack.c.bf16 %v1224, %v1224
        %1226 = vst [vmem:[#allocation2] sm:$0xf] %v1225
        %v1228 = vunpack.c.h.b16 %v1173
        %v1229 = vpack.c.b16 %v1228, %v1228
        %v1232 = vunpack.c.h.b16 %v1175
        %v1233 = vpack.c.b16 %v1232, %v1232
        %1235 = vmatpush.bf16.xpose.msra.mxu0 0
        %1236 = vmatpush.bf16.xpose.msra.mxu0 0
        %1237 = vmatpush.bf16.xpose.msra.mxu0 0
        %1238 = vmatpush.bf16.xpose.msra.mxu0 0
        %1239 = vmatpush.bf16.xpose.msra.mxu0 0
        %1240 = vmatpush.bf16.xpose.msra.mxu0 0
        %1241 = vmatpush.bf16.xpose.msra.mxu0 0
        %1242 = vmatpush.bf16.xpose.msra.mxu0 %v1233
        %1243 = vmatmul.bf16.gmra.mxu0 %v1229
        %v1244 = vpop.f32.mrf.mxu0
        %v1245 = vadd.f32 0.0, %v1244
        %v1246 = vpop.f32.mrf.mxu0
        %1247 = vdwg.mxu0
        %v1248 = vsel %vm1192, %v1245, -inf
        %1249 = vmax.xlane.f32.xlu0 %v1248
        %v1250 = vpop.xlane.xlu0 %1249
        %v1251 = vsub.f32 %v1245, %v1250
        %v1252 = vmul.f32 %v1251, 1.442695
        %v1253 = vpow.pop %v1252
        %v1254 = vsel %vm1192, %v1253, 0.0
        %1255 = vadd.xlane.f32.xlu0 %v1254
        %v1256 = vpop.xlane.xlu0 %1255
        %v1257 = vpack.c.bf16 %v1253, %v1253
        %v1259 = vunpack.c.h.b16 %v1177
        %v1260 = vpack.c.b16 %v1259, %v1259
        %v1262 = vsel %vm1192, %v1257, 0
        %v1265 = vsel %vm1206, %v1260, 0
        %1267 = vmatpush.bf16.msra.mxu0 0
        %1268 = vmatpush.bf16.msra.mxu0 0
        %1269 = vmatpush.bf16.msra.mxu0 0
        %1270 = vmatpush.bf16.msra.mxu0 0
        %1271 = vmatpush.bf16.msra.mxu0 0
        %1272 = vmatpush.bf16.msra.mxu0 0
        %1273 = vmatpush.bf16.msra.mxu0 0
        %1274 = vmatpush.bf16.msra.mxu0 %v1265
        %1275 = vmatmul.bf16.gmra.mxu0 %v1262
        %v1276 = vpop.f32.mrf.mxu0
        %v1277 = vadd.f32 0.0, %v1276
        %v1278 = vpop.f32.mrf.mxu0
        %1279 = vdwg.mxu0
        %v1280 = vrcp.pop %v1256
        %v1281 = vmul.f32 %v1277, %v1280
        %v1282 = vpack.c.bf16 %v1281, %v1281
        %1283 = vst [vmem:[#allocation2 + $0x4] sm:$0xf] %v1282
        %1284 = vmatpush.bf16.xpose.msra.mxu0 0
        %1285 = vmatpush.bf16.xpose.msra.mxu0 0
        %1286 = vmatpush.bf16.xpose.msra.mxu0 0
        %1287 = vmatpush.bf16.xpose.msra.mxu0 0
        %1288 = vmatpush.bf16.xpose.msra.mxu0 0
        %1289 = vmatpush.bf16.xpose.msra.mxu0 0
        %1290 = vmatpush.bf16.xpose.msra.mxu0 0
        %1291 = vmatpush.bf16.xpose.msra.mxu0 %v1176
        %1292 = vmatmul.bf16.gmra.mxu0 %v1174
        %v1293 = vpop.f32.mrf.mxu0
        %v1294 = vadd.f32 0.0, %v1293
        %v1295 = vpop.f32.mrf.mxu0
        %1296 = vdwg.mxu0
        %v1297 = vsel %vm1192, %v1294, -inf
        %1298 = vmax.xlane.f32.xlu0 %v1297
        %v1299 = vpop.xlane.xlu0 %1298
        %v1300 = vsub.f32 %v1294, %v1299
        %v1301 = vmul.f32 %v1300, 1.442695
        %v1302 = vpow.pop %v1301
        %v1303 = vsel %vm1192, %v1302, 0.0
        %1304 = vadd.xlane.f32.xlu0 %v1303
        %v1305 = vpop.xlane.xlu0 %1304
        %v1306 = vpack.c.bf16 %v1302, %v1302
        %v1308 = vsel %vm1192, %v1306, 0
        %v1311 = vsel %vm1206, %v1178, 0
        %1313 = vmatpush.bf16.msra.mxu0 0
        %1314 = vmatpush.bf16.msra.mxu0 0
        %1315 = vmatpush.bf16.msra.mxu0 0
        %1316 = vmatpush.bf16.msra.mxu0 0
        %1317 = vmatpush.bf16.msra.mxu0 0
        %1318 = vmatpush.bf16.msra.mxu0 0
        %1319 = vmatpush.bf16.msra.mxu0 0
        %1320 = vmatpush.bf16.msra.mxu0 %v1311
        %1321 = vmatmul.bf16.gmra.mxu0 %v1308
        %v1322 = vpop.f32.mrf.mxu0
        %v1323 = vadd.f32 0.0, %v1322
        %v1324 = vpop.f32.mrf.mxu0
        %1325 = vdwg.mxu0
        %v1326 = vrcp.pop %v1305
        %v1327 = vmul.f32 %v1323, %v1326
        %v1328 = vpack.c.bf16 %v1327, %v1327
        %1329 = vst [vmem:[#allocation2 + $0x8] sm:$0xf] %v1328
        %v1331 = vunpack.c.h.b16 %v1174
        %v1332 = vpack.c.b16 %v1331, %v1331
        %v1335 = vunpack.c.h.b16 %v1176
        %v1336 = vpack.c.b16 %v1335, %v1335
        %1338 = vmatpush.bf16.xpose.msra.mxu0 0
        %1339 = vmatpush.bf16.xpose.msra.mxu0 0
        %1340 = vmatpush.bf16.xpose.msra.mxu0 0
        %1341 = vmatpush.bf16.xpose.msra.mxu0 0
        %1342 = vmatpush.bf16.xpose.msra.mxu0 0
        %1343 = vmatpush.bf16.xpose.msra.mxu0 0
        %1344 = vmatpush.bf16.xpose.msra.mxu0 0
        %1345 = vmatpush.bf16.xpose.msra.mxu0 %v1336
        %1346 = vmatmul.bf16.gmra.mxu0 %v1332
        %v1347 = vpop.f32.mrf.mxu0
        %v1348 = vadd.f32 0.0, %v1347
        %v1349 = vpop.f32.mrf.mxu0
        %1350 = vdwg.mxu0
        %v1351 = vsel %vm1192, %v1348, -inf
        %1352 = vmax.xlane.f32.xlu0 %v1351
        %v1353 = vpop.xlane.xlu0 %1352
        %v1354 = vsub.f32 %v1348, %v1353
        %v1355 = vmul.f32 %v1354, 1.442695
        %v1356 = vpow.pop %v1355
        %v1357 = vsel %vm1192, %v1356, 0.0
        %1358 = vadd.xlane.f32.xlu0 %v1357
        %v1359 = vpop.xlane.xlu0 %1358
        %v1360 = vpack.c.bf16 %v1356, %v1356
        %v1362 = vunpack.c.h.b16 %v1178
        %v1363 = vpack.c.b16 %v1362, %v1362
        %v1365 = vsel %vm1192, %v1360, 0
        %v1368 = vsel %vm1206, %v1363, 0
        %1370 = vmatpush.bf16.msra.mxu0 0
        %1371 = vmatpush.bf16.msra.mxu0 0
        %1372 = vmatpush.bf16.msra.mxu0 0
        %1373 = vmatpush.bf16.msra.mxu0 0
        %1374 = vmatpush.bf16.msra.mxu0 0
        %1375 = vmatpush.bf16.msra.mxu0 0
        %1376 = vmatpush.bf16.msra.mxu0 0
        %1377 = vmatpush.bf16.msra.mxu0 %v1368
        %1378 = vmatmul.bf16.gmra.mxu0 %v1365
        %v1379 = vpop.f32.mrf.mxu0
        %v1380 = vadd.f32 0.0, %v1379
        %v1381 = vpop.f32.mrf.mxu0
        %1382 = vdwg.mxu0
        %v1383 = vrcp.pop %v1359
        %v1384 = vmul.f32 %v1380, %v1383
        %v1385 = vpack.c.bf16 %v1384, %v1384
        %1386 = vst [vmem:[#allocation2 + $0xc] sm:$0xf] %v1385
        %v1387 = vld [vmem:[#allocation2] sm:$0xff]
        %v1388 = vld [vmem:[#allocation2 + $0x8] sm:$0xff]
        %v1389 = vld [vmem:[#allocation14] sm:$0xf]
        %v1390 = vld [vmem:[#allocation14 + $0x4] sm:$0xf]
        %v1391 = vld [vmem:[#allocation14 + $0x8] sm:$0xf]
        %v1392 = vld [vmem:[#allocation14 + $0xc] sm:$0xf]
        %v1393 = vld [vmem:[#allocation14 + $0x10] sm:$0xf]
        %v1394 = vld [vmem:[#allocation14 + $0x14] sm:$0xf]
        %v1395 = vld [vmem:[#allocation14 + $0x18] sm:$0xf]
        %v1396 = vld [vmem:[#allocation14 + $0x1c] sm:$0xf]
        %v1397 = vld [vmem:[#allocation14 + $0x20] sm:$0xf]
        %v1398 = vld [vmem:[#allocation14 + $0x24] sm:$0xf]
        %v1399 = vld [vmem:[#allocation14 + $0x28] sm:$0xf]
        %v1400 = vld [vmem:[#allocation14 + $0x2c] sm:$0xf]
        %v1401 = vld [vmem:[#allocation14 + $0x30] sm:$0xf]
        %v1402 = vld [vmem:[#allocation14 + $0x34] sm:$0xf]
        %v1403 = vld [vmem:[#allocation14 + $0x38] sm:$0xf]
        %v1404 = vld [vmem:[#allocation14 + $0x3c] sm:$0xf]
        %v1405 = vld [vmem:[#allocation14 + $0x40] sm:$0xf]
        %v1406 = vld [vmem:[#allocation14 + $0x44] sm:$0xf]
        %v1407 = vld [vmem:[#allocation14 + $0x48] sm:$0xf]
        %v1408 = vld [vmem:[#allocation14 + $0x4c] sm:$0xf]
        %v1409 = vld [vmem:[#allocation14 + $0x50] sm:$0xf]
        %v1410 = vld [vmem:[#allocation14 + $0x54] sm:$0xf]
        %v1411 = vld [vmem:[#allocation14 + $0x58] sm:$0xf]
        %v1412 = vld [vmem:[#allocation14 + $0x5c] sm:$0xf]
        %v1413 = vld [vmem:[#allocation14 + $0x60] sm:$0xf]
        %v1414 = vld [vmem:[#allocation14 + $0x64] sm:$0xf]
        %v1415 = vld [vmem:[#allocation14 + $0x68] sm:$0xf]
        %v1416 = vld [vmem:[#allocation14 + $0x6c] sm:$0xf]
        %v1417 = vld [vmem:[#allocation14 + $0x70] sm:$0xf]
        %v1418 = vld [vmem:[#allocation14 + $0x74] sm:$0xf]
        %v1419 = vld [vmem:[#allocation14 + $0x78] sm:$0xf]
        %v1420 = vld [vmem:[#allocation14 + $0x7c] sm:$0xf]
        %v1421 = vld [vmem:[#allocation14 + $0x80] sm:$0xf]
        %v1422 = vld [vmem:[#allocation14 + $0x84] sm:$0xf]
        %v1423 = vld [vmem:[#allocation14 + $0x88] sm:$0xf]
        %v1424 = vld [vmem:[#allocation14 + $0x8c] sm:$0xf]
        %v1425 = vld [vmem:[#allocation14 + $0x90] sm:$0xf]
        %v1426 = vld [vmem:[#allocation14 + $0x94] sm:$0xf]
        %v1427 = vld [vmem:[#allocation14 + $0x98] sm:$0xf]
        %v1428 = vld [vmem:[#allocation14 + $0x9c] sm:$0xf]
        %v1429 = vld [vmem:[#allocation14 + $0xa0] sm:$0xf]
        %v1430 = vld [vmem:[#allocation14 + $0xa4] sm:$0xf]
        %v1431 = vld [vmem:[#allocation14 + $0xa8] sm:$0xf]
        %v1432 = vld [vmem:[#allocation14 + $0xac] sm:$0xf]
        %v1433 = vld [vmem:[#allocation14 + $0xb0] sm:$0xf]
        %v1434 = vld [vmem:[#allocation14 + $0xb4] sm:$0xf]
        %v1435 = vld [vmem:[#allocation14 + $0xb8] sm:$0xf]
        %v1436 = vld [vmem:[#allocation14 + $0xbc] sm:$0xf]
        %v1437 = vld [vmem:[#allocation14 + $0xc0] sm:$0xf]
        %v1438 = vld [vmem:[#allocation14 + $0xc4] sm:$0xf]
        %v1439 = vld [vmem:[#allocation14 + $0xc8] sm:$0xf]
        %v1440 = vld [vmem:[#allocation14 + $0xcc] sm:$0xf]
        %v1441 = vld [vmem:[#allocation14 + $0xd0] sm:$0xf]
        %v1442 = vld [vmem:[#allocation14 + $0xd4] sm:$0xf]
        %v1443 = vld [vmem:[#allocation14 + $0xd8] sm:$0xf]
        %v1444 = vld [vmem:[#allocation14 + $0xdc] sm:$0xf]
        %v1445 = vld [vmem:[#allocation14 + $0xe0] sm:$0xf]
        %v1446 = vld [vmem:[#allocation14 + $0xe4] sm:$0xf]
        %v1447 = vld [vmem:[#allocation14 + $0xe8] sm:$0xf]
        %v1448 = vld [vmem:[#allocation14 + $0xec] sm:$0xf]
        %v1449 = vld [vmem:[#allocation14 + $0xf0] sm:$0xf]
        %v1450 = vld [vmem:[#allocation14 + $0xf4] sm:$0xf]
        %v1451 = vld [vmem:[#allocation14 + $0xf8] sm:$0xf]
        %v1452 = vld [vmem:[#allocation14 + $0xfc] sm:$0xf]
        %v1455 = vunpack.c.l.b16 %v1387
        %v1456 = vunpack.c.h.b16 %v1387
        %v1457 = vunpack.c.l.b16 %v1388
        %v1458 = vunpack.c.h.b16 %v1388
        %v1459 = vpack.c.b16 %v1455, %v1455
        %v1460 = vpack.c.b16 %v1456, %v1456
        %v1461 = vpack.c.b16 %v1457, %v1457
        %v1462 = vpack.c.b16 %v1458, %v1458
        %v1531 = vunpack.c.l.b16 %v1389
        %v1532 = vunpack.c.l.b16 %v1390
        %v1533 = vunpack.c.l.b16 %v1391
        %v1534 = vunpack.c.l.b16 %v1392
        %v1535 = vunpack.c.l.b16 %v1393
        %v1536 = vunpack.c.l.b16 %v1394
        %v1537 = vunpack.c.l.b16 %v1395
        %v1538 = vunpack.c.l.b16 %v1396
        %v1539 = vunpack.c.l.b16 %v1397
        %v1540 = vunpack.c.l.b16 %v1398
        %v1541 = vunpack.c.l.b16 %v1399
        %v1542 = vunpack.c.l.b16 %v1400
        %v1543 = vunpack.c.l.b16 %v1401
        %v1544 = vunpack.c.l.b16 %v1402
        %v1545 = vunpack.c.l.b16 %v1403
        %v1546 = vunpack.c.l.b16 %v1404
        %v1547 = vunpack.c.l.b16 %v1405
        %v1548 = vunpack.c.l.b16 %v1406
        %v1549 = vunpack.c.l.b16 %v1407
        %v1550 = vunpack.c.l.b16 %v1408
        %v1551 = vunpack.c.l.b16 %v1409
        %v1552 = vunpack.c.l.b16 %v1410
        %v1553 = vunpack.c.l.b16 %v1411
        %v1554 = vunpack.c.l.b16 %v1412
        %v1555 = vunpack.c.l.b16 %v1413
        %v1556 = vunpack.c.l.b16 %v1414
        %v1557 = vunpack.c.l.b16 %v1415
        %v1558 = vunpack.c.l.b16 %v1416
        %v1559 = vunpack.c.l.b16 %v1417
        %v1560 = vunpack.c.l.b16 %v1418
        %v1561 = vunpack.c.l.b16 %v1419
        %v1562 = vunpack.c.l.b16 %v1420
        %v1563 = vunpack.c.l.b16 %v1421
        %v1564 = vunpack.c.l.b16 %v1422
        %v1565 = vunpack.c.l.b16 %v1423
        %v1566 = vunpack.c.l.b16 %v1424
        %v1567 = vunpack.c.l.b16 %v1425
        %v1568 = vunpack.c.l.b16 %v1426
        %v1569 = vunpack.c.l.b16 %v1427
        %v1570 = vunpack.c.l.b16 %v1428
        %v1571 = vunpack.c.l.b16 %v1429
        %v1572 = vunpack.c.l.b16 %v1430
        %v1573 = vunpack.c.l.b16 %v1431
        %v1574 = vunpack.c.l.b16 %v1432
        %v1575 = vunpack.c.l.b16 %v1433
        %v1576 = vunpack.c.l.b16 %v1434
        %v1577 = vunpack.c.l.b16 %v1435
        %v1578 = vunpack.c.l.b16 %v1436
        %v1579 = vunpack.c.l.b16 %v1437
        %v1580 = vunpack.c.l.b16 %v1438
        %v1581 = vunpack.c.l.b16 %v1439
        %v1582 = vunpack.c.l.b16 %v1440
        %v1583 = vunpack.c.l.b16 %v1441
        %v1584 = vunpack.c.l.b16 %v1442
        %v1585 = vunpack.c.l.b16 %v1443
        %v1586 = vunpack.c.l.b16 %v1444
        %v1587 = vunpack.c.l.b16 %v1445
        %v1588 = vunpack.c.l.b16 %v1446
        %v1589 = vunpack.c.l.b16 %v1447
        %v1590 = vunpack.c.l.b16 %v1448
        %v1591 = vunpack.c.l.b16 %v1449
        %v1592 = vunpack.c.l.b16 %v1450
        %v1593 = vunpack.c.l.b16 %v1451
        %v1594 = vunpack.c.l.b16 %v1452
        %v1595 = vpack.c.b16 %v1532, %v1531
        %v1596 = vpack.c.b16 %v1534, %v1533
        %v1597 = vpack.c.b16 %v1536, %v1535
        %v1598 = vpack.c.b16 %v1538, %v1537
        %v1599 = vpack.c.b16 %v1540, %v1539
        %v1600 = vpack.c.b16 %v1542, %v1541
        %v1601 = vpack.c.b16 %v1544, %v1543
        %v1602 = vpack.c.b16 %v1546, %v1545
        %v1603 = vpack.c.b16 %v1548, %v1547
        %v1604 = vpack.c.b16 %v1550, %v1549
        %v1605 = vpack.c.b16 %v1552, %v1551
        %v1606 = vpack.c.b16 %v1554, %v1553
        %v1607 = vpack.c.b16 %v1556, %v1555
        %v1608 = vpack.c.b16 %v1558, %v1557
        %v1609 = vpack.c.b16 %v1560, %v1559
        %v1610 = vpack.c.b16 %v1562, %v1561
        %v1611 = vpack.c.b16 %v1564, %v1563
        %v1612 = vpack.c.b16 %v1566, %v1565
        %v1613 = vpack.c.b16 %v1568, %v1567
        %v1614 = vpack.c.b16 %v1570, %v1569
        %v1615 = vpack.c.b16 %v1572, %v1571
        %v1616 = vpack.c.b16 %v1574, %v1573
        %v1617 = vpack.c.b16 %v1576, %v1575
        %v1618 = vpack.c.b16 %v1578, %v1577
        %v1619 = vpack.c.b16 %v1580, %v1579
        %v1620 = vpack.c.b16 %v1582, %v1581
        %v1621 = vpack.c.b16 %v1584, %v1583
        %v1622 = vpack.c.b16 %v1586, %v1585
        %v1623 = vpack.c.b16 %v1588, %v1587
        %v1624 = vpack.c.b16 %v1590, %v1589
        %v1625 = vpack.c.b16 %v1592, %v1591
        %v1626 = vpack.c.b16 %v1594, %v1593
        %1659 = vmatpush.bf16.msra.mxu0 %v1602
        %1660 = vmatpush.bf16.msra.mxu0 %v1601
        %1661 = vmatpush.bf16.msra.mxu0 %v1600
        %1662 = vmatpush.bf16.msra.mxu0 %v1599
        %1663 = vmatpush.bf16.msra.mxu0 %v1598
        %1664 = vmatpush.bf16.msra.mxu0 %v1597
        %1665 = vmatpush.bf16.msra.mxu0 %v1596
        %1666 = vmatpush.bf16.msra.mxu0 %v1595
        %1667 = vmatmul.bf16.gmra.mxu0 %v1459
        %v1668 = vpop.f32.mrf.mxu0
        %v1669 = vadd.f32 0.0, %v1668
        %v1670 = vpop.f32.mrf.mxu0
        %1671 = vdwg.mxu0
        %1672 = vmatpush.bf16.msra.mxu0 %v1610
        %1673 = vmatpush.bf16.msra.mxu0 %v1609
        %1674 = vmatpush.bf16.msra.mxu0 %v1608
        %1675 = vmatpush.bf16.msra.mxu0 %v1607
        %1676 = vmatpush.bf16.msra.mxu0 %v1606
        %1677 = vmatpush.bf16.msra.mxu0 %v1605
        %1678 = vmatpush.bf16.msra.mxu0 %v1604
        %1679 = vmatpush.bf16.msra.mxu0 %v1603
        %1680 = vmatmul.bf16.gmra.mxu0 %v1460
        %v1681 = vpop.f32.mrf.mxu0
        %v1682 = vadd.f32 %v1669, %v1681
        %v1683 = vpop.f32.mrf.mxu0
        %1684 = vdwg.mxu0
        %1685 = vmatpush.bf16.msra.mxu0 %v1618
        %1686 = vmatpush.bf16.msra.mxu0 %v1617
        %1687 = vmatpush.bf16.msra.mxu0 %v1616
        %1688 = vmatpush.bf16.msra.mxu0 %v1615
        %1689 = vmatpush.bf16.msra.mxu0 %v1614
        %1690 = vmatpush.bf16.msra.mxu0 %v1613
        %1691 = vmatpush.bf16.msra.mxu0 %v1612
        %1692 = vmatpush.bf16.msra.mxu0 %v1611
        %1693 = vmatmul.bf16.gmra.mxu0 %v1461
        %v1694 = vpop.f32.mrf.mxu0
        %v1695 = vadd.f32 %v1682, %v1694
        %v1696 = vpop.f32.mrf.mxu0
        %1697 = vdwg.mxu0
        %1698 = vmatpush.bf16.msra.mxu0 %v1626
        %1699 = vmatpush.bf16.msra.mxu0 %v1625
        %1700 = vmatpush.bf16.msra.mxu0 %v1624
        %1701 = vmatpush.bf16.msra.mxu0 %v1623
        %1702 = vmatpush.bf16.msra.mxu0 %v1622
        %1703 = vmatpush.bf16.msra.mxu0 %v1621
        %1704 = vmatpush.bf16.msra.mxu0 %v1620
        %1705 = vmatpush.bf16.msra.mxu0 %v1619
        %1706 = vmatmul.bf16.gmra.mxu0 %v1462
        %v1707 = vpop.f32.mrf.mxu0
        %v1708 = vadd.f32 %v1695, %v1707
        %v1709 = vpop.f32.mrf.mxu0
        %1710 = vdwg.mxu0
        %1711 = vst [vmem:[%s436] sm:$0xff] %v1708
        %s1712 = sand.u32 %s199, 1
        %s1713 = scalar_lea.sflag [#allocation5], %s1712
        %s1714 = sand.u32 %s199, 1
        %s1715 = smul.addr %s1714, 8
        %s1716 = scalar_lea.vmem [#allocation15], %s1715
        // Predicated region
        $region77: #{tpu_custom_call.1} parent=47 // pred_check
          %p1717 = pneg %p209
        $region78: #{tpu_custom_call.1} parent=47 // pred_check_branch
          %1719 = sbr.rel (%p1717) target = $region80
        $region79: #{tpu_custom_call.1} parent=47 // pred_region
          %1721 = vsyncadd %s1713, 0
          %s1722 = smul.addr %s29, 8
          %s1723 = scalar_lea.hbm %s7, %s1722
          %s1725 = sshll.u32 %s1716, 4
          %s1726 = int_to_ptr.vmem [resolvable:$true] %s1725
          %s1727 = sshll.u32 %s1723, 4
          %s1728 = int_to_ptr.hbm [resolvable:$true] %s1727
          %1730 = dma.vmem_to_hbm [thread:$0]  %s1726, 128, %s1728, %s1713
        $region80: #{tpu_custom_call.1} parent=47 // pred_fallthru
          _
      $region48: #{tpu_custom_call.1} parent=5 // pred_fallthru
        _
      %p1731 = scmp.le.s32.totalorder 2, %s24
      // Predicated region
      $region81: #{tpu_custom_call.1} parent=5 // pred_check
        %p1732 = pneg %p1731
      $region82: #{tpu_custom_call.1} parent=5 // pred_check_branch
        %1734 = sbr.rel (%p1732) target = $region84
      $region83: #{tpu_custom_call.1} parent=5 // pred_region
        %s1735 = ssub.s32 %s24, 2
        // Predicated region
        $region85: #{tpu_custom_call.1} parent=83 // pred_check
          %p1736 = pneg %p215
        $region86: #{tpu_custom_call.1} parent=83 // pred_check_branch
          %1738 = sbr.rel (%p1736) target = $region88
        $region87: #{tpu_custom_call.1} parent=83 // pred_region
          %s1739 = sand.u32 %s200, 1
          %s1740 = scalar_lea.sflag [#allocation5], %s1739
          %s1741 = sand.u32 %s200, 1
          %s1742 = smul.addr %s1741, 8
          %s1743 = scalar_lea.vmem [#allocation15], %s1742
          %1745 = dma.done %s1740, 128
        $region88: #{tpu_custom_call.1} parent=83 // pred_fallthru
          _
      $region84: #{tpu_custom_call.1} parent=5 // pred_fallthru
        _
    $region6: #{tpu_custom_call.1} parent=1 // loop_footer
      %s28 = sadd.s32 1, %s24
    $region7: #{tpu_custom_call.1} parent=1 // loop_footer_branch
      %23 = sbr.rel target = $region3
    $region8: #{tpu_custom_call.1} parent=1 // loop_exit
      _
    %1746 = vsyncpa [#allocation4], 1
    %s1747 = scalar_lea.sflag [#allocation4], 1
    %1748 = vsyncpa %s1747, 1
    %1749 = vsyncpa [#allocation7], 1
    %s1750 = scalar_lea.sflag [#allocation7], 1
    %1751 = vsyncpa %s1750, 1
    %1752 = vsyncpa [#allocation10], 1
    %1753 = vsyncpa [#allocation13], 1
    %1754 = vsyncpa [#allocation5], 1
    %s1755 = scalar_lea.sflag [#allocation5], 1
    %1756 = vsyncpa %s1755, 1

</llo_original>
